<compile_context>
chip_gen: v5e
topology: v5e:2x2
jax: 0.10.0
libtpu: 0.0.40
codegen_flags: <defaults>
</compile_context>

<pallas_src>
import numpy as np

import jax
import jax.numpy as jnp
from jax import lax
from jax.experimental import pallas as pl
from jax.experimental.pallas import tpu as pltpu

_H = _W = 28
_STRIDE = 30            # 28 image columns + 2 zero guard columns per row
_LANES = 896            # 7 * 128 lanes; image occupies lanes 0 .. 28*30-1 = 839


# ----------------------------- fused Pallas kernel -------------------------- #

def _cnn_fused_kernel(x_ref, cw_ref, sp_ref, s2_ref, wf1_ref, o_ref,
                      stk1_ref, stk2_ref):
    """Whole Classify_Digits forward pass.

    Feature maps are channel-major (C, 896) with flat spatial index
    l = y*30 + x on the lane axis.  Guard columns (x = 28, 29) and pad lanes
    (>= 840) are zero in the input, which makes the 3x3 convs mask-free.
    """
    f32 = jnp.float32
    bf16 = jnp.bfloat16
    x = x_ref[...]                                        # (1, 896) f32

    # ---- 2x2-pool anchor mask (y, x even and <= 26), built from iota ------- #
    lane = lax.broadcasted_iota(jnp.int32, (1, _LANES), 1).astype(f32)
    r60 = lane - 60.0 * jnp.floor((lane + 0.5) * (1.0 / 60.0))  # x (even row) or 30+x
    even = (r60 - 2.0 * jnp.floor((r60 + 0.5) * 0.5)) == 0.0
    anchor = jnp.where(even & (r60 <= 26.5) & (lane <= 806.5), 1.0, 0.0)

    # ---- conv_1 (1 -> 16, 3x3, pad 1): 9 rolled rows -> one MXU matmul ----- #
    for t in range(9):
        dy, dx = t // 3 - 1, t % 3 - 1
        shift = (-(dy * _STRIDE + dx)) % _LANES
        stk1_ref[t:t + 1, :] = pltpu.roll(x, shift, axis=1) if shift else x
    w1 = cw_ref[0:16, 0:9]                                # (16, 9) bf16
    z1 = jnp.dot(w1, stk1_ref[...].astype(bf16), preferred_element_type=f32)
    z1 = jnp.maximum(z1 + sp_ref[0:16, 30:31], 0.0)       # + b1, ReLU  (16, 896)

    # ---- pool 1: 2x2 max via lane rolls (valid at even (y, x) anchors) ----- #
    zh1 = jnp.maximum(z1, pltpu.roll(z1, _LANES - 1, axis=1))
    p1 = jnp.maximum(zh1, pltpu.roll(zh1, _LANES - _STRIDE, axis=1))
    p1 = p1 * anchor          # zero guard/odd/garbage lanes once, instead of 9 tap masks

    # ---- conv_2 (16 -> 32) on the stride-2 embedded 14x14 map: one matmul -- #
    for t in range(9):
        dy, dx = t // 3 - 1, t % 3 - 1
        shift = (-(2 * (dy * _STRIDE + dx))) % _LANES
        src = pltpu.roll(p1, shift, axis=1) if shift else p1
        stk2_ref[t * 16:(t + 1) * 16, :] = src.astype(bf16)
    w2 = cw_ref[16:48, :]                                 # (32, 144) bf16
    z2 = jnp.dot(w2, stk2_ref[...], preferred_element_type=f32)
    z2 = jnp.maximum(z2 + sp_ref[0:32, 31:32], 0.0)       # + b2, ReLU  (32, 896)

    # ---- pool 2: 14x14 -> 7x7 (anchors at y, x = 0 mod 4) ------------------ #
    zh2 = jnp.maximum(z2, pltpu.roll(z2, _LANES - 2, axis=1))
    p2 = jnp.maximum(zh2, pltpu.roll(zh2, _LANES - 2 * _STRIDE, axis=1))

    # ---- gather the 49 valid pooled lanes with one selection matmul -------- #
    pooled = jnp.dot(p2.astype(bf16), s2_ref[...],
                     preferred_element_type=f32)          # (32, 49) f32

    # ---- fc_1 (1568 -> 25) + ReLU: PyTorch's channel-major flatten is baked
    #      into wf1r (25, 32, 49).  Kept as VPU broadcast+reduce: a single-dot
    #      form needs a 2-contracting-dim dot_general (not lowered by Mosaic).
    prod = wf1_ref[...] * pooled[None, :, :]              # (25, 32, 49)
    h = jnp.sum(jnp.sum(prod, axis=2), axis=1, keepdims=True)      # (25, 1)
    h = jnp.maximum(h + sp_ref[0:25, 0:1], 0.0)

    # ---- fc_2 (25 -> 10) ---------------------------------------------------- #
    o_ref[...] = (jnp.dot(sp_ref[0:10, 1:26], h, preferred_element_type=f32)
                  + sp_ref[0:10, 26:27])                  # (10, 1)


def _fused_forward(x_row, prep):
    vmem = pl.BlockSpec(memory_space=pltpu.MemorySpace.VMEM)
    return pl.pallas_call(
        _cnn_fused_kernel,
        out_shape=jax.ShapeDtypeStruct((10, 1), jnp.float32),
        in_specs=[vmem] * 5,
        out_specs=vmem,
        scratch_shapes=[pltpu.VMEM((9, _LANES), jnp.float32),     # conv1 stack
                        pltpu.VMEM((144, _LANES), jnp.bfloat16)], # conv2 stack
        cost_estimate=pl.CostEstimate(flops=11_400_000, transcendentals=0,
                                      bytes_accessed=280_000),
    )(x_row, prep["cw"], prep["sp"], prep["s2"], prep["wf1r"])


# ------------------------- parameter / constant prep ------------------------ #

def _selection_matrix():
    """(896, 49) 0/1 matrix picking the 7x7 pooled anchors (lane 4*Qy*30+4*Qx)."""
    s2 = np.zeros((_LANES, 49), np.float32)
    q = np.arange(49)
    s2[(q // 7) * 4 * _STRIDE + (q % 7) * 4, q] = 1.0
    return s2


def prepare_params(params):
    """One-time repack of the PyTorch-layout parameters for the fused kernel."""
    # Conv weights packed into one bf16 array: rows 0..15 = conv1 (K=9 in
    # columns 0..8), rows 16..47 = conv2 as (32, tap*16 + cin).
    cw = np.zeros((48, 144), np.float32)
    cw[0:16, 0:9] = np.asarray(params["w1"], np.float32).reshape(16, 9)
    cw[16:48, :] = np.transpose(np.asarray(params["w2"], np.float32),
                                (0, 2, 3, 1)).reshape(32, 144)

    # All small params packed into one (32, 128) f32 array (1 DMA instead of 5).
    sp = np.zeros((32, 128), np.float32)
    sp[0:25, 0] = np.asarray(params["bf1"], np.float32)       # fc_1 bias
    sp[0:10, 1:26] = np.asarray(params["wf2"], np.float32)    # fc_2 weight
    sp[0:10, 26] = np.asarray(params["bf2"], np.float32)      # fc_2 bias
    sp[0:16, 30] = np.asarray(params["b1"], np.float32)       # conv_1 bias
    sp[0:32, 31] = np.asarray(params["b2"], np.float32)       # conv_2 bias

    return {
        "cw": jnp.asarray(cw, jnp.bfloat16),
        "sp": jnp.asarray(sp, jnp.float32),
        "s2": jnp.asarray(_selection_matrix(), jnp.bfloat16),
        # fc_1 weight as (25, 32, 49): absorbs PyTorch's channel-major flatten.
        "wf1r": jnp.asarray(params["wf1"], jnp.float32).reshape(25, 32, 49),
    }


def init_params(key):
    ks = jax.random.split(key, 8)
    return {
        "w1": 0.10 * jax.random.normal(ks[0], (16, 1, 3, 3), jnp.float32),
        "b1": 0.10 * jax.random.normal(ks[1], (16,), jnp.float32),
        "w2": 0.10 * jax.random.normal(ks[2], (32, 16, 3, 3), jnp.float32),
        "b2": 0.10 * jax.random.normal(ks[3], (32,), jnp.float32),
        "wf1": 0.05 * jax.random.normal(ks[4], (25, 32 * 7 * 7), jnp.float32),
        "bf1": 0.05 * jax.random.normal(ks[5], (25,), jnp.float32),
        "wf2": 0.05 * jax.random.normal(ks[6], (10, 25), jnp.float32),
        "bf2": 0.05 * jax.random.normal(ks[7], (10,), jnp.float32),
    }


@jax.jit
def classify_digits_forward(x_nchw, prep):
    # x_nchw: (1, 1, 28, 28) float32, NCHW like PyTorch.
    x2d = x_nchw.reshape(_H, _W).astype(jnp.float32)
    x2d = jnp.pad(x2d, ((0, 0), (0, _STRIDE - _W)))            # zero guard columns
    x_row = x2d.reshape(1, _H * _STRIDE)
    x_row = jnp.pad(x_row, ((0, 0), (0, _LANES - _H * _STRIDE)))  # zero pad lanes
    return _fused_forward(x_row, prep).reshape(1, 10)


# -------------------------- pure-JAX reference check ------------------------ #

def reference_forward(x_nchw, params):
    def conv(x, w, b):
        y = lax.conv_general_dilated(
            x, w, (1, 1), ((1, 1), (1, 1)),
            dimension_numbers=("NCHW", "OIHW", "NCHW"))
        return y + b[None, :, None, None]

    def pool(x):
        return lax.reduce_window(x, -jnp.inf, lax.max,
                                 (1, 1, 2, 2), (1, 1, 2, 2), "VALID")

    h = jax.nn.relu(conv(x_nchw, params["w1"], params["b1"]))
    h = pool(h)
    h = jax.nn.relu(conv(h, params["w2"], params["b2"]))
    h = pool(h)
    h = h.reshape(1, 1568)
    h = jax.nn.relu(h @ params["wf1"].T + params["bf1"])
    return h @ params["wf2"].T + params["bf2"]


if __name__ == "__main__":
    key = jax.random.PRNGKey(0)
    kx, kp = jax.random.split(key)
    x = jax.random.normal(kx, (1, 1, 28, 28), jnp.float32)
    params = init_params(kp)
    prep = prepare_params(params)

    out = jax.block_until_ready(classify_digits_forward(x, prep))
    ref = reference_forward(x, params)

    assert out.shape == (1, 10)
    # bf16 MXU operands (f32 accumulate) -> slightly looser tolerance than pure f32.
    assert jnp.allclose(out, ref, rtol=3e-2, atol=3e-2), (out, ref)
    print("KERNEL_OK")
</pallas_src>

<mosaic_0001>
module attributes {stable_mosaic.version = 11 : i64} {
  func.func @_cnn_fused_kernel(%arg0: memref<1x896xf32, #tpu.memory_space<vmem>>, %arg1: memref<48x144xbf16, #tpu.memory_space<vmem>>, %arg2: memref<32x128xf32, #tpu.memory_space<vmem>>, %arg3: memref<896x49xbf16, #tpu.memory_space<vmem>>, %arg4: memref<25x32x49xf32, #tpu.memory_space<vmem>>, %arg5: memref<10x1xf32, #tpu.memory_space<vmem>>, %arg6: memref<9x896xf32, #tpu.memory_space<vmem>>, %arg7: memref<144x896xbf16, #tpu.memory_space<vmem>>) attributes {dimension_semantics = [], scalar_prefetch = 0 : i64, scratch_operands = 2 : i64, tpu.core_type = #tpu.core_type<tc>} {
    %c0 = arith.constant 0 : index
    %c0_0 = arith.constant 0 : index
    %0 = vector.load %arg0[%c0, %c0_0] : memref<1x896xf32, #tpu.memory_space<vmem>>, vector<1x896xf32>
    %1 = tpu.iota {dimensions = array<i32: 1>} : vector<1x896xi32>
    %2 = arith.sitofp %1 : vector<1x896xi32> to vector<1x896xf32>
    %cst = arith.constant 5.000000e-01 : f32
    %3 = vector.broadcast %cst : f32 to vector<1x896xf32>
    %4 = arith.addf %2, %3 : vector<1x896xf32>
    %cst_1 = arith.constant 0.0166666675 : f32
    %5 = vector.broadcast %cst_1 : f32 to vector<1x896xf32>
    %6 = arith.mulf %4, %5 : vector<1x896xf32>
    %7 = math.floor %6 : vector<1x896xf32>
    %cst_2 = arith.constant 6.000000e+01 : f32
    %8 = vector.broadcast %cst_2 : f32 to vector<1x896xf32>
    %9 = arith.mulf %8, %7 : vector<1x896xf32>
    %10 = arith.subf %2, %9 : vector<1x896xf32>
    %cst_3 = arith.constant 5.000000e-01 : f32
    %11 = vector.broadcast %cst_3 : f32 to vector<1x896xf32>
    %12 = arith.addf %10, %11 : vector<1x896xf32>
    %cst_4 = arith.constant 5.000000e-01 : f32
    %13 = vector.broadcast %cst_4 : f32 to vector<1x896xf32>
    %14 = arith.mulf %12, %13 : vector<1x896xf32>
    %15 = math.floor %14 : vector<1x896xf32>
    %cst_5 = arith.constant 2.000000e+00 : f32
    %16 = vector.broadcast %cst_5 : f32 to vector<1x896xf32>
    %17 = arith.mulf %16, %15 : vector<1x896xf32>
    %18 = arith.subf %10, %17 : vector<1x896xf32>
    %cst_6 = arith.constant 0.000000e+00 : f32
    %19 = vector.broadcast %cst_6 : f32 to vector<1x896xf32>
    %20 = arith.cmpf oeq, %18, %19 : vector<1x896xf32>
    %cst_7 = arith.constant 2.650000e+01 : f32
    %21 = vector.broadcast %cst_7 : f32 to vector<1x896xf32>
    %22 = arith.cmpf ole, %10, %21 : vector<1x896xf32>
    %23 = arith.andi %20, %22 : vector<1x896xi1>
    %cst_8 = arith.constant 8.065000e+02 : f32
    %24 = vector.broadcast %cst_8 : f32 to vector<1x896xf32>
    %25 = arith.cmpf ole, %2, %24 : vector<1x896xf32>
    %26 = arith.andi %23, %25 : vector<1x896xi1>
    %cst_9 = arith.constant 1.000000e+00 : f32
    %cst_10 = arith.constant 0.000000e+00 : f32
    %27 = vector.broadcast %cst_9 : f32 to vector<1x896xf32>
    %28 = vector.broadcast %cst_10 : f32 to vector<1x896xf32>
    %29 = arith.select %26, %27, %28 : vector<1x896xi1>, vector<1x896xf32>
    %c31_i32 = arith.constant 31 : i32
    %30 = tpu.dynamic_rotate %0 by %c31_i32 dim 1 : vector<1x896xf32>, i32 -> vector<1x896xf32>
    %c0_11 = arith.constant 0 : index
    %c0_12 = arith.constant 0 : index
    %31 = vector.load %arg6[%c0_11, %c0_12] : memref<9x896xf32, #tpu.memory_space<vmem>>, vector<1x896xf32>
    tpu.vector_store %arg6[%c0_11, %c0_12], %30 {strides = array<i32>} : memref<9x896xf32, #tpu.memory_space<vmem>>, vector<1x896xf32>,
    %c30_i32 = arith.constant 30 : i32
    %32 = tpu.dynamic_rotate %0 by %c30_i32 dim 1 : vector<1x896xf32>, i32 -> vector<1x896xf32>
    %c1 = arith.constant 1 : index
    %c0_13 = arith.constant 0 : index
    %33 = vector.load %arg6[%c1, %c0_13] : memref<9x896xf32, #tpu.memory_space<vmem>>, vector<1x896xf32>
    tpu.vector_store %arg6[%c1, %c0_13], %32 {strides = array<i32>} : memref<9x896xf32, #tpu.memory_space<vmem>>, vector<1x896xf32>,
    %c29_i32 = arith.constant 29 : i32
    %34 = tpu.dynamic_rotate %0 by %c29_i32 dim 1 : vector<1x896xf32>, i32 -> vector<1x896xf32>
    %c2 = arith.constant 2 : index
    %c0_14 = arith.constant 0 : index
    %35 = vector.load %arg6[%c2, %c0_14] : memref<9x896xf32, #tpu.memory_space<vmem>>, vector<1x896xf32>
    tpu.vector_store %arg6[%c2, %c0_14], %34 {strides = array<i32>} : memref<9x896xf32, #tpu.memory_space<vmem>>, vector<1x896xf32>,
    %c1_i32 = arith.constant 1 : i32
    %36 = tpu.dynamic_rotate %0 by %c1_i32 dim 1 : vector<1x896xf32>, i32 -> vector<1x896xf32>
    %c3 = arith.constant 3 : index
    %c0_15 = arith.constant 0 : index
    %37 = vector.load %arg6[%c3, %c0_15] : memref<9x896xf32, #tpu.memory_space<vmem>>, vector<1x896xf32>
    tpu.vector_store %arg6[%c3, %c0_15], %36 {strides = array<i32>} : memref<9x896xf32, #tpu.memory_space<vmem>>, vector<1x896xf32>,
    %c4 = arith.constant 4 : index
    %c0_16 = arith.constant 0 : index
    %38 = vector.load %arg6[%c4, %c0_16] : memref<9x896xf32, #tpu.memory_space<vmem>>, vector<1x896xf32>
    tpu.vector_store %arg6[%c4, %c0_16], %0 {strides = array<i32>} : memref<9x896xf32, #tpu.memory_space<vmem>>, vector<1x896xf32>,
    %c895_i32 = arith.constant 895 : i32
    %39 = tpu.dynamic_rotate %0 by %c895_i32 dim 1 : vector<1x896xf32>, i32 -> vector<1x896xf32>
    %c5 = arith.constant 5 : index
    %c0_17 = arith.constant 0 : index
    %40 = vector.load %arg6[%c5, %c0_17] : memref<9x896xf32, #tpu.memory_space<vmem>>, vector<1x896xf32>
    tpu.vector_store %arg6[%c5, %c0_17], %39 {strides = array<i32>} : memref<9x896xf32, #tpu.memory_space<vmem>>, vector<1x896xf32>,
    %c867_i32 = arith.constant 867 : i32
    %41 = tpu.dynamic_rotate %0 by %c867_i32 dim 1 : vector<1x896xf32>, i32 -> vector<1x896xf32>
    %c6 = arith.constant 6 : index
    %c0_18 = arith.constant 0 : index
    %42 = vector.load %arg6[%c6, %c0_18] : memref<9x896xf32, #tpu.memory_space<vmem>>, vector<1x896xf32>
    tpu.vector_store %arg6[%c6, %c0_18], %41 {strides = array<i32>} : memref<9x896xf32, #tpu.memory_space<vmem>>, vector<1x896xf32>,
    %c866_i32 = arith.constant 866 : i32
    %43 = tpu.dynamic_rotate %0 by %c866_i32 dim 1 : vector<1x896xf32>, i32 -> vector<1x896xf32>
    %c7 = arith.constant 7 : index
    %c0_19 = arith.constant 0 : index
    %44 = vector.load %arg6[%c7, %c0_19] : memref<9x896xf32, #tpu.memory_space<vmem>>, vector<1x896xf32>
    tpu.vector_store %arg6[%c7, %c0_19], %43 {strides = array<i32>} : memref<9x896xf32, #tpu.memory_space<vmem>>, vector<1x896xf32>,
    %c865_i32 = arith.constant 865 : i32
    %45 = tpu.dynamic_rotate %0 by %c865_i32 dim 1 : vector<1x896xf32>, i32 -> vector<1x896xf32>
    %c8 = arith.constant 8 : index
    %c0_20 = arith.constant 0 : index
    %46 = vector.load %arg6[%c8, %c0_20] : memref<9x896xf32, #tpu.memory_space<vmem>>, vector<1x896xf32>
    tpu.vector_store %arg6[%c8, %c0_20], %45 {strides = array<i32>} : memref<9x896xf32, #tpu.memory_space<vmem>>, vector<1x896xf32>,
    %c0_21 = arith.constant 0 : index
    %c0_22 = arith.constant 0 : index
    %47 = vector.load %arg1[%c0_21, %c0_22] : memref<48x144xbf16, #tpu.memory_space<vmem>>, vector<16x9xbf16>
    %c0_23 = arith.constant 0 : index
    %c0_24 = arith.constant 0 : index
    %48 = vector.load %arg6[%c0_23, %c0_24] : memref<9x896xf32, #tpu.memory_space<vmem>>, vector<9x896xf32>
    %49 = arith.truncf %48 : vector<9x896xf32> to vector<9x896xbf16>
    %cst_25 = arith.constant dense<0.000000e+00> : vector<16x896xf32>
    %50 = tpu.matmul %47, %49, %cst_25 {dimension_numbers = #tpu.dot_dimension_numbers<[1], [0], [0], [1], [0, 0, 1, 1], [], []>} : vector<16x9xbf16>, vector<9x896xbf16>, vector<16x896xf32> -> vector<16x896xf32>
    %c0_26 = arith.constant 0 : index
    %c30 = arith.constant 30 : index
    %51 = vector.load %arg2[%c0_26, %c30] : memref<32x128xf32, #tpu.memory_space<vmem>>, vector<16x1xf32>
    %52 = vector.broadcast %51 : vector<16x1xf32> to vector<16x896xf32>
    %53 = arith.addf %50, %52 : vector<16x896xf32>
    %cst_27 = arith.constant 0.000000e+00 : f32
    %54 = vector.broadcast %cst_27 : f32 to vector<16x896xf32>
    %55 = arith.maximumf %53, %54 : vector<16x896xf32>
    %c895_i32_28 = arith.constant 895 : i32
    %56 = tpu.dynamic_rotate %55 by %c895_i32_28 dim 1 : vector<16x896xf32>, i32 -> vector<16x896xf32>
    %57 = arith.maximumf %55, %56 : vector<16x896xf32>
    %c866_i32_29 = arith.constant 866 : i32
    %58 = tpu.dynamic_rotate %57 by %c866_i32_29 dim 1 : vector<16x896xf32>, i32 -> vector<16x896xf32>
    %59 = arith.maximumf %57, %58 : vector<16x896xf32>
    %60 = vector.broadcast %29 : vector<1x896xf32> to vector<16x896xf32>
    %61 = arith.mulf %59, %60 : vector<16x896xf32>
    %c62_i32 = arith.constant 62 : i32
    %62 = tpu.dynamic_rotate %61 by %c62_i32 dim 1 : vector<16x896xf32>, i32 -> vector<16x896xf32>
    %63 = arith.truncf %62 : vector<16x896xf32> to vector<16x896xbf16>
    %c0_30 = arith.constant 0 : index
    %c0_31 = arith.constant 0 : index
    %64 = vector.load %arg7[%c0_30, %c0_31] : memref<144x896xbf16, #tpu.memory_space<vmem>>, vector<16x896xbf16>
    tpu.vector_store %arg7[%c0_30, %c0_31], %63 {strides = array<i32>} : memref<144x896xbf16, #tpu.memory_space<vmem>>, vector<16x896xbf16>,
    %c60_i32 = arith.constant 60 : i32
    %65 = tpu.dynamic_rotate %61 by %c60_i32 dim 1 : vector<16x896xf32>, i32 -> vector<16x896xf32>
    %66 = arith.truncf %65 : vector<16x896xf32> to vector<16x896xbf16>
    %c16 = arith.constant 16 : index
    %c0_32 = arith.constant 0 : index
    %67 = vector.load %arg7[%c16, %c0_32] : memref<144x896xbf16, #tpu.memory_space<vmem>>, vector<16x896xbf16>
    tpu.vector_store %arg7[%c16, %c0_32], %66 {strides = array<i32>} : memref<144x896xbf16, #tpu.memory_space<vmem>>, vector<16x896xbf16>,
    %c58_i32 = arith.constant 58 : i32
    %68 = tpu.dynamic_rotate %61 by %c58_i32 dim 1 : vector<16x896xf32>, i32 -> vector<16x896xf32>
    %69 = arith.truncf %68 : vector<16x896xf32> to vector<16x896xbf16>
    %c32 = arith.constant 32 : index
    %c0_33 = arith.constant 0 : index
    %70 = vector.load %arg7[%c32, %c0_33] : memref<144x896xbf16, #tpu.memory_space<vmem>>, vector<16x896xbf16>
    tpu.vector_store %arg7[%c32, %c0_33], %69 {strides = array<i32>} : memref<144x896xbf16, #tpu.memory_space<vmem>>, vector<16x896xbf16>,
    %c2_i32 = arith.constant 2 : i32
    %71 = tpu.dynamic_rotate %61 by %c2_i32 dim 1 : vector<16x896xf32>, i32 -> vector<16x896xf32>
    %72 = arith.truncf %71 : vector<16x896xf32> to vector<16x896xbf16>
    %c48 = arith.constant 48 : index
    %c0_34 = arith.constant 0 : index
    %73 = vector.load %arg7[%c48, %c0_34] : memref<144x896xbf16, #tpu.memory_space<vmem>>, vector<16x896xbf16>
    tpu.vector_store %arg7[%c48, %c0_34], %72 {strides = array<i32>} : memref<144x896xbf16, #tpu.memory_space<vmem>>, vector<16x896xbf16>,
    %74 = arith.truncf %61 : vector<16x896xf32> to vector<16x896xbf16>
    %c64 = arith.constant 64 : index
    %c0_35 = arith.constant 0 : index
    %75 = vector.load %arg7[%c64, %c0_35] : memref<144x896xbf16, #tpu.memory_space<vmem>>, vector<16x896xbf16>
    tpu.vector_store %arg7[%c64, %c0_35], %74 {strides = array<i32>} : memref<144x896xbf16, #tpu.memory_space<vmem>>, vector<16x896xbf16>,
    %c894_i32 = arith.constant 894 : i32
    %76 = tpu.dynamic_rotate %61 by %c894_i32 dim 1 : vector<16x896xf32>, i32 -> vector<16x896xf32>
    %77 = arith.truncf %76 : vector<16x896xf32> to vector<16x896xbf16>
    %c80 = arith.constant 80 : index
    %c0_36 = arith.constant 0 : index
    %78 = vector.load %arg7[%c80, %c0_36] : memref<144x896xbf16, #tpu.memory_space<vmem>>, vector<16x896xbf16>
    tpu.vector_store %arg7[%c80, %c0_36], %77 {strides = array<i32>} : memref<144x896xbf16, #tpu.memory_space<vmem>>, vector<16x896xbf16>,
    %c838_i32 = arith.constant 838 : i32
    %79 = tpu.dynamic_rotate %61 by %c838_i32 dim 1 : vector<16x896xf32>, i32 -> vector<16x896xf32>
    %80 = arith.truncf %79 : vector<16x896xf32> to vector<16x896xbf16>
    %c96 = arith.constant 96 : index
    %c0_37 = arith.constant 0 : index
    %81 = vector.load %arg7[%c96, %c0_37] : memref<144x896xbf16, #tpu.memory_space<vmem>>, vector<16x896xbf16>
    tpu.vector_store %arg7[%c96, %c0_37], %80 {strides = array<i32>} : memref<144x896xbf16, #tpu.memory_space<vmem>>, vector<16x896xbf16>,
    %c836_i32 = arith.constant 836 : i32
    %82 = tpu.dynamic_rotate %61 by %c836_i32 dim 1 : vector<16x896xf32>, i32 -> vector<16x896xf32>
    %83 = arith.truncf %82 : vector<16x896xf32> to vector<16x896xbf16>
    %c112 = arith.constant 112 : index
    %c0_38 = arith.constant 0 : index
    %84 = vector.load %arg7[%c112, %c0_38] : memref<144x896xbf16, #tpu.memory_space<vmem>>, vector<16x896xbf16>
    tpu.vector_store %arg7[%c112, %c0_38], %83 {strides = array<i32>} : memref<144x896xbf16, #tpu.memory_space<vmem>>, vector<16x896xbf16>,
    %c834_i32 = arith.constant 834 : i32
    %85 = tpu.dynamic_rotate %61 by %c834_i32 dim 1 : vector<16x896xf32>, i32 -> vector<16x896xf32>
    %86 = arith.truncf %85 : vector<16x896xf32> to vector<16x896xbf16>
    %c128 = arith.constant 128 : index
    %c0_39 = arith.constant 0 : index
    %87 = vector.load %arg7[%c128, %c0_39] : memref<144x896xbf16, #tpu.memory_space<vmem>>, vector<16x896xbf16>
    tpu.vector_store %arg7[%c128, %c0_39], %86 {strides = array<i32>} : memref<144x896xbf16, #tpu.memory_space<vmem>>, vector<16x896xbf16>,
    %c16_40 = arith.constant 16 : index
    %c0_41 = arith.constant 0 : index
    %88 = vector.load %arg1[%c16_40, %c0_41] : memref<48x144xbf16, #tpu.memory_space<vmem>>, vector<32x144xbf16>
    %c0_42 = arith.constant 0 : index
    %c0_43 = arith.constant 0 : index
    %89 = vector.load %arg7[%c0_42, %c0_43] : memref<144x896xbf16, #tpu.memory_space<vmem>>, vector<144x896xbf16>
    %cst_44 = arith.constant dense<0.000000e+00> : vector<32x896xf32>
    %90 = tpu.matmul %88, %89, %cst_44 {dimension_numbers = #tpu.dot_dimension_numbers<[1], [0], [0], [1], [0, 0, 1, 1], [], []>} : vector<32x144xbf16>, vector<144x896xbf16>, vector<32x896xf32> -> vector<32x896xf32>
    %c0_45 = arith.constant 0 : index
    %c31 = arith.constant 31 : index
    %91 = vector.load %arg2[%c0_45, %c31] : memref<32x128xf32, #tpu.memory_space<vmem>>, vector<32x1xf32>
    %92 = vector.broadcast %91 : vector<32x1xf32> to vector<32x896xf32>
    %93 = arith.addf %90, %92 : vector<32x896xf32>
    %cst_46 = arith.constant 0.000000e+00 : f32
    %94 = vector.broadcast %cst_46 : f32 to vector<32x896xf32>
    %95 = arith.maximumf %93, %94 : vector<32x896xf32>
    %c894_i32_47 = arith.constant 894 : i32
    %96 = tpu.dynamic_rotate %95 by %c894_i32_47 dim 1 : vector<32x896xf32>, i32 -> vector<32x896xf32>
    %97 = arith.maximumf %95, %96 : vector<32x896xf32>
    %c836_i32_48 = arith.constant 836 : i32
    %98 = tpu.dynamic_rotate %97 by %c836_i32_48 dim 1 : vector<32x896xf32>, i32 -> vector<32x896xf32>
    %99 = arith.maximumf %97, %98 : vector<32x896xf32>
    %100 = arith.truncf %99 : vector<32x896xf32> to vector<32x896xbf16>
    %c0_49 = arith.constant 0 : index
    %c0_50 = arith.constant 0 : index
    %101 = vector.load %arg3[%c0_49, %c0_50] : memref<896x49xbf16, #tpu.memory_space<vmem>>, vector<896x49xbf16>
    %cst_51 = arith.constant dense<0.000000e+00> : vector<32x49xf32>
    %102 = tpu.matmul %100, %101, %cst_51 {dimension_numbers = #tpu.dot_dimension_numbers<[1], [0], [0], [1], [0, 0, 1, 1], [], []>} : vector<32x896xbf16>, vector<896x49xbf16>, vector<32x49xf32> -> vector<32x49xf32>
    %c0_52 = arith.constant 0 : index
    %c0_53 = arith.constant 0 : index
    %c0_54 = arith.constant 0 : index
    %103 = vector.load %arg4[%c0_52, %c0_53, %c0_54] : memref<25x32x49xf32, #tpu.memory_space<vmem>>, vector<25x32x49xf32>
    %104 = vector.shape_cast %102 : vector<32x49xf32> to vector<1x32x49xf32>
    %105 = vector.broadcast %104 : vector<1x32x49xf32> to vector<25x32x49xf32>
    %106 = arith.mulf %103, %105 : vector<25x32x49xf32>
    %cst_55 = arith.constant dense<0.000000e+00> : vector<25x32xf32>
    %107 = vector.multi_reduction <add>, %106, %cst_55 [2] : vector<25x32x49xf32> to vector<25x32xf32>
    %cst_56 = arith.constant dense<0.000000e+00> : vector<25xf32>
    %108 = vector.multi_reduction <add>, %107, %cst_56 [1] : vector<25x32xf32> to vector<25xf32>
    %109 = vector.shape_cast %108 : vector<25xf32> to vector<25x1xf32>
    %c0_57 = arith.constant 0 : index
    %c0_58 = arith.constant 0 : index
    %110 = vector.load %arg2[%c0_57, %c0_58] : memref<32x128xf32, #tpu.memory_space<vmem>>, vector<25x1xf32>
    %111 = arith.addf %109, %110 : vector<25x1xf32>
    %cst_59 = arith.constant 0.000000e+00 : f32
    %112 = vector.broadcast %cst_59 : f32 to vector<25x1xf32>
    %113 = arith.maximumf %111, %112 : vector<25x1xf32>
    %c0_60 = arith.constant 0 : index
    %c1_61 = arith.constant 1 : index
    %114 = vector.load %arg2[%c0_60, %c1_61] : memref<32x128xf32, #tpu.memory_space<vmem>>, vector<10x25xf32>
    %cst_62 = arith.constant dense<0.000000e+00> : vector<10x1xf32>
    %115 = tpu.matmul %114, %113, %cst_62 {dimension_numbers = #tpu.dot_dimension_numbers<[1], [0], [0], [1], [0, 0, 1, 1], [], []>} : vector<10x25xf32>, vector<25x1xf32>, vector<10x1xf32> -> vector<10x1xf32>
    %c0_63 = arith.constant 0 : index
    %c26 = arith.constant 26 : index
    %116 = vector.load %arg2[%c0_63, %c26] : memref<32x128xf32, #tpu.memory_space<vmem>>, vector<10x1xf32>
    %117 = arith.addf %115, %116 : vector<10x1xf32>
    %c0_64 = arith.constant 0 : index
    %c0_65 = arith.constant 0 : index
    %118 = vector.load %arg5[%c0_64, %c0_65] : memref<10x1xf32, #tpu.memory_space<vmem>>, vector<10x1xf32>
    tpu.vector_store %arg5[%c0_64, %c0_65], %117 {strides = array<i32>} : memref<10x1xf32, #tpu.memory_space<vmem>>, vector<10x1xf32>,
    return
  }
}

</mosaic_0001>

<llo_original>
// kernel: classify_digits_forward.1
$region0: #{classify_digits_forward.1}
  #allocation0 [shape = 'u32[]', space=smem, size = 0x4, offset = 0x4, fixed_abs, tag = 'smem constant byte address 0x4 - core index']
  #allocation1 [shape = 'u32[72,128]{1,0:T(1,128)}', space=vmem, size = 0x9000, scoped, tag = 'internal scratch']
  #allocation2 [shape = 'f32[9,896]{1,0:T(8,128)}', space=vmem, size = 0xe000, scoped, tag = 'scratch operand']
  #allocation3 [shape = 'bf16[144,896]{1,0:T(8,128)(2,1)}', space=vmem, size = 0x3f000, scoped, tag = 'scratch operand']
  %s0 = inlined_call_operand.vmem [shape: f32[1,896], index: 0, kind: input, shape index: {}]
  %s1 = inlined_call_operand.hbm [shape: bf16[48,144], index: 1, kind: input, shape index: {}]
  %s2 = inlined_call_operand.hbm [shape: f32[32,128], index: 2, kind: input, shape index: {}]
  %s3 = inlined_call_operand.vmem [shape: bf16[896,49], index: 3, kind: input, shape index: {}]
  %s4 = inlined_call_operand.vmem [shape: f32[25,32,49], index: 4, kind: input, shape index: {}]
  %s5 = inlined_call_operand.vmem [shape: f32[10,1], index: 5, kind: output, shape index: {}]
  %s6 = sld [smem:[#allocation0]]
  $region38: #{classify_digits_forward.1} parent=0
    _
  %s8 = ssub.s32 1, %s6
  %s9 = scalar_select 0, %s8, %s6
  $region1: #{classify_digits_forward.1} parent=0
    #allocation4 [shape = 'u8[24576]{0}', space=vmem, size = 0x6000, scoped, tag = 'input window, operand 1, single buffered']
    #allocation5 [shape = 's32[1]{0}', space=sflag, size = 0x4, scoped, tag = 'scoped memory for classify_digits_forward.1']
    #allocation6 [shape = 'u8[16384]{0}', space=vmem, size = 0x4000, scoped, tag = 'input window, operand 2, single buffered']
    #allocation7 [shape = 's32[1]{0}', space=sflag, size = 0x4, scoped, tag = 'scoped memory for classify_digits_forward.1']
    %10 = vsyncpa [#allocation5], 0
    %11 = vsyncpa [#allocation7], 0
    // Predicated region
    $region2: #{classify_digits_forward.1} parent=1 // pred_check
      _
    $region3: #{classify_digits_forward.1} parent=1 // pred_check_branch
      %13 = sbr.rel (0) target = $region5
    $region4: #{classify_digits_forward.1} parent=1 // pred_region
      _
    $region5: #{classify_digits_forward.1} parent=1 // pred_fallthru
      _
    // Predicated region
    $region6: #{classify_digits_forward.1} parent=1 // pred_check
      _
    $region7: #{classify_digits_forward.1} parent=1 // pred_check_branch
      %15 = sbr.rel (0) target = $region9
    $region8: #{classify_digits_forward.1} parent=1 // pred_region
      %17 = vsyncadd [#allocation5], 0
      %s18 = sshll.u32 %s1, 4
      %s19 = int_to_ptr.hbm [resolvable:$true] %s18
      %s20 = sshll.u32 [#allocation4], 4
      %s21 = int_to_ptr.vmem [resolvable:$true] %s20
      %26 = dma.hbm_to_vmem [thread:$0]  %s19, 768, %s21, [#allocation5], 128, 128, 8
    $region9: #{classify_digits_forward.1} parent=1 // pred_fallthru
      _
    // Predicated region
    $region10: #{classify_digits_forward.1} parent=1 // pred_check
      _
    $region11: #{classify_digits_forward.1} parent=1 // pred_check_branch
      %28 = sbr.rel (0) target = $region13
    $region12: #{classify_digits_forward.1} parent=1 // pred_region
      %30 = vsyncadd [#allocation7], 0
      %s31 = sshll.u32 %s2, 4
      %s32 = int_to_ptr.hbm [resolvable:$true] %s31
      %s33 = sshll.u32 [#allocation6], 4
      %s34 = int_to_ptr.vmem [resolvable:$true] %s33
      %39 = dma.hbm_to_vmem [thread:$0]  %s32, 512, %s34, [#allocation7], 128, 128, 8
    $region13: #{classify_digits_forward.1} parent=1 // pred_fallthru
      _
    // Predicated region
    $region14: #{classify_digits_forward.1} parent=1 // pred_check
      _
    $region15: #{classify_digits_forward.1} parent=1 // pred_check_branch
      %41 = sbr.rel (0) target = $region17
    $region16: #{classify_digits_forward.1} parent=1 // pred_region
      _
    $region17: #{classify_digits_forward.1} parent=1 // pred_fallthru
      _
    // Predicated region
    $region18: #{classify_digits_forward.1} parent=1 // pred_check
      _
    $region19: #{classify_digits_forward.1} parent=1 // pred_check_branch
      %43 = sbr.rel (0) target = $region21
    $region20: #{classify_digits_forward.1} parent=1 // pred_region
      _
    $region21: #{classify_digits_forward.1} parent=1 // pred_fallthru
      _
    // Predicated region
    $region22: #{classify_digits_forward.1} parent=1 // pred_check
      _
    $region23: #{classify_digits_forward.1} parent=1 // pred_check_branch
      %45 = sbr.rel (0) target = $region25
    $region24: #{classify_digits_forward.1} parent=1 // pred_region
      %47 = dma.done [#allocation5], 768
    $region25: #{classify_digits_forward.1} parent=1 // pred_fallthru
      _
    // Predicated region
    $region26: #{classify_digits_forward.1} parent=1 // pred_check
      _
    $region27: #{classify_digits_forward.1} parent=1 // pred_check_branch
      %49 = sbr.rel (0) target = $region29
    $region28: #{classify_digits_forward.1} parent=1 // pred_region
      %51 = dma.done [#allocation7], 512
    $region29: #{classify_digits_forward.1} parent=1 // pred_fallthru
      _
    %v53 = vld [vmem:[%s0] sm:$0xff]
    %v54 = vlaneseq
    %v55 = vand.u32 %v54, 127
    %v56 = vadd.s32 %v55, 128
    %v57 = vadd.s32 %v55, 256
    %v58 = vadd.s32 %v55, 384
    %v59 = vadd.s32 %v55, 512
    %v60 = vadd.s32 %v55, 640
    %v61 = vadd.s32 %v55, 768
    %v62 = vcvt.s32.f32 %v55
    %v63 = vcvt.s32.f32 %v56
    %v64 = vcvt.s32.f32 %v57
    %v65 = vcvt.s32.f32 %v58
    %v66 = vcvt.s32.f32 %v59
    %v67 = vcvt.s32.f32 %v60
    %v68 = vcvt.s32.f32 %v61
    %v69 = vadd.f32 %v62, 0.5
    %v70 = vadd.f32 %v63, 0.5
    %v71 = vadd.f32 %v64, 0.5
    %v72 = vadd.f32 %v65, 0.5
    %v73 = vadd.f32 %v66, 0.5
    %v74 = vadd.f32 %v67, 0.5
    %v75 = vadd.f32 %v68, 0.5
    %v76 = vmul.f32 %v69, 0.016666668
    %v77 = vmul.f32 %v70, 0.016666668
    %v78 = vmul.f32 %v71, 0.016666668
    %v79 = vmul.f32 %v72, 0.016666668
    %v80 = vmul.f32 %v73, 0.016666668
    %v81 = vmul.f32 %v74, 0.016666668
    %v82 = vmul.f32 %v75, 0.016666668
    %v83 = vfloor.f32 %v76
    %v84 = vfloor.f32 %v77
    %v85 = vfloor.f32 %v78
    %v86 = vfloor.f32 %v79
    %v87 = vfloor.f32 %v80
    %v88 = vfloor.f32 %v81
    %v89 = vfloor.f32 %v82
    %v90 = vmul.f32 %v83, 60.0
    %v91 = vmul.f32 %v84, 60.0
    %v92 = vmul.f32 %v85, 60.0
    %v93 = vmul.f32 %v86, 60.0
    %v94 = vmul.f32 %v87, 60.0
    %v95 = vmul.f32 %v88, 60.0
    %v96 = vmul.f32 %v89, 60.0
    %v97 = vsub.f32 %v62, %v90
    %v98 = vsub.f32 %v63, %v91
    %v99 = vsub.f32 %v64, %v92
    %v100 = vsub.f32 %v65, %v93
    %v101 = vsub.f32 %v66, %v94
    %v102 = vsub.f32 %v67, %v95
    %v103 = vsub.f32 %v68, %v96
    %v104 = vadd.f32 %v97, 0.5
    %v105 = vadd.f32 %v98, 0.5
    %v106 = vadd.f32 %v99, 0.5
    %v107 = vadd.f32 %v100, 0.5
    %v108 = vadd.f32 %v101, 0.5
    %v109 = vadd.f32 %v102, 0.5
    %v110 = vadd.f32 %v103, 0.5
    %v111 = vmul.f32 %v104, 0.5
    %v112 = vmul.f32 %v105, 0.5
    %v113 = vmul.f32 %v106, 0.5
    %v114 = vmul.f32 %v107, 0.5
    %v115 = vmul.f32 %v108, 0.5
    %v116 = vmul.f32 %v109, 0.5
    %v117 = vmul.f32 %v110, 0.5
    %v118 = vfloor.f32 %v111
    %v119 = vfloor.f32 %v112
    %v120 = vfloor.f32 %v113
    %v121 = vfloor.f32 %v114
    %v122 = vfloor.f32 %v115
    %v123 = vfloor.f32 %v116
    %v124 = vfloor.f32 %v117
    %v125 = vmul.f32 %v118, 2.0
    %v126 = vmul.f32 %v119, 2.0
    %v127 = vmul.f32 %v120, 2.0
    %v128 = vmul.f32 %v121, 2.0
    %v129 = vmul.f32 %v122, 2.0
    %v130 = vmul.f32 %v123, 2.0
    %v131 = vmul.f32 %v124, 2.0
    %v132 = vsub.f32 %v97, %v125
    %v133 = vsub.f32 %v98, %v126
    %v134 = vsub.f32 %v99, %v127
    %v135 = vsub.f32 %v100, %v128
    %v136 = vsub.f32 %v101, %v129
    %v137 = vsub.f32 %v102, %v130
    %v138 = vsub.f32 %v103, %v131
    %vm139 = vcmp.eq.f32.partialorder %v132, 0.0
    %vm140 = vcmp.eq.f32.partialorder %v133, 0.0
    %vm141 = vcmp.eq.f32.partialorder %v134, 0.0
    %vm142 = vcmp.eq.f32.partialorder %v135, 0.0
    %vm143 = vcmp.eq.f32.partialorder %v136, 0.0
    %vm144 = vcmp.eq.f32.partialorder %v137, 0.0
    %vm145 = vcmp.eq.f32.partialorder %v138, 0.0
    %vm146 = vcmp.le.f32.partialorder %v97, 26.5
    %vm147 = vcmp.le.f32.partialorder %v98, 26.5
    %vm148 = vcmp.le.f32.partialorder %v99, 26.5
    %vm149 = vcmp.le.f32.partialorder %v100, 26.5
    %vm150 = vcmp.le.f32.partialorder %v101, 26.5
    %vm151 = vcmp.le.f32.partialorder %v102, 26.5
    %vm152 = vcmp.le.f32.partialorder %v103, 26.5
    %vm153 = vmand %vm139, %vm146
    %vm154 = vmand %vm140, %vm147
    %vm155 = vmand %vm141, %vm148
    %vm156 = vmand %vm142, %vm149
    %vm157 = vmand %vm143, %vm150
    %vm158 = vmand %vm144, %vm151
    %vm159 = vmand %vm145, %vm152
    %vm160 = vcmp.le.f32.partialorder %v62, 806.5
    %vm161 = vcmp.le.f32.partialorder %v63, 806.5
    %vm162 = vcmp.le.f32.partialorder %v64, 806.5
    %vm163 = vcmp.le.f32.partialorder %v65, 806.5
    %vm164 = vcmp.le.f32.partialorder %v66, 806.5
    %vm165 = vcmp.le.f32.partialorder %v67, 806.5
    %vm166 = vcmp.le.f32.partialorder %v68, 806.5
    %vm167 = vmand %vm153, %vm160
    %vm168 = vmand %vm154, %vm161
    %vm169 = vmand %vm155, %vm162
    %vm170 = vmand %vm156, %vm163
    %vm171 = vmand %vm157, %vm164
    %vm172 = vmand %vm158, %vm165
    %vm173 = vmand %vm159, %vm166
    %v174 = vsel %vm167, 1.0, 0.0
    %v175 = vsel %vm168, 1.0, 0.0
    %v176 = vsel %vm169, 1.0, 0.0
    %v177 = vsel %vm170, 1.0, 0.0
    %v178 = vsel %vm171, 1.0, 0.0
    %v179 = vsel %vm172, 1.0, 0.0
    %v180 = vsel %vm173, 1.0, 0.0
    %v182 = vperm.slane %v53, 0
    %v183 = vperm.slane %v53, 1
    %v184 = vperm.slane %v53, 2
    %v185 = vperm.slane %v53, 3
    %v186 = vperm.slane %v53, 4
    %v187 = vperm.slane %v53, 5
    %v188 = vperm.slane %v53, 6
    %196 = vrot.lane.b32.xlu0 %v182, 31
    %v197 = vpop.permute.xlu0 %196
    %198 = vrot.lane.b32.xlu0 %v183, 31
    %v199 = vpop.permute.xlu0 %198
    %200 = vrot.lane.b32.xlu0 %v184, 31
    %v201 = vpop.permute.xlu0 %200
    %202 = vrot.lane.b32.xlu0 %v185, 31
    %v203 = vpop.permute.xlu0 %202
    %204 = vrot.lane.b32.xlu0 %v186, 31
    %v205 = vpop.permute.xlu0 %204
    %206 = vrot.lane.b32.xlu0 %v187, 31
    %v207 = vpop.permute.xlu0 %206
    %208 = vrot.lane.b32.xlu0 %v188, 31
    %v209 = vpop.permute.xlu0 %208
    %vm210 = vcmp.lt.s32.totalorder %v55, 31
    %v211 = vsel %vm210, %v207, %v209
    %v212 = vsel %vm210, %v205, %v207
    %v213 = vsel %vm210, %v203, %v205
    %v214 = vsel %vm210, %v201, %v203
    %v215 = vsel %vm210, %v199, %v201
    %v216 = vsel %vm210, %v197, %v199
    %v217 = vsel %vm210, %v209, %v197
    %v225 = vrot.slane %v216, 7
    %v226 = vrot.slane %v215, 6
    %v227 = vrot.slane %v214, 5
    %v228 = vrot.slane %v213, 4
    %v229 = vrot.slane %v212, 3
    %v230 = vrot.slane %v211, 2
    %vm231 = vcmask 1040384
    %v232 = vsel %vm231, %v217, %v225
    %vm233 = vcmask 1042434
    %v234 = vsel %vm233, %v226, %v227
    %vm235 = vcmask 1041408
    %v236 = vsel %vm235, %v232, %v234
    %vm237 = vcmask 1044484
    %v238 = vsel %vm237, %v228, %v229
    %vm239 = vcmask 1045508
    %v240 = vsel %vm239, %v238, %v230
    %vm241 = vcmask 1043456
    %v242 = vsel %vm241, %v236, %v240
    %v244 = vlaneseq
    %vm245 = vcmp.ge.s32.totalorder %v244, 0
    %vm246 = vcmp.lt.s32.totalorder %v244, 896
    %vm247 = vmand %vm245, %vm246
    %248 = vst.msk [vmem:[#allocation2] ss:$8 sm:$0xf] %vm247, %v242
    %249 = vst.msk [vmem:[#allocation2] ss:$8 sm:$0x70] %vm247, %v242
    %250 = vrot.lane.b32.xlu0 %v182, 30
    %v251 = vpop.permute.xlu0 %250
    %252 = vrot.lane.b32.xlu0 %v183, 30
    %v253 = vpop.permute.xlu0 %252
    %254 = vrot.lane.b32.xlu0 %v184, 30
    %v255 = vpop.permute.xlu0 %254
    %256 = vrot.lane.b32.xlu0 %v185, 30
    %v257 = vpop.permute.xlu0 %256
    %258 = vrot.lane.b32.xlu0 %v186, 30
    %v259 = vpop.permute.xlu0 %258
    %260 = vrot.lane.b32.xlu0 %v187, 30
    %v261 = vpop.permute.xlu0 %260
    %262 = vrot.lane.b32.xlu0 %v188, 30
    %v263 = vpop.permute.xlu0 %262
    %vm264 = vcmp.lt.s32.totalorder %v55, 30
    %v265 = vsel %vm264, %v261, %v263
    %v266 = vsel %vm264, %v259, %v261
    %v267 = vsel %vm264, %v257, %v259
    %v268 = vsel %vm264, %v255, %v257
    %v269 = vsel %vm264, %v253, %v255
    %v270 = vsel %vm264, %v251, %v253
    %v271 = vsel %vm264, %v263, %v251
    %v279 = vrot.slane %v270, 7
    %v280 = vrot.slane %v269, 6
    %v281 = vrot.slane %v268, 5
    %v282 = vrot.slane %v267, 4
    %v283 = vrot.slane %v266, 3
    %v284 = vrot.slane %v265, 2
    %v285 = vsel %vm231, %v271, %v279
    %v286 = vsel %vm233, %v280, %v281
    %v287 = vsel %vm235, %v285, %v286
    %v288 = vsel %vm237, %v282, %v283
    %v289 = vsel %vm239, %v288, %v284
    %v290 = vsel %vm241, %v287, %v289
    %s292 = scalar_lea.vmem [#allocation2], 1
    %293 = vst.msk [vmem:[%s292] ss:$8 sm:$0xf] %vm247, %v290
    %294 = vst.msk [vmem:[%s292] ss:$8 sm:$0x70] %vm247, %v290
    %295 = vrot.lane.b32.xlu0 %v182, 29
    %v296 = vpop.permute.xlu0 %295
    %297 = vrot.lane.b32.xlu0 %v183, 29
    %v298 = vpop.permute.xlu0 %297
    %299 = vrot.lane.b32.xlu0 %v184, 29
    %v300 = vpop.permute.xlu0 %299
    %301 = vrot.lane.b32.xlu0 %v185, 29
    %v302 = vpop.permute.xlu0 %301
    %303 = vrot.lane.b32.xlu0 %v186, 29
    %v304 = vpop.permute.xlu0 %303
    %305 = vrot.lane.b32.xlu0 %v187, 29
    %v306 = vpop.permute.xlu0 %305
    %307 = vrot.lane.b32.xlu0 %v188, 29
    %v308 = vpop.permute.xlu0 %307
    %vm309 = vcmp.lt.s32.totalorder %v55, 29
    %v310 = vsel %vm309, %v306, %v308
    %v311 = vsel %vm309, %v304, %v306
    %v312 = vsel %vm309, %v302, %v304
    %v313 = vsel %vm309, %v300, %v302
    %v314 = vsel %vm309, %v298, %v300
    %v315 = vsel %vm309, %v296, %v298
    %v316 = vsel %vm309, %v308, %v296
    %v324 = vrot.slane %v315, 7
    %v325 = vrot.slane %v314, 6
    %v326 = vrot.slane %v313, 5
    %v327 = vrot.slane %v312, 4
    %v328 = vrot.slane %v311, 3
    %v329 = vrot.slane %v310, 2
    %v330 = vsel %vm231, %v316, %v324
    %v331 = vsel %vm233, %v325, %v326
    %v332 = vsel %vm235, %v330, %v331
    %v333 = vsel %vm237, %v327, %v328
    %v334 = vsel %vm239, %v333, %v329
    %v335 = vsel %vm241, %v332, %v334
    %s337 = scalar_lea.vmem [#allocation2], 2
    %338 = vst.msk [vmem:[%s337] ss:$8 sm:$0xf] %vm247, %v335
    %339 = vst.msk [vmem:[%s337] ss:$8 sm:$0x70] %vm247, %v335
    %340 = vrot.lane.b32.xlu0 %v182, 1
    %v341 = vpop.permute.xlu0 %340
    %342 = vrot.lane.b32.xlu0 %v183, 1
    %v343 = vpop.permute.xlu0 %342
    %344 = vrot.lane.b32.xlu0 %v184, 1
    %v345 = vpop.permute.xlu0 %344
    %346 = vrot.lane.b32.xlu0 %v185, 1
    %v347 = vpop.permute.xlu0 %346
    %348 = vrot.lane.b32.xlu0 %v186, 1
    %v349 = vpop.permute.xlu0 %348
    %350 = vrot.lane.b32.xlu0 %v187, 1
    %v351 = vpop.permute.xlu0 %350
    %352 = vrot.lane.b32.xlu0 %v188, 1
    %v353 = vpop.permute.xlu0 %352
    %vm354 = vcmp.lt.s32.totalorder %v55, 1
    %v355 = vsel %vm354, %v351, %v353
    %v356 = vsel %vm354, %v349, %v351
    %v357 = vsel %vm354, %v347, %v349
    %v358 = vsel %vm354, %v345, %v347
    %v359 = vsel %vm354, %v343, %v345
    %v360 = vsel %vm354, %v341, %v343
    %v361 = vsel %vm354, %v353, %v341
    %v369 = vrot.slane %v360, 7
    %v370 = vrot.slane %v359, 6
    %v371 = vrot.slane %v358, 5
    %v372 = vrot.slane %v357, 4
    %v373 = vrot.slane %v356, 3
    %v374 = vrot.slane %v355, 2
    %v375 = vsel %vm231, %v361, %v369
    %v376 = vsel %vm233, %v370, %v371
    %v377 = vsel %vm235, %v375, %v376
    %v378 = vsel %vm237, %v372, %v373
    %v379 = vsel %vm239, %v378, %v374
    %v380 = vsel %vm241, %v377, %v379
    %s382 = scalar_lea.vmem [#allocation2], 3
    %383 = vst.msk [vmem:[%s382] ss:$8 sm:$0xf] %vm247, %v380
    %384 = vst.msk [vmem:[%s382] ss:$8 sm:$0x70] %vm247, %v380
    %s385 = scalar_lea.vmem [#allocation2], 4
    %386 = vst.msk [vmem:[%s385] ss:$8 sm:$0xf] %vm247, %v53
    %387 = vst.msk [vmem:[%s385] ss:$8 sm:$0x70] %vm247, %v53
    %388 = vrot.lane.b32.xlu0 %v182, 127
    %v389 = vpop.permute.xlu0 %388
    %390 = vrot.lane.b32.xlu0 %v183, 127
    %v391 = vpop.permute.xlu0 %390
    %392 = vrot.lane.b32.xlu0 %v184, 127
    %v393 = vpop.permute.xlu0 %392
    %394 = vrot.lane.b32.xlu0 %v185, 127
    %v395 = vpop.permute.xlu0 %394
    %396 = vrot.lane.b32.xlu0 %v186, 127
    %v397 = vpop.permute.xlu0 %396
    %398 = vrot.lane.b32.xlu0 %v187, 127
    %v399 = vpop.permute.xlu0 %398
    %400 = vrot.lane.b32.xlu0 %v188, 127
    %v401 = vpop.permute.xlu0 %400
    %vm402 = vcmp.lt.s32.totalorder %v55, 127
    %v403 = vsel %vm402, %v399, %v401
    %v404 = vsel %vm402, %v397, %v399
    %v405 = vsel %vm402, %v395, %v397
    %v406 = vsel %vm402, %v393, %v395
    %v407 = vsel %vm402, %v391, %v393
    %v408 = vsel %vm402, %v389, %v391
    %v409 = vsel %vm402, %v401, %v389
    %v417 = vrot.slane %v407, 7
    %v418 = vrot.slane %v406, 6
    %v419 = vrot.slane %v405, 5
    %v420 = vrot.slane %v404, 4
    %v421 = vrot.slane %v403, 3
    %v422 = vrot.slane %v409, 2
    %v423 = vsel %vm231, %v408, %v417
    %v424 = vsel %vm233, %v418, %v419
    %v425 = vsel %vm235, %v423, %v424
    %v426 = vsel %vm237, %v420, %v421
    %v427 = vsel %vm239, %v426, %v422
    %v428 = vsel %vm241, %v425, %v427
    %s430 = scalar_lea.vmem [#allocation2], 5
    %431 = vst.msk [vmem:[%s430] ss:$8 sm:$0xf] %vm247, %v428
    %432 = vst.msk [vmem:[%s430] ss:$8 sm:$0x70] %vm247, %v428
    %433 = vrot.lane.b32.xlu0 %v182, 99
    %v434 = vpop.permute.xlu0 %433
    %435 = vrot.lane.b32.xlu0 %v183, 99
    %v436 = vpop.permute.xlu0 %435
    %437 = vrot.lane.b32.xlu0 %v184, 99
    %v438 = vpop.permute.xlu0 %437
    %439 = vrot.lane.b32.xlu0 %v185, 99
    %v440 = vpop.permute.xlu0 %439
    %441 = vrot.lane.b32.xlu0 %v186, 99
    %v442 = vpop.permute.xlu0 %441
    %443 = vrot.lane.b32.xlu0 %v187, 99
    %v444 = vpop.permute.xlu0 %443
    %445 = vrot.lane.b32.xlu0 %v188, 99
    %v446 = vpop.permute.xlu0 %445
    %vm447 = vcmp.lt.s32.totalorder %v55, 99
    %v448 = vsel %vm447, %v444, %v446
    %v449 = vsel %vm447, %v442, %v444
    %v450 = vsel %vm447, %v440, %v442
    %v451 = vsel %vm447, %v438, %v440
    %v452 = vsel %vm447, %v436, %v438
    %v453 = vsel %vm447, %v434, %v436
    %v454 = vsel %vm447, %v446, %v434
    %v462 = vrot.slane %v452, 7
    %v463 = vrot.slane %v451, 6
    %v464 = vrot.slane %v450, 5
    %v465 = vrot.slane %v449, 4
    %v466 = vrot.slane %v448, 3
    %v467 = vrot.slane %v454, 2
    %v468 = vsel %vm231, %v453, %v462
    %v469 = vsel %vm233, %v463, %v464
    %v470 = vsel %vm235, %v468, %v469
    %v471 = vsel %vm237, %v465, %v466
    %v472 = vsel %vm239, %v471, %v467
    %v473 = vsel %vm241, %v470, %v472
    %s475 = scalar_lea.vmem [#allocation2], 6
    %476 = vst.msk [vmem:[%s475] ss:$8 sm:$0xf] %vm247, %v473
    %477 = vst.msk [vmem:[%s475] ss:$8 sm:$0x70] %vm247, %v473
    %478 = vrot.lane.b32.xlu0 %v182, 98
    %v479 = vpop.permute.xlu0 %478
    %480 = vrot.lane.b32.xlu0 %v183, 98
    %v481 = vpop.permute.xlu0 %480
    %482 = vrot.lane.b32.xlu0 %v184, 98
    %v483 = vpop.permute.xlu0 %482
    %484 = vrot.lane.b32.xlu0 %v185, 98
    %v485 = vpop.permute.xlu0 %484
    %486 = vrot.lane.b32.xlu0 %v186, 98
    %v487 = vpop.permute.xlu0 %486
    %488 = vrot.lane.b32.xlu0 %v187, 98
    %v489 = vpop.permute.xlu0 %488
    %490 = vrot.lane.b32.xlu0 %v188, 98
    %v491 = vpop.permute.xlu0 %490
    %vm492 = vcmp.lt.s32.totalorder %v55, 98
    %v493 = vsel %vm492, %v489, %v491
    %v494 = vsel %vm492, %v487, %v489
    %v495 = vsel %vm492, %v485, %v487
    %v496 = vsel %vm492, %v483, %v485
    %v497 = vsel %vm492, %v481, %v483
    %v498 = vsel %vm492, %v479, %v481
    %v499 = vsel %vm492, %v491, %v479
    %v507 = vrot.slane %v497, 7
    %v508 = vrot.slane %v496, 6
    %v509 = vrot.slane %v495, 5
    %v510 = vrot.slane %v494, 4
    %v511 = vrot.slane %v493, 3
    %v512 = vrot.slane %v499, 2
    %v513 = vsel %vm231, %v498, %v507
    %v514 = vsel %vm233, %v508, %v509
    %v515 = vsel %vm235, %v513, %v514
    %v516 = vsel %vm237, %v510, %v511
    %v517 = vsel %vm239, %v516, %v512
    %v518 = vsel %vm241, %v515, %v517
    %s520 = scalar_lea.vmem [#allocation2], 7
    %521 = vst.msk [vmem:[%s520] ss:$8 sm:$0xf] %vm247, %v518
    %522 = vst.msk [vmem:[%s520] ss:$8 sm:$0x70] %vm247, %v518
    %523 = vrot.lane.b32.xlu0 %v182, 97
    %v524 = vpop.permute.xlu0 %523
    %525 = vrot.lane.b32.xlu0 %v183, 97
    %v526 = vpop.permute.xlu0 %525
    %527 = vrot.lane.b32.xlu0 %v184, 97
    %v528 = vpop.permute.xlu0 %527
    %529 = vrot.lane.b32.xlu0 %v185, 97
    %v530 = vpop.permute.xlu0 %529
    %531 = vrot.lane.b32.xlu0 %v186, 97
    %v532 = vpop.permute.xlu0 %531
    %533 = vrot.lane.b32.xlu0 %v187, 97
    %v534 = vpop.permute.xlu0 %533
    %535 = vrot.lane.b32.xlu0 %v188, 97
    %v536 = vpop.permute.xlu0 %535
    %vm537 = vcmp.lt.s32.totalorder %v55, 97
    %v538 = vsel %vm537, %v534, %v536
    %v539 = vsel %vm537, %v532, %v534
    %v540 = vsel %vm537, %v530, %v532
    %v541 = vsel %vm537, %v528, %v530
    %v542 = vsel %vm537, %v526, %v528
    %v543 = vsel %vm537, %v524, %v526
    %v544 = vsel %vm537, %v536, %v524
    %v552 = vrot.slane %v542, 7
    %v553 = vrot.slane %v541, 6
    %v554 = vrot.slane %v540, 5
    %v555 = vrot.slane %v539, 4
    %v556 = vrot.slane %v538, 3
    %v557 = vrot.slane %v544, 2
    %v558 = vsel %vm231, %v543, %v552
    %v559 = vsel %vm233, %v553, %v554
    %v560 = vsel %vm235, %v558, %v559
    %v561 = vsel %vm237, %v555, %v556
    %v562 = vsel %vm239, %v561, %v557
    %v563 = vsel %vm241, %v560, %v562
    %s565 = scalar_lea.vmem [#allocation2], 56
    %566 = vst.msk [vmem:[%s565] ss:$8 sm:$0xf] %vm247, %v563
    %567 = vst.msk [vmem:[%s565] ss:$8 sm:$0x70] %vm247, %v563
    %v568 = vld [vmem:[#allocation4] sm:$0xf]
    %v569 = vld [vmem:[#allocation4 + $0x8] sm:$0xf]
    %v570 = vld [vmem:[#allocation2] sm:$0xff]
    %v571 = vld [vmem:[#allocation2 + $0x8] sm:$0xff]
    %v572 = vld [vmem:[#allocation2 + $0x10] sm:$0xff]
    %v573 = vld [vmem:[#allocation2 + $0x18] sm:$0xff]
    %v574 = vld [vmem:[#allocation2 + $0x20] sm:$0xff]
    %v575 = vld [vmem:[#allocation2 + $0x28] sm:$0xff]
    %v576 = vld [vmem:[#allocation2 + $0x30] sm:$0xff]
    %v577 = vld [vmem:[#allocation2 + $0x38] sm:$0x1]
    %v578 = vld [vmem:[#allocation2 + $0x40] sm:$0x1]
    %v579 = vld [vmem:[#allocation2 + $0x48] sm:$0x1]
    %v580 = vld [vmem:[#allocation2 + $0x50] sm:$0x1]
    %v581 = vld [vmem:[#allocation2 + $0x58] sm:$0x1]
    %v582 = vld [vmem:[#allocation2 + $0x60] sm:$0x1]
    %v583 = vld [vmem:[#allocation2 + $0x68] sm:$0x1]
    %v584 = vpack.c.bf16 %v577, %v570
    %v585 = vpack.c.bf16 %v578, %v571
    %v586 = vpack.c.bf16 %v579, %v572
    %v587 = vpack.c.bf16 %v580, %v573
    %v588 = vpack.c.bf16 %v581, %v574
    %v589 = vpack.c.bf16 %v582, %v575
    %v590 = vpack.c.bf16 %v583, %v576
    %v591 = vld [vmem:[#allocation6] sm:$0xff]
    %v592 = vld [vmem:[#allocation6 + $0x8] sm:$0xff]
    %594 = vset.pattern.permute.xlu0 30
    %595 = vperm.xlu0 %594, %v591
    %v596 = vpop.permute.xlu0 %595
    %599 = vset.pattern.permute.xlu0 30
    %600 = vperm.xlu0 %599, %v592
    %v601 = vpop.permute.xlu0 %600
    %v605 = vunpack.c.l.b16 %v568
    %v606 = vunpack.c.l.b16 %v569
    %v607 = vpack.c.b16 %v606, %v605
    %vm608 = vcmask 72704
    %v610 = vsel %vm608, %v607, 0
    %vm612 = vcmask 1044480
    %v613 = vsel %vm241, 4294967295, 65535
    %v614 = vsel %vm612, %v613, 0
    %v616 = vand.u32 %v584, %v614
    %v619 = vand.u32 %v585, %v614
    %v622 = vand.u32 %v586, %v614
    %v625 = vand.u32 %v587, %v614
    %v628 = vand.u32 %v588, %v614
    %v631 = vand.u32 %v589, %v614
    %v634 = vand.u32 %v590, %v614
    %636 = vmatpush.bf16.msra.mxu0 0
    %637 = vmatpush.bf16.msra.mxu0 0
    %638 = vmatpush.bf16.msra.mxu0 0
    %639 = vmatpush.bf16.msra.mxu0 0
    %640 = vmatpush.bf16.msra.mxu0 0
    %641 = vmatpush.bf16.msra.mxu0 0
    %642 = vmatpush.bf16.msra.mxu0 0
    %643 = vmatpush.bf16.msra.mxu0 %v616
    %644 = vmatmul.bf16.gmra.mxu0 %v610
    %v645 = vpop.f32.mrf.mxu0
    %v646 = vadd.f32 %v596, %v645
    %v647 = vpop.f32.mrf.mxu0
    %v648 = vadd.f32 %v601, %v647
    %649 = vdwg.mxu0
    %650 = vmatpush.bf16.msra.mxu0 0
    %651 = vmatpush.bf16.msra.mxu0 0
    %652 = vmatpush.bf16.msra.mxu0 0
    %653 = vmatpush.bf16.msra.mxu0 0
    %654 = vmatpush.bf16.msra.mxu0 0
    %655 = vmatpush.bf16.msra.mxu0 0
    %656 = vmatpush.bf16.msra.mxu0 0
    %657 = vmatpush.bf16.msra.mxu0 %v619
    %658 = vmatmul.bf16.gmra.mxu0 %v610
    %v659 = vpop.f32.mrf.mxu0
    %v660 = vadd.f32 %v596, %v659
    %v661 = vpop.f32.mrf.mxu0
    %v662 = vadd.f32 %v601, %v661
    %663 = vdwg.mxu0
    %664 = vmatpush.bf16.msra.mxu0 0
    %665 = vmatpush.bf16.msra.mxu0 0
    %666 = vmatpush.bf16.msra.mxu0 0
    %667 = vmatpush.bf16.msra.mxu0 0
    %668 = vmatpush.bf16.msra.mxu0 0
    %669 = vmatpush.bf16.msra.mxu0 0
    %670 = vmatpush.bf16.msra.mxu0 0
    %671 = vmatpush.bf16.msra.mxu0 %v622
    %672 = vmatmul.bf16.gmra.mxu0 %v610
    %v673 = vpop.f32.mrf.mxu0
    %v674 = vadd.f32 %v596, %v673
    %v675 = vpop.f32.mrf.mxu0
    %v676 = vadd.f32 %v601, %v675
    %677 = vdwg.mxu0
    %678 = vmatpush.bf16.msra.mxu0 0
    %679 = vmatpush.bf16.msra.mxu0 0
    %680 = vmatpush.bf16.msra.mxu0 0
    %681 = vmatpush.bf16.msra.mxu0 0
    %682 = vmatpush.bf16.msra.mxu0 0
    %683 = vmatpush.bf16.msra.mxu0 0
    %684 = vmatpush.bf16.msra.mxu0 0
    %685 = vmatpush.bf16.msra.mxu0 %v625
    %686 = vmatmul.bf16.gmra.mxu0 %v610
    %v687 = vpop.f32.mrf.mxu0
    %v688 = vadd.f32 %v596, %v687
    %v689 = vpop.f32.mrf.mxu0
    %v690 = vadd.f32 %v601, %v689
    %691 = vdwg.mxu0
    %692 = vmatpush.bf16.msra.mxu0 0
    %693 = vmatpush.bf16.msra.mxu0 0
    %694 = vmatpush.bf16.msra.mxu0 0
    %695 = vmatpush.bf16.msra.mxu0 0
    %696 = vmatpush.bf16.msra.mxu0 0
    %697 = vmatpush.bf16.msra.mxu0 0
    %698 = vmatpush.bf16.msra.mxu0 0
    %699 = vmatpush.bf16.msra.mxu0 %v628
    %700 = vmatmul.bf16.gmra.mxu0 %v610
    %v701 = vpop.f32.mrf.mxu0
    %v702 = vadd.f32 %v596, %v701
    %v703 = vpop.f32.mrf.mxu0
    %v704 = vadd.f32 %v601, %v703
    %705 = vdwg.mxu0
    %706 = vmatpush.bf16.msra.mxu0 0
    %707 = vmatpush.bf16.msra.mxu0 0
    %708 = vmatpush.bf16.msra.mxu0 0
    %709 = vmatpush.bf16.msra.mxu0 0
    %710 = vmatpush.bf16.msra.mxu0 0
    %711 = vmatpush.bf16.msra.mxu0 0
    %712 = vmatpush.bf16.msra.mxu0 0
    %713 = vmatpush.bf16.msra.mxu0 %v631
    %714 = vmatmul.bf16.gmra.mxu0 %v610
    %v715 = vpop.f32.mrf.mxu0
    %v716 = vadd.f32 %v596, %v715
    %v717 = vpop.f32.mrf.mxu0
    %v718 = vadd.f32 %v601, %v717
    %719 = vdwg.mxu0
    %720 = vmatpush.bf16.msra.mxu0 0
    %721 = vmatpush.bf16.msra.mxu0 0
    %722 = vmatpush.bf16.msra.mxu0 0
    %723 = vmatpush.bf16.msra.mxu0 0
    %724 = vmatpush.bf16.msra.mxu0 0
    %725 = vmatpush.bf16.msra.mxu0 0
    %726 = vmatpush.bf16.msra.mxu0 0
    %727 = vmatpush.bf16.msra.mxu0 %v634
    %728 = vmatmul.bf16.gmra.mxu0 %v610
    %v729 = vpop.f32.mrf.mxu0
    %v730 = vadd.f32 %v596, %v729
    %v731 = vpop.f32.mrf.mxu0
    %v732 = vadd.f32 %v601, %v731
    %733 = vdwg.mxu0
    %v734 = vmax.f32 %v646, 0.0
    %v735 = vmax.f32 %v660, 0.0
    %v736 = vmax.f32 %v674, 0.0
    %v737 = vmax.f32 %v688, 0.0
    %v738 = vmax.f32 %v702, 0.0
    %v739 = vmax.f32 %v716, 0.0
    %v740 = vmax.f32 %v730, 0.0
    %v741 = vmax.f32 %v648, 0.0
    %v742 = vmax.f32 %v662, 0.0
    %v743 = vmax.f32 %v676, 0.0
    %v744 = vmax.f32 %v690, 0.0
    %v745 = vmax.f32 %v704, 0.0
    %v746 = vmax.f32 %v718, 0.0
    %v747 = vmax.f32 %v732, 0.0
    %748 = vrot.lane.b32.xlu0 %v734, 127
    %v749 = vpop.permute.xlu0 %748
    %750 = vrot.lane.b32.xlu0 %v741, 127
    %v751 = vpop.permute.xlu0 %750
    %752 = vrot.lane.b32.xlu0 %v735, 127
    %v753 = vpop.permute.xlu0 %752
    %754 = vrot.lane.b32.xlu0 %v742, 127
    %v755 = vpop.permute.xlu0 %754
    %756 = vrot.lane.b32.xlu0 %v736, 127
    %v757 = vpop.permute.xlu0 %756
    %758 = vrot.lane.b32.xlu0 %v743, 127
    %v759 = vpop.permute.xlu0 %758
    %760 = vrot.lane.b32.xlu0 %v737, 127
    %v761 = vpop.permute.xlu0 %760
    %762 = vrot.lane.b32.xlu0 %v744, 127
    %v763 = vpop.permute.xlu0 %762
    %764 = vrot.lane.b32.xlu0 %v738, 127
    %v765 = vpop.permute.xlu0 %764
    %766 = vrot.lane.b32.xlu0 %v745, 127
    %v767 = vpop.permute.xlu0 %766
    %768 = vrot.lane.b32.xlu0 %v739, 127
    %v769 = vpop.permute.xlu0 %768
    %770 = vrot.lane.b32.xlu0 %v746, 127
    %v771 = vpop.permute.xlu0 %770
    %772 = vrot.lane.b32.xlu0 %v740, 127
    %v773 = vpop.permute.xlu0 %772
    %774 = vrot.lane.b32.xlu0 %v747, 127
    %v775 = vpop.permute.xlu0 %774
    %v776 = vsel %vm402, %v769, %v773
    %v777 = vsel %vm402, %v771, %v775
    %v778 = vsel %vm402, %v765, %v769
    %v779 = vsel %vm402, %v767, %v771
    %v780 = vsel %vm402, %v761, %v765
    %v781 = vsel %vm402, %v763, %v767
    %v782 = vsel %vm402, %v757, %v761
    %v783 = vsel %vm402, %v759, %v763
    %v784 = vsel %vm402, %v753, %v757
    %v785 = vsel %vm402, %v755, %v759
    %v786 = vsel %vm402, %v749, %v753
    %v787 = vsel %vm402, %v751, %v755
    %v788 = vsel %vm402, %v773, %v749
    %v789 = vsel %vm402, %v775, %v751
    %v790 = vmax.f32 %v734, %v786
    %v791 = vmax.f32 %v735, %v784
    %v792 = vmax.f32 %v736, %v782
    %v793 = vmax.f32 %v737, %v780
    %v794 = vmax.f32 %v738, %v778
    %v795 = vmax.f32 %v739, %v776
    %v796 = vmax.f32 %v740, %v788
    %v797 = vmax.f32 %v741, %v787
    %v798 = vmax.f32 %v742, %v785
    %v799 = vmax.f32 %v743, %v783
    %v800 = vmax.f32 %v744, %v781
    %v801 = vmax.f32 %v745, %v779
    %v802 = vmax.f32 %v746, %v777
    %v803 = vmax.f32 %v747, %v789
    %804 = vrot.lane.b32.xlu0 %v790, 98
    %v805 = vpop.permute.xlu0 %804
    %806 = vrot.lane.b32.xlu0 %v797, 98
    %v807 = vpop.permute.xlu0 %806
    %808 = vrot.lane.b32.xlu0 %v791, 98
    %v809 = vpop.permute.xlu0 %808
    %810 = vrot.lane.b32.xlu0 %v798, 98
    %v811 = vpop.permute.xlu0 %810
    %812 = vrot.lane.b32.xlu0 %v792, 98
    %v813 = vpop.permute.xlu0 %812
    %814 = vrot.lane.b32.xlu0 %v799, 98
    %v815 = vpop.permute.xlu0 %814
    %816 = vrot.lane.b32.xlu0 %v793, 98
    %v817 = vpop.permute.xlu0 %816
    %818 = vrot.lane.b32.xlu0 %v800, 98
    %v819 = vpop.permute.xlu0 %818
    %820 = vrot.lane.b32.xlu0 %v794, 98
    %v821 = vpop.permute.xlu0 %820
    %822 = vrot.lane.b32.xlu0 %v801, 98
    %v823 = vpop.permute.xlu0 %822
    %824 = vrot.lane.b32.xlu0 %v795, 98
    %v825 = vpop.permute.xlu0 %824
    %826 = vrot.lane.b32.xlu0 %v802, 98
    %v827 = vpop.permute.xlu0 %826
    %828 = vrot.lane.b32.xlu0 %v796, 98
    %v829 = vpop.permute.xlu0 %828
    %830 = vrot.lane.b32.xlu0 %v803, 98
    %v831 = vpop.permute.xlu0 %830
    %v832 = vsel %vm492, %v825, %v829
    %v833 = vsel %vm492, %v827, %v831
    %v834 = vsel %vm492, %v821, %v825
    %v835 = vsel %vm492, %v823, %v827
    %v836 = vsel %vm492, %v817, %v821
    %v837 = vsel %vm492, %v819, %v823
    %v838 = vsel %vm492, %v813, %v817
    %v839 = vsel %vm492, %v815, %v819
    %v840 = vsel %vm492, %v809, %v813
    %v841 = vsel %vm492, %v811, %v815
    %v842 = vsel %vm492, %v805, %v809
    %v843 = vsel %vm492, %v807, %v811
    %v844 = vsel %vm492, %v829, %v805
    %v845 = vsel %vm492, %v831, %v807
    %v846 = vmax.f32 %v790, %v842
    %v847 = vmax.f32 %v791, %v840
    %v848 = vmax.f32 %v792, %v838
    %v849 = vmax.f32 %v793, %v836
    %v850 = vmax.f32 %v794, %v834
    %v851 = vmax.f32 %v795, %v832
    %v852 = vmax.f32 %v796, %v844
    %v853 = vmax.f32 %v797, %v843
    %v854 = vmax.f32 %v798, %v841
    %v855 = vmax.f32 %v799, %v839
    %v856 = vmax.f32 %v800, %v837
    %v857 = vmax.f32 %v801, %v835
    %v858 = vmax.f32 %v802, %v833
    %v859 = vmax.f32 %v803, %v845
    %v860 = vmul.f32 %v846, %v174
    %v861 = vmul.f32 %v847, %v175
    %v862 = vmul.f32 %v848, %v176
    %v863 = vmul.f32 %v849, %v177
    %v864 = vmul.f32 %v850, %v178
    %v865 = vmul.f32 %v851, %v179
    %v866 = vmul.f32 %v852, %v180
    %v867 = vmul.f32 %v853, %v174
    %v868 = vmul.f32 %v854, %v175
    %v869 = vmul.f32 %v855, %v176
    %v870 = vmul.f32 %v856, %v177
    %v871 = vmul.f32 %v857, %v178
    %v872 = vmul.f32 %v858, %v179
    %v873 = vmul.f32 %v859, %v180
    %874 = vrot.lane.b32.xlu0 %v860, 62
    %v875 = vpop.permute.xlu0 %874
    %876 = vrot.lane.b32.xlu0 %v867, 62
    %v877 = vpop.permute.xlu0 %876
    %878 = vrot.lane.b32.xlu0 %v861, 62
    %v879 = vpop.permute.xlu0 %878
    %880 = vrot.lane.b32.xlu0 %v868, 62
    %v881 = vpop.permute.xlu0 %880
    %882 = vrot.lane.b32.xlu0 %v862, 62
    %v883 = vpop.permute.xlu0 %882
    %884 = vrot.lane.b32.xlu0 %v869, 62
    %v885 = vpop.permute.xlu0 %884
    %886 = vrot.lane.b32.xlu0 %v863, 62
    %v887 = vpop.permute.xlu0 %886
    %888 = vrot.lane.b32.xlu0 %v870, 62
    %v889 = vpop.permute.xlu0 %888
    %890 = vrot.lane.b32.xlu0 %v864, 62
    %v891 = vpop.permute.xlu0 %890
    %892 = vrot.lane.b32.xlu0 %v871, 62
    %v893 = vpop.permute.xlu0 %892
    %894 = vrot.lane.b32.xlu0 %v865, 62
    %v895 = vpop.permute.xlu0 %894
    %896 = vrot.lane.b32.xlu0 %v872, 62
    %v897 = vpop.permute.xlu0 %896
    %898 = vrot.lane.b32.xlu0 %v866, 62
    %v899 = vpop.permute.xlu0 %898
    %900 = vrot.lane.b32.xlu0 %v873, 62
    %v901 = vpop.permute.xlu0 %900
    %vm902 = vcmp.lt.s32.totalorder %v55, 62
    %v903 = vsel %vm902, %v895, %v899
    %v904 = vsel %vm902, %v897, %v901
    %v905 = vsel %vm902, %v891, %v895
    %v906 = vsel %vm902, %v893, %v897
    %v907 = vsel %vm902, %v887, %v891
    %v908 = vsel %vm902, %v889, %v893
    %v909 = vsel %vm902, %v883, %v887
    %v910 = vsel %vm902, %v885, %v889
    %v911 = vsel %vm902, %v879, %v883
    %v912 = vsel %vm902, %v881, %v885
    %v913 = vsel %vm902, %v875, %v879
    %v914 = vsel %vm902, %v877, %v881
    %v915 = vsel %vm902, %v899, %v875
    %v916 = vsel %vm902, %v901, %v877
    %v917 = vpack.c.bf16 %v913, %v915
    %v918 = vpack.c.bf16 %v909, %v911
    %v919 = vpack.c.bf16 %v905, %v907
    %v920 = vpack.c.bf16 %v903, %v903
    %v921 = vpack.c.bf16 %v914, %v916
    %v922 = vpack.c.bf16 %v910, %v912
    %v923 = vpack.c.bf16 %v906, %v908
    %v924 = vpack.c.bf16 %v904, %v904
    %925 = vst [vmem:[#allocation3] sm:$0xff] %v917
    %926 = vst [vmem:[#allocation3 + $0x8] sm:$0xff] %v918
    %927 = vst [vmem:[#allocation3 + $0x10] sm:$0xff] %v919
    %928 = vst [vmem:[#allocation3 + $0x18] sm:$0xf] %v920
    %929 = vst [vmem:[#allocation3 + $0x1c] sm:$0xff] %v921
    %930 = vst [vmem:[#allocation3 + $0x24] sm:$0xff] %v922
    %931 = vst [vmem:[#allocation3 + $0x2c] sm:$0xff] %v923
    %932 = vst [vmem:[#allocation3 + $0x34] sm:$0xf] %v924
    %933 = vrot.lane.b32.xlu0 %v860, 60
    %v934 = vpop.permute.xlu0 %933
    %935 = vrot.lane.b32.xlu0 %v867, 60
    %v936 = vpop.permute.xlu0 %935
    %937 = vrot.lane.b32.xlu0 %v861, 60
    %v938 = vpop.permute.xlu0 %937
    %939 = vrot.lane.b32.xlu0 %v868, 60
    %v940 = vpop.permute.xlu0 %939
    %941 = vrot.lane.b32.xlu0 %v862, 60
    %v942 = vpop.permute.xlu0 %941
    %943 = vrot.lane.b32.xlu0 %v869, 60
    %v944 = vpop.permute.xlu0 %943
    %945 = vrot.lane.b32.xlu0 %v863, 60
    %v946 = vpop.permute.xlu0 %945
    %947 = vrot.lane.b32.xlu0 %v870, 60
    %v948 = vpop.permute.xlu0 %947
    %949 = vrot.lane.b32.xlu0 %v864, 60
    %v950 = vpop.permute.xlu0 %949
    %951 = vrot.lane.b32.xlu0 %v871, 60
    %v952 = vpop.permute.xlu0 %951
    %953 = vrot.lane.b32.xlu0 %v865, 60
    %v954 = vpop.permute.xlu0 %953
    %955 = vrot.lane.b32.xlu0 %v872, 60
    %v956 = vpop.permute.xlu0 %955
    %957 = vrot.lane.b32.xlu0 %v866, 60
    %v958 = vpop.permute.xlu0 %957
    %959 = vrot.lane.b32.xlu0 %v873, 60
    %v960 = vpop.permute.xlu0 %959
    %vm961 = vcmp.lt.s32.totalorder %v55, 60
    %v962 = vsel %vm961, %v954, %v958
    %v963 = vsel %vm961, %v956, %v960
    %v964 = vsel %vm961, %v950, %v954
    %v965 = vsel %vm961, %v952, %v956
    %v966 = vsel %vm961, %v946, %v950
    %v967 = vsel %vm961, %v948, %v952
    %v968 = vsel %vm961, %v942, %v946
    %v969 = vsel %vm961, %v944, %v948
    %v970 = vsel %vm961, %v938, %v942
    %v971 = vsel %vm961, %v940, %v944
    %v972 = vsel %vm961, %v934, %v938
    %v973 = vsel %vm961, %v936, %v940
    %v974 = vsel %vm961, %v958, %v934
    %v975 = vsel %vm961, %v960, %v936
    %v976 = vpack.c.bf16 %v972, %v974
    %v977 = vpack.c.bf16 %v968, %v970
    %v978 = vpack.c.bf16 %v964, %v966
    %v979 = vpack.c.bf16 %v962, %v962
    %v980 = vpack.c.bf16 %v973, %v975
    %v981 = vpack.c.bf16 %v969, %v971
    %v982 = vpack.c.bf16 %v965, %v967
    %v983 = vpack.c.bf16 %v963, %v963
    %984 = vst [vmem:[#allocation3 + $0x38] sm:$0xff] %v976
    %985 = vst [vmem:[#allocation3 + $0x40] sm:$0xff] %v977
    %986 = vst [vmem:[#allocation3 + $0x48] sm:$0xff] %v978
    %987 = vst [vmem:[#allocation3 + $0x50] sm:$0xf] %v979
    %988 = vst [vmem:[#allocation3 + $0x54] sm:$0xff] %v980
    %989 = vst [vmem:[#allocation3 + $0x5c] sm:$0xff] %v981
    %990 = vst [vmem:[#allocation3 + $0x64] sm:$0xff] %v982
    %991 = vst [vmem:[#allocation3 + $0x6c] sm:$0xf] %v983
    %992 = vrot.lane.b32.xlu0 %v860, 58
    %v993 = vpop.permute.xlu0 %992
    %994 = vrot.lane.b32.xlu0 %v867, 58
    %v995 = vpop.permute.xlu0 %994
    %996 = vrot.lane.b32.xlu0 %v861, 58
    %v997 = vpop.permute.xlu0 %996
    %998 = vrot.lane.b32.xlu0 %v868, 58
    %v999 = vpop.permute.xlu0 %998
    %1000 = vrot.lane.b32.xlu0 %v862, 58
    %v1001 = vpop.permute.xlu0 %1000
    %1002 = vrot.lane.b32.xlu0 %v869, 58
    %v1003 = vpop.permute.xlu0 %1002
    %1004 = vrot.lane.b32.xlu0 %v863, 58
    %v1005 = vpop.permute.xlu0 %1004
    %1006 = vrot.lane.b32.xlu0 %v870, 58
    %v1007 = vpop.permute.xlu0 %1006
    %1008 = vrot.lane.b32.xlu0 %v864, 58
    %v1009 = vpop.permute.xlu0 %1008
    %1010 = vrot.lane.b32.xlu0 %v871, 58
    %v1011 = vpop.permute.xlu0 %1010
    %1012 = vrot.lane.b32.xlu0 %v865, 58
    %v1013 = vpop.permute.xlu0 %1012
    %1014 = vrot.lane.b32.xlu0 %v872, 58
    %v1015 = vpop.permute.xlu0 %1014
    %1016 = vrot.lane.b32.xlu0 %v866, 58
    %v1017 = vpop.permute.xlu0 %1016
    %1018 = vrot.lane.b32.xlu0 %v873, 58
    %v1019 = vpop.permute.xlu0 %1018
    %vm1020 = vcmp.lt.s32.totalorder %v55, 58
    %v1021 = vsel %vm1020, %v1013, %v1017
    %v1022 = vsel %vm1020, %v1015, %v1019
    %v1023 = vsel %vm1020, %v1009, %v1013
    %v1024 = vsel %vm1020, %v1011, %v1015
    %v1025 = vsel %vm1020, %v1005, %v1009
    %v1026 = vsel %vm1020, %v1007, %v1011
    %v1027 = vsel %vm1020, %v1001, %v1005
    %v1028 = vsel %vm1020, %v1003, %v1007
    %v1029 = vsel %vm1020, %v997, %v1001
    %v1030 = vsel %vm1020, %v999, %v1003
    %v1031 = vsel %vm1020, %v993, %v997
    %v1032 = vsel %vm1020, %v995, %v999
    %v1033 = vsel %vm1020, %v1017, %v993
    %v1034 = vsel %vm1020, %v1019, %v995
    %v1035 = vpack.c.bf16 %v1031, %v1033
    %v1036 = vpack.c.bf16 %v1027, %v1029
    %v1037 = vpack.c.bf16 %v1023, %v1025
    %v1038 = vpack.c.bf16 %v1021, %v1021
    %v1039 = vpack.c.bf16 %v1032, %v1034
    %v1040 = vpack.c.bf16 %v1028, %v1030
    %v1041 = vpack.c.bf16 %v1024, %v1026
    %v1042 = vpack.c.bf16 %v1022, %v1022
    %1043 = vst [vmem:[#allocation3 + $0x70] sm:$0xff] %v1035
    %1044 = vst [vmem:[#allocation3 + $0x78] sm:$0xff] %v1036
    %1045 = vst [vmem:[#allocation3 + $0x80] sm:$0xff] %v1037
    %1046 = vst [vmem:[#allocation3 + $0x88] sm:$0xf] %v1038
    %1047 = vst [vmem:[#allocation3 + $0x8c] sm:$0xff] %v1039
    %1048 = vst [vmem:[#allocation3 + $0x94] sm:$0xff] %v1040
    %1049 = vst [vmem:[#allocation3 + $0x9c] sm:$0xff] %v1041
    %1050 = vst [vmem:[#allocation3 + $0xa4] sm:$0xf] %v1042
    %1051 = vrot.lane.b32.xlu0 %v860, 2
    %v1052 = vpop.permute.xlu0 %1051
    %1053 = vrot.lane.b32.xlu0 %v867, 2
    %v1054 = vpop.permute.xlu0 %1053
    %1055 = vrot.lane.b32.xlu0 %v861, 2
    %v1056 = vpop.permute.xlu0 %1055
    %1057 = vrot.lane.b32.xlu0 %v868, 2
    %v1058 = vpop.permute.xlu0 %1057
    %1059 = vrot.lane.b32.xlu0 %v862, 2
    %v1060 = vpop.permute.xlu0 %1059
    %1061 = vrot.lane.b32.xlu0 %v869, 2
    %v1062 = vpop.permute.xlu0 %1061
    %1063 = vrot.lane.b32.xlu0 %v863, 2
    %v1064 = vpop.permute.xlu0 %1063
    %1065 = vrot.lane.b32.xlu0 %v870, 2
    %v1066 = vpop.permute.xlu0 %1065
    %1067 = vrot.lane.b32.xlu0 %v864, 2
    %v1068 = vpop.permute.xlu0 %1067
    %1069 = vrot.lane.b32.xlu0 %v871, 2
    %v1070 = vpop.permute.xlu0 %1069
    %1071 = vrot.lane.b32.xlu0 %v865, 2
    %v1072 = vpop.permute.xlu0 %1071
    %1073 = vrot.lane.b32.xlu0 %v872, 2
    %v1074 = vpop.permute.xlu0 %1073
    %1075 = vrot.lane.b32.xlu0 %v866, 2
    %v1076 = vpop.permute.xlu0 %1075
    %1077 = vrot.lane.b32.xlu0 %v873, 2
    %v1078 = vpop.permute.xlu0 %1077
    %vm1079 = vcmp.lt.s32.totalorder %v55, 2
    %v1080 = vsel %vm1079, %v1072, %v1076
    %v1081 = vsel %vm1079, %v1074, %v1078
    %v1082 = vsel %vm1079, %v1068, %v1072
    %v1083 = vsel %vm1079, %v1070, %v1074
    %v1084 = vsel %vm1079, %v1064, %v1068
    %v1085 = vsel %vm1079, %v1066, %v1070
    %v1086 = vsel %vm1079, %v1060, %v1064
    %v1087 = vsel %vm1079, %v1062, %v1066
    %v1088 = vsel %vm1079, %v1056, %v1060
    %v1089 = vsel %vm1079, %v1058, %v1062
    %v1090 = vsel %vm1079, %v1052, %v1056
    %v1091 = vsel %vm1079, %v1054, %v1058
    %v1092 = vsel %vm1079, %v1076, %v1052
    %v1093 = vsel %vm1079, %v1078, %v1054
    %v1094 = vpack.c.bf16 %v1090, %v1092
    %v1095 = vpack.c.bf16 %v1086, %v1088
    %v1096 = vpack.c.bf16 %v1082, %v1084
    %v1097 = vpack.c.bf16 %v1080, %v1080
    %v1098 = vpack.c.bf16 %v1091, %v1093
    %v1099 = vpack.c.bf16 %v1087, %v1089
    %v1100 = vpack.c.bf16 %v1083, %v1085
    %v1101 = vpack.c.bf16 %v1081, %v1081
    %1102 = vst [vmem:[#allocation3 + $0xa8] sm:$0xff] %v1094
    %1103 = vst [vmem:[#allocation3 + $0xb0] sm:$0xff] %v1095
    %1104 = vst [vmem:[#allocation3 + $0xb8] sm:$0xff] %v1096
    %1105 = vst [vmem:[#allocation3 + $0xc0] sm:$0xf] %v1097
    %1106 = vst [vmem:[#allocation3 + $0xc4] sm:$0xff] %v1098
    %1107 = vst [vmem:[#allocation3 + $0xcc] sm:$0xff] %v1099
    %1108 = vst [vmem:[#allocation3 + $0xd4] sm:$0xff] %v1100
    %1109 = vst [vmem:[#allocation3 + $0xdc] sm:$0xf] %v1101
    %v1110 = vpack.c.bf16 %v861, %v860
    %v1111 = vpack.c.bf16 %v863, %v862
    %v1112 = vpack.c.bf16 %v865, %v864
    %v1113 = vpack.c.bf16 %v866, %v866
    %v1114 = vpack.c.bf16 %v868, %v867
    %v1115 = vpack.c.bf16 %v870, %v869
    %v1116 = vpack.c.bf16 %v872, %v871
    %v1117 = vpack.c.bf16 %v873, %v873
    %1118 = vst [vmem:[#allocation3 + $0xe0] sm:$0xff] %v1110
    %1119 = vst [vmem:[#allocation3 + $0xe8] sm:$0xff] %v1111
    %1120 = vst [vmem:[#allocation3 + $0xf0] sm:$0xff] %v1112
    %1121 = vst [vmem:[#allocation3 + $0xf8] sm:$0xf] %v1113
    %1122 = vst [vmem:[#allocation3 + $0xfc] sm:$0xff] %v1114
    %1123 = vst [vmem:[#allocation3 + $0x104] sm:$0xff] %v1115
    %1124 = vst [vmem:[#allocation3 + $0x10c] sm:$0xff] %v1116
    %1125 = vst [vmem:[#allocation3 + $0x114] sm:$0xf] %v1117
    %1126 = vrot.lane.b32.xlu0 %v860, 126
    %v1127 = vpop.permute.xlu0 %1126
    %1128 = vrot.lane.b32.xlu0 %v867, 126
    %v1129 = vpop.permute.xlu0 %1128
    %1130 = vrot.lane.b32.xlu0 %v861, 126
    %v1131 = vpop.permute.xlu0 %1130
    %1132 = vrot.lane.b32.xlu0 %v868, 126
    %v1133 = vpop.permute.xlu0 %1132
    %1134 = vrot.lane.b32.xlu0 %v862, 126
    %v1135 = vpop.permute.xlu0 %1134
    %1136 = vrot.lane.b32.xlu0 %v869, 126
    %v1137 = vpop.permute.xlu0 %1136
    %1138 = vrot.lane.b32.xlu0 %v863, 126
    %v1139 = vpop.permute.xlu0 %1138
    %1140 = vrot.lane.b32.xlu0 %v870, 126
    %v1141 = vpop.permute.xlu0 %1140
    %1142 = vrot.lane.b32.xlu0 %v864, 126
    %v1143 = vpop.permute.xlu0 %1142
    %1144 = vrot.lane.b32.xlu0 %v871, 126
    %v1145 = vpop.permute.xlu0 %1144
    %1146 = vrot.lane.b32.xlu0 %v865, 126
    %v1147 = vpop.permute.xlu0 %1146
    %1148 = vrot.lane.b32.xlu0 %v872, 126
    %v1149 = vpop.permute.xlu0 %1148
    %1150 = vrot.lane.b32.xlu0 %v866, 126
    %v1151 = vpop.permute.xlu0 %1150
    %1152 = vrot.lane.b32.xlu0 %v873, 126
    %v1153 = vpop.permute.xlu0 %1152
    %vm1154 = vcmp.lt.s32.totalorder %v55, 126
    %v1155 = vsel %vm1154, %v1147, %v1151
    %v1156 = vsel %vm1154, %v1149, %v1153
    %v1157 = vsel %vm1154, %v1143, %v1147
    %v1158 = vsel %vm1154, %v1145, %v1149
    %v1159 = vsel %vm1154, %v1139, %v1143
    %v1160 = vsel %vm1154, %v1141, %v1145
    %v1161 = vsel %vm1154, %v1135, %v1139
    %v1162 = vsel %vm1154, %v1137, %v1141
    %v1163 = vsel %vm1154, %v1131, %v1135
    %v1164 = vsel %vm1154, %v1133, %v1137
    %v1165 = vsel %vm1154, %v1127, %v1131
    %v1166 = vsel %vm1154, %v1129, %v1133
    %v1167 = vsel %vm1154, %v1151, %v1127
    %v1168 = vsel %vm1154, %v1153, %v1129
    %v1169 = vpack.c.bf16 %v1163, %v1165
    %v1170 = vpack.c.bf16 %v1159, %v1161
    %v1171 = vpack.c.bf16 %v1155, %v1157
    %v1172 = vpack.c.bf16 %v1167, %v1167
    %v1173 = vpack.c.bf16 %v1164, %v1166
    %v1174 = vpack.c.bf16 %v1160, %v1162
    %v1175 = vpack.c.bf16 %v1156, %v1158
    %v1176 = vpack.c.bf16 %v1168, %v1168
    %1177 = vst [vmem:[#allocation3 + $0x118] sm:$0xff] %v1169
    %1178 = vst [vmem:[#allocation3 + $0x120] sm:$0xff] %v1170
    %1179 = vst [vmem:[#allocation3 + $0x128] sm:$0xff] %v1171
    %1180 = vst [vmem:[#allocation3 + $0x130] sm:$0xf] %v1172
    %1181 = vst [vmem:[#allocation3 + $0x134] sm:$0xff] %v1173
    %1182 = vst [vmem:[#allocation3 + $0x13c] sm:$0xff] %v1174
    %1183 = vst [vmem:[#allocation3 + $0x144] sm:$0xff] %v1175
    %1184 = vst [vmem:[#allocation3 + $0x14c] sm:$0xf] %v1176
    %1185 = vrot.lane.b32.xlu0 %v860, 70
    %v1186 = vpop.permute.xlu0 %1185
    %1187 = vrot.lane.b32.xlu0 %v867, 70
    %v1188 = vpop.permute.xlu0 %1187
    %1189 = vrot.lane.b32.xlu0 %v861, 70
    %v1190 = vpop.permute.xlu0 %1189
    %1191 = vrot.lane.b32.xlu0 %v868, 70
    %v1192 = vpop.permute.xlu0 %1191
    %1193 = vrot.lane.b32.xlu0 %v862, 70
    %v1194 = vpop.permute.xlu0 %1193
    %1195 = vrot.lane.b32.xlu0 %v869, 70
    %v1196 = vpop.permute.xlu0 %1195
    %1197 = vrot.lane.b32.xlu0 %v863, 70
    %v1198 = vpop.permute.xlu0 %1197
    %1199 = vrot.lane.b32.xlu0 %v870, 70
    %v1200 = vpop.permute.xlu0 %1199
    %1201 = vrot.lane.b32.xlu0 %v864, 70
    %v1202 = vpop.permute.xlu0 %1201
    %1203 = vrot.lane.b32.xlu0 %v871, 70
    %v1204 = vpop.permute.xlu0 %1203
    %1205 = vrot.lane.b32.xlu0 %v865, 70
    %v1206 = vpop.permute.xlu0 %1205
    %1207 = vrot.lane.b32.xlu0 %v872, 70
    %v1208 = vpop.permute.xlu0 %1207
    %1209 = vrot.lane.b32.xlu0 %v866, 70
    %v1210 = vpop.permute.xlu0 %1209
    %1211 = vrot.lane.b32.xlu0 %v873, 70
    %v1212 = vpop.permute.xlu0 %1211
    %vm1213 = vcmp.lt.s32.totalorder %v55, 70
    %v1214 = vsel %vm1213, %v1206, %v1210
    %v1215 = vsel %vm1213, %v1208, %v1212
    %v1216 = vsel %vm1213, %v1202, %v1206
    %v1217 = vsel %vm1213, %v1204, %v1208
    %v1218 = vsel %vm1213, %v1198, %v1202
    %v1219 = vsel %vm1213, %v1200, %v1204
    %v1220 = vsel %vm1213, %v1194, %v1198
    %v1221 = vsel %vm1213, %v1196, %v1200
    %v1222 = vsel %vm1213, %v1190, %v1194
    %v1223 = vsel %vm1213, %v1192, %v1196
    %v1224 = vsel %vm1213, %v1186, %v1190
    %v1225 = vsel %vm1213, %v1188, %v1192
    %v1226 = vsel %vm1213, %v1210, %v1186
    %v1227 = vsel %vm1213, %v1212, %v1188
    %v1228 = vpack.c.bf16 %v1222, %v1224
    %v1229 = vpack.c.bf16 %v1218, %v1220
    %v1230 = vpack.c.bf16 %v1214, %v1216
    %v1231 = vpack.c.bf16 %v1226, %v1226
    %v1232 = vpack.c.bf16 %v1223, %v1225
    %v1233 = vpack.c.bf16 %v1219, %v1221
    %v1234 = vpack.c.bf16 %v1215, %v1217
    %v1235 = vpack.c.bf16 %v1227, %v1227
    %1236 = vst [vmem:[#allocation3 + $0x150] sm:$0xff] %v1228
    %1237 = vst [vmem:[#allocation3 + $0x158] sm:$0xff] %v1229
    %1238 = vst [vmem:[#allocation3 + $0x160] sm:$0xff] %v1230
    %1239 = vst [vmem:[#allocation3 + $0x168] sm:$0xf] %v1231
    %1240 = vst [vmem:[#allocation3 + $0x16c] sm:$0xff] %v1232
    %1241 = vst [vmem:[#allocation3 + $0x174] sm:$0xff] %v1233
    %1242 = vst [vmem:[#allocation3 + $0x17c] sm:$0xff] %v1234
    %1243 = vst [vmem:[#allocation3 + $0x184] sm:$0xf] %v1235
    %1244 = vrot.lane.b32.xlu0 %v860, 68
    %v1245 = vpop.permute.xlu0 %1244
    %1246 = vrot.lane.b32.xlu0 %v867, 68
    %v1247 = vpop.permute.xlu0 %1246
    %1248 = vrot.lane.b32.xlu0 %v861, 68
    %v1249 = vpop.permute.xlu0 %1248
    %1250 = vrot.lane.b32.xlu0 %v868, 68
    %v1251 = vpop.permute.xlu0 %1250
    %1252 = vrot.lane.b32.xlu0 %v862, 68
    %v1253 = vpop.permute.xlu0 %1252
    %1254 = vrot.lane.b32.xlu0 %v869, 68
    %v1255 = vpop.permute.xlu0 %1254
    %1256 = vrot.lane.b32.xlu0 %v863, 68
    %v1257 = vpop.permute.xlu0 %1256
    %1258 = vrot.lane.b32.xlu0 %v870, 68
    %v1259 = vpop.permute.xlu0 %1258
    %1260 = vrot.lane.b32.xlu0 %v864, 68
    %v1261 = vpop.permute.xlu0 %1260
    %1262 = vrot.lane.b32.xlu0 %v871, 68
    %v1263 = vpop.permute.xlu0 %1262
    %1264 = vrot.lane.b32.xlu0 %v865, 68
    %v1265 = vpop.permute.xlu0 %1264
    %1266 = vrot.lane.b32.xlu0 %v872, 68
    %v1267 = vpop.permute.xlu0 %1266
    %1268 = vrot.lane.b32.xlu0 %v866, 68
    %v1269 = vpop.permute.xlu0 %1268
    %1270 = vrot.lane.b32.xlu0 %v873, 68
    %v1271 = vpop.permute.xlu0 %1270
    %vm1272 = vcmp.lt.s32.totalorder %v55, 68
    %v1273 = vsel %vm1272, %v1265, %v1269
    %v1274 = vsel %vm1272, %v1267, %v1271
    %v1275 = vsel %vm1272, %v1261, %v1265
    %v1276 = vsel %vm1272, %v1263, %v1267
    %v1277 = vsel %vm1272, %v1257, %v1261
    %v1278 = vsel %vm1272, %v1259, %v1263
    %v1279 = vsel %vm1272, %v1253, %v1257
    %v1280 = vsel %vm1272, %v1255, %v1259
    %v1281 = vsel %vm1272, %v1249, %v1253
    %v1282 = vsel %vm1272, %v1251, %v1255
    %v1283 = vsel %vm1272, %v1245, %v1249
    %v1284 = vsel %vm1272, %v1247, %v1251
    %v1285 = vsel %vm1272, %v1269, %v1245
    %v1286 = vsel %vm1272, %v1271, %v1247
    %v1287 = vpack.c.bf16 %v1281, %v1283
    %v1288 = vpack.c.bf16 %v1277, %v1279
    %v1289 = vpack.c.bf16 %v1273, %v1275
    %v1290 = vpack.c.bf16 %v1285, %v1285
    %v1291 = vpack.c.bf16 %v1282, %v1284
    %v1292 = vpack.c.bf16 %v1278, %v1280
    %v1293 = vpack.c.bf16 %v1274, %v1276
    %v1294 = vpack.c.bf16 %v1286, %v1286
    %1295 = vst [vmem:[#allocation3 + $0x188] sm:$0xff] %v1287
    %1296 = vst [vmem:[#allocation3 + $0x190] sm:$0xff] %v1288
    %1297 = vst [vmem:[#allocation3 + $0x198] sm:$0xff] %v1289
    %1298 = vst [vmem:[#allocation3 + $0x1a0] sm:$0xf] %v1290
    %1299 = vst [vmem:[#allocation3 + $0x1a4] sm:$0xff] %v1291
    %1300 = vst [vmem:[#allocation3 + $0x1ac] sm:$0xff] %v1292
    %1301 = vst [vmem:[#allocation3 + $0x1b4] sm:$0xff] %v1293
    %1302 = vst [vmem:[#allocation3 + $0x1bc] sm:$0xf] %v1294
    %1303 = vrot.lane.b32.xlu0 %v860, 66
    %v1304 = vpop.permute.xlu0 %1303
    %1305 = vrot.lane.b32.xlu0 %v867, 66
    %v1306 = vpop.permute.xlu0 %1305
    %1307 = vrot.lane.b32.xlu0 %v861, 66
    %v1308 = vpop.permute.xlu0 %1307
    %1309 = vrot.lane.b32.xlu0 %v868, 66
    %v1310 = vpop.permute.xlu0 %1309
    %1311 = vrot.lane.b32.xlu0 %v862, 66
    %v1312 = vpop.permute.xlu0 %1311
    %1313 = vrot.lane.b32.xlu0 %v869, 66
    %v1314 = vpop.permute.xlu0 %1313
    %1315 = vrot.lane.b32.xlu0 %v863, 66
    %v1316 = vpop.permute.xlu0 %1315
    %1317 = vrot.lane.b32.xlu0 %v870, 66
    %v1318 = vpop.permute.xlu0 %1317
    %1319 = vrot.lane.b32.xlu0 %v864, 66
    %v1320 = vpop.permute.xlu0 %1319
    %1321 = vrot.lane.b32.xlu0 %v871, 66
    %v1322 = vpop.permute.xlu0 %1321
    %1323 = vrot.lane.b32.xlu0 %v865, 66
    %v1324 = vpop.permute.xlu0 %1323
    %1325 = vrot.lane.b32.xlu0 %v872, 66
    %v1326 = vpop.permute.xlu0 %1325
    %1327 = vrot.lane.b32.xlu0 %v866, 66
    %v1328 = vpop.permute.xlu0 %1327
    %1329 = vrot.lane.b32.xlu0 %v873, 66
    %v1330 = vpop.permute.xlu0 %1329
    %vm1331 = vcmp.lt.s32.totalorder %v55, 66
    %v1332 = vsel %vm1331, %v1324, %v1328
    %v1333 = vsel %vm1331, %v1326, %v1330
    %v1334 = vsel %vm1331, %v1320, %v1324
    %v1335 = vsel %vm1331, %v1322, %v1326
    %v1336 = vsel %vm1331, %v1316, %v1320
    %v1337 = vsel %vm1331, %v1318, %v1322
    %v1338 = vsel %vm1331, %v1312, %v1316
    %v1339 = vsel %vm1331, %v1314, %v1318
    %v1340 = vsel %vm1331, %v1308, %v1312
    %v1341 = vsel %vm1331, %v1310, %v1314
    %v1342 = vsel %vm1331, %v1304, %v1308
    %v1343 = vsel %vm1331, %v1306, %v1310
    %v1344 = vsel %vm1331, %v1328, %v1304
    %v1345 = vsel %vm1331, %v1330, %v1306
    %v1346 = vpack.c.bf16 %v1340, %v1342
    %v1347 = vpack.c.bf16 %v1336, %v1338
    %v1348 = vpack.c.bf16 %v1332, %v1334
    %v1349 = vpack.c.bf16 %v1344, %v1344
    %v1350 = vpack.c.bf16 %v1341, %v1343
    %v1351 = vpack.c.bf16 %v1337, %v1339
    %v1352 = vpack.c.bf16 %v1333, %v1335
    %v1353 = vpack.c.bf16 %v1345, %v1345
    %1354 = vst [vmem:[#allocation3 + $0x1c0] sm:$0xff] %v1346
    %1355 = vst [vmem:[#allocation3 + $0x1c8] sm:$0xff] %v1347
    %1356 = vst [vmem:[#allocation3 + $0x1d0] sm:$0xff] %v1348
    %1357 = vst [vmem:[#allocation3 + $0x1d8] sm:$0xf] %v1349
    %1358 = vst [vmem:[#allocation3 + $0x1dc] sm:$0xff] %v1350
    %1359 = vst [vmem:[#allocation3 + $0x1e4] sm:$0xff] %v1351
    %1360 = vst [vmem:[#allocation3 + $0x1ec] sm:$0xff] %v1352
    %1361 = vst [vmem:[#allocation3 + $0x1f4] sm:$0xf] %v1353
    %v1362 = vld [vmem:[#allocation4 + $0x10] sm:$0xff]
    %v1363 = vld [vmem:[#allocation4 + $0x18] sm:$0xff]
    %v1364 = vld [vmem:[#allocation4 + $0x20] sm:$0xff]
    %v1365 = vld [vmem:[#allocation4 + $0x28] sm:$0xff]
    %v1366 = vld [vmem:[#allocation3] sm:$0xff]
    %v1367 = vld [vmem:[#allocation3 + $0x8] sm:$0xff]
    %v1368 = vld [vmem:[#allocation3 + $0x10] sm:$0xff]
    %v1369 = vld [vmem:[#allocation3 + $0x18] sm:$0xf]
    %v1370 = vld [vmem:[#allocation3 + $0x1c] sm:$0xff]
    %v1371 = vld [vmem:[#allocation3 + $0x24] sm:$0xff]
    %v1372 = vld [vmem:[#allocation3 + $0x2c] sm:$0xff]
    %v1373 = vld [vmem:[#allocation3 + $0x34] sm:$0xf]
    %v1374 = vld [vmem:[#allocation3 + $0x38] sm:$0xff]
    %v1375 = vld [vmem:[#allocation3 + $0x40] sm:$0xff]
    %v1376 = vld [vmem:[#allocation3 + $0x48] sm:$0xff]
    %v1377 = vld [vmem:[#allocation3 + $0x50] sm:$0xf]
    %v1378 = vld [vmem:[#allocation3 + $0x54] sm:$0xff]
    %v1379 = vld [vmem:[#allocation3 + $0x5c] sm:$0xff]
    %v1380 = vld [vmem:[#allocation3 + $0x64] sm:$0xff]
    %v1381 = vld [vmem:[#allocation3 + $0x6c] sm:$0xf]
    %v1382 = vld [vmem:[#allocation3 + $0x70] sm:$0xff]
    %v1383 = vld [vmem:[#allocation3 + $0x78] sm:$0xff]
    %v1384 = vld [vmem:[#allocation3 + $0x80] sm:$0xff]
    %v1385 = vld [vmem:[#allocation3 + $0x88] sm:$0xf]
    %v1386 = vld [vmem:[#allocation3 + $0x8c] sm:$0xff]
    %v1387 = vld [vmem:[#allocation3 + $0x94] sm:$0xff]
    %v1388 = vld [vmem:[#allocation3 + $0x9c] sm:$0xff]
    %v1389 = vld [vmem:[#allocation3 + $0xa4] sm:$0xf]
    %v1390 = vld [vmem:[#allocation3 + $0xa8] sm:$0xff]
    %v1391 = vld [vmem:[#allocation3 + $0xb0] sm:$0xff]
    %v1392 = vld [vmem:[#allocation3 + $0xb8] sm:$0xff]
    %v1393 = vld [vmem:[#allocation3 + $0xc0] sm:$0xf]
    %v1394 = vld [vmem:[#allocation3 + $0xc4] sm:$0xff]
    %v1395 = vld [vmem:[#allocation3 + $0xcc] sm:$0xff]
    %v1396 = vld [vmem:[#allocation3 + $0xd4] sm:$0xff]
    %v1397 = vld [vmem:[#allocation3 + $0xdc] sm:$0xf]
    %v1398 = vld [vmem:[#allocation3 + $0xe0] sm:$0xff]
    %v1399 = vld [vmem:[#allocation3 + $0xe8] sm:$0xff]
    %v1400 = vld [vmem:[#allocation3 + $0xf0] sm:$0xff]
    %v1401 = vld [vmem:[#allocation3 + $0xf8] sm:$0xf]
    %v1402 = vld [vmem:[#allocation3 + $0xfc] sm:$0xff]
    %v1403 = vld [vmem:[#allocation3 + $0x104] sm:$0xff]
    %v1404 = vld [vmem:[#allocation3 + $0x10c] sm:$0xff]
    %v1405 = vld [vmem:[#allocation3 + $0x114] sm:$0xf]
    %v1406 = vld [vmem:[#allocation3 + $0x118] sm:$0xff]
    %v1407 = vld [vmem:[#allocation3 + $0x120] sm:$0xff]
    %v1408 = vld [vmem:[#allocation3 + $0x128] sm:$0xff]
    %v1409 = vld [vmem:[#allocation3 + $0x130] sm:$0xf]
    %v1410 = vld [vmem:[#allocation3 + $0x134] sm:$0xff]
    %v1411 = vld [vmem:[#allocation3 + $0x13c] sm:$0xff]
    %v1412 = vld [vmem:[#allocation3 + $0x144] sm:$0xff]
    %v1413 = vld [vmem:[#allocation3 + $0x14c] sm:$0xf]
    %v1414 = vld [vmem:[#allocation3 + $0x150] sm:$0xff]
    %v1415 = vld [vmem:[#allocation3 + $0x158] sm:$0xff]
    %v1416 = vld [vmem:[#allocation3 + $0x160] sm:$0xff]
    %v1417 = vld [vmem:[#allocation3 + $0x168] sm:$0xf]
    %v1418 = vld [vmem:[#allocation3 + $0x16c] sm:$0xff]
    %v1419 = vld [vmem:[#allocation3 + $0x174] sm:$0xff]
    %v1420 = vld [vmem:[#allocation3 + $0x17c] sm:$0xff]
    %v1421 = vld [vmem:[#allocation3 + $0x184] sm:$0xf]
    %v1422 = vld [vmem:[#allocation3 + $0x188] sm:$0xff]
    %v1423 = vld [vmem:[#allocation3 + $0x190] sm:$0xff]
    %v1424 = vld [vmem:[#allocation3 + $0x198] sm:$0xff]
    %v1425 = vld [vmem:[#allocation3 + $0x1a0] sm:$0xf]
    %v1426 = vld [vmem:[#allocation3 + $0x1a4] sm:$0xff]
    %v1427 = vld [vmem:[#allocation3 + $0x1ac] sm:$0xff]
    %v1428 = vld [vmem:[#allocation3 + $0x1b4] sm:$0xff]
    %v1429 = vld [vmem:[#allocation3 + $0x1bc] sm:$0xf]
    %v1430 = vld [vmem:[#allocation3 + $0x1c0] sm:$0xff]
    %v1431 = vld [vmem:[#allocation3 + $0x1c8] sm:$0xff]
    %v1432 = vld [vmem:[#allocation3 + $0x1d0] sm:$0xff]
    %v1433 = vld [vmem:[#allocation3 + $0x1d8] sm:$0xf]
    %v1434 = vld [vmem:[#allocation3 + $0x1dc] sm:$0xff]
    %v1435 = vld [vmem:[#allocation3 + $0x1e4] sm:$0xff]
    %v1436 = vld [vmem:[#allocation3 + $0x1ec] sm:$0xff]
    %v1437 = vld [vmem:[#allocation3 + $0x1f4] sm:$0xf]
    %v1438 = vld [vmem:[#allocation6] sm:$0xff]
    %v1439 = vld [vmem:[#allocation6 + $0x8] sm:$0xff]
    %v1440 = vld [vmem:[#allocation6 + $0x10] sm:$0xff]
    %v1441 = vld [vmem:[#allocation6 + $0x18] sm:$0xff]
    %1443 = vset.pattern.permute.xlu0 31
    %1444 = vperm.xlu0 %1443, %v1438
    %v1445 = vpop.permute.xlu0 %1444
    %1448 = vset.pattern.permute.xlu0 31
    %1449 = vperm.xlu0 %1448, %v1439
    %v1450 = vpop.permute.xlu0 %1449
    %1453 = vset.pattern.permute.xlu0 31
    %1454 = vperm.xlu0 %1453, %v1440
    %v1455 = vpop.permute.xlu0 %1454
    %1458 = vset.pattern.permute.xlu0 31
    %1459 = vperm.xlu0 %1458, %v1441
    %v1460 = vpop.permute.xlu0 %1459
    %v1466 = vunpack.c.l.b16 %v1362
    %v1467 = vunpack.c.h.b16 %v1362
    %v1468 = vunpack.c.l.b16 %v1363
    %v1469 = vunpack.c.h.b16 %v1363
    %v1470 = vunpack.c.l.b16 %v1364
    %v1471 = vunpack.c.h.b16 %v1364
    %v1472 = vunpack.c.l.b16 %v1365
    %v1473 = vunpack.c.h.b16 %v1365
    %v1474 = vpack.c.b16 %v1468, %v1466
    %v1475 = vpack.c.b16 %v1469, %v1467
    %v1476 = vpack.c.b16 %v1472, %v1470
    %v1477 = vpack.c.b16 %v1473, %v1471
    %v1552 = vunpack.c.l.b16 %v1366
    %v1553 = vunpack.c.h.b16 %v1366
    %v1554 = vunpack.c.l.b16 %v1367
    %v1555 = vunpack.c.h.b16 %v1367
    %v1556 = vunpack.c.l.b16 %v1368
    %v1557 = vunpack.c.h.b16 %v1368
    %v1558 = vunpack.c.l.b16 %v1369
    %v1559 = vunpack.c.l.b16 %v1370
    %v1560 = vunpack.c.h.b16 %v1370
    %v1561 = vunpack.c.l.b16 %v1371
    %v1562 = vunpack.c.h.b16 %v1371
    %v1563 = vunpack.c.l.b16 %v1372
    %v1564 = vunpack.c.h.b16 %v1372
    %v1565 = vunpack.c.l.b16 %v1373
    %v1566 = vunpack.c.l.b16 %v1374
    %v1567 = vunpack.c.h.b16 %v1374
    %v1568 = vunpack.c.l.b16 %v1375
    %v1569 = vunpack.c.h.b16 %v1375
    %v1570 = vunpack.c.l.b16 %v1376
    %v1571 = vunpack.c.h.b16 %v1376
    %v1572 = vunpack.c.l.b16 %v1377
    %v1573 = vunpack.c.l.b16 %v1378
    %v1574 = vunpack.c.h.b16 %v1378
    %v1575 = vunpack.c.l.b16 %v1379
    %v1576 = vunpack.c.h.b16 %v1379
    %v1577 = vunpack.c.l.b16 %v1380
    %v1578 = vunpack.c.h.b16 %v1380
    %v1579 = vunpack.c.l.b16 %v1381
    %v1580 = vunpack.c.l.b16 %v1382
    %v1581 = vunpack.c.h.b16 %v1382
    %v1582 = vunpack.c.l.b16 %v1383
    %v1583 = vunpack.c.h.b16 %v1383
    %v1584 = vunpack.c.l.b16 %v1384
    %v1585 = vunpack.c.h.b16 %v1384
    %v1586 = vunpack.c.l.b16 %v1385
    %v1587 = vunpack.c.l.b16 %v1386
    %v1588 = vunpack.c.h.b16 %v1386
    %v1589 = vunpack.c.l.b16 %v1387
    %v1590 = vunpack.c.h.b16 %v1387
    %v1591 = vunpack.c.l.b16 %v1388
    %v1592 = vunpack.c.h.b16 %v1388
    %v1593 = vunpack.c.l.b16 %v1389
    %v1594 = vunpack.c.l.b16 %v1390
    %v1595 = vunpack.c.h.b16 %v1390
    %v1596 = vunpack.c.l.b16 %v1391
    %v1597 = vunpack.c.h.b16 %v1391
    %v1598 = vunpack.c.l.b16 %v1392
    %v1599 = vunpack.c.h.b16 %v1392
    %v1600 = vunpack.c.l.b16 %v1393
    %v1601 = vunpack.c.l.b16 %v1394
    %v1602 = vunpack.c.h.b16 %v1394
    %v1603 = vunpack.c.l.b16 %v1395
    %v1604 = vunpack.c.h.b16 %v1395
    %v1605 = vunpack.c.l.b16 %v1396
    %v1606 = vunpack.c.h.b16 %v1396
    %v1607 = vunpack.c.l.b16 %v1397
    %v1608 = vunpack.c.l.b16 %v1398
    %v1609 = vunpack.c.h.b16 %v1398
    %v1610 = vunpack.c.l.b16 %v1399
    %v1611 = vunpack.c.h.b16 %v1399
    %v1612 = vunpack.c.l.b16 %v1400
    %v1613 = vunpack.c.h.b16 %v1400
    %v1614 = vunpack.c.l.b16 %v1401
    %v1615 = vunpack.c.l.b16 %v1402
    %v1616 = vunpack.c.h.b16 %v1402
    %v1617 = vunpack.c.l.b16 %v1403
    %v1618 = vunpack.c.h.b16 %v1403
    %v1619 = vunpack.c.l.b16 %v1404
    %v1620 = vunpack.c.h.b16 %v1404
    %v1621 = vunpack.c.l.b16 %v1405
    %v1622 = vunpack.c.l.b16 %v1406
    %v1623 = vunpack.c.h.b16 %v1406
    %v1624 = vunpack.c.l.b16 %v1407
    %v1625 = vunpack.c.h.b16 %v1407
    %v1626 = vunpack.c.l.b16 %v1408
    %v1627 = vunpack.c.h.b16 %v1408
    %v1628 = vunpack.c.l.b16 %v1409
    %v1629 = vunpack.c.l.b16 %v1410
    %v1630 = vunpack.c.h.b16 %v1410
    %v1631 = vunpack.c.l.b16 %v1411
    %v1632 = vunpack.c.h.b16 %v1411
    %v1633 = vunpack.c.l.b16 %v1412
    %v1634 = vunpack.c.h.b16 %v1412
    %v1635 = vunpack.c.l.b16 %v1413
    %v1636 = vunpack.c.l.b16 %v1414
    %v1637 = vunpack.c.h.b16 %v1414
    %v1638 = vunpack.c.l.b16 %v1415
    %v1639 = vunpack.c.h.b16 %v1415
    %v1640 = vunpack.c.l.b16 %v1416
    %v1641 = vunpack.c.h.b16 %v1416
    %v1642 = vunpack.c.l.b16 %v1417
    %v1643 = vunpack.c.l.b16 %v1418
    %v1644 = vunpack.c.h.b16 %v1418
    %v1645 = vunpack.c.l.b16 %v1419
    %v1646 = vunpack.c.h.b16 %v1419
    %v1647 = vunpack.c.l.b16 %v1420
    %v1648 = vunpack.c.h.b16 %v1420
    %v1649 = vunpack.c.l.b16 %v1421
    %v1650 = vunpack.c.l.b16 %v1422
    %v1651 = vunpack.c.h.b16 %v1422
    %v1652 = vunpack.c.l.b16 %v1423
    %v1653 = vunpack.c.h.b16 %v1423
    %v1654 = vunpack.c.l.b16 %v1424
    %v1655 = vunpack.c.h.b16 %v1424
    %v1656 = vunpack.c.l.b16 %v1425
    %v1657 = vunpack.c.l.b16 %v1426
    %v1658 = vunpack.c.h.b16 %v1426
    %v1659 = vunpack.c.l.b16 %v1427
    %v1660 = vunpack.c.h.b16 %v1427
    %v1661 = vunpack.c.l.b16 %v1428
    %v1662 = vunpack.c.h.b16 %v1428
    %v1663 = vunpack.c.l.b16 %v1429
    %v1664 = vunpack.c.l.b16 %v1430
    %v1665 = vunpack.c.h.b16 %v1430
    %v1666 = vunpack.c.l.b16 %v1431
    %v1667 = vunpack.c.h.b16 %v1431
    %v1668 = vunpack.c.l.b16 %v1432
    %v1669 = vunpack.c.h.b16 %v1432
    %v1670 = vunpack.c.l.b16 %v1433
    %v1671 = vunpack.c.l.b16 %v1434
    %v1672 = vunpack.c.h.b16 %v1434
    %v1673 = vunpack.c.l.b16 %v1435
    %v1674 = vunpack.c.h.b16 %v1435
    %v1675 = vunpack.c.l.b16 %v1436
    %v1676 = vunpack.c.h.b16 %v1436
    %v1677 = vunpack.c.l.b16 %v1437
    %v1678 = vpack.c.b16 %v1559, %v1552
    %v1679 = vpack.c.b16 %v1560, %v1553
    %v1680 = vpack.c.b16 %v1561, %v1554
    %v1681 = vpack.c.b16 %v1562, %v1555
    %v1682 = vpack.c.b16 %v1563, %v1556
    %v1683 = vpack.c.b16 %v1564, %v1557
    %v1684 = vpack.c.b16 %v1565, %v1558
    %v1685 = vpack.c.b16 %v1573, %v1566
    %v1686 = vpack.c.b16 %v1574, %v1567
    %v1687 = vpack.c.b16 %v1575, %v1568
    %v1688 = vpack.c.b16 %v1576, %v1569
    %v1689 = vpack.c.b16 %v1577, %v1570
    %v1690 = vpack.c.b16 %v1578, %v1571
    %v1691 = vpack.c.b16 %v1579, %v1572
    %v1692 = vpack.c.b16 %v1587, %v1580
    %v1693 = vpack.c.b16 %v1588, %v1581
    %v1694 = vpack.c.b16 %v1589, %v1582
    %v1695 = vpack.c.b16 %v1590, %v1583
    %v1696 = vpack.c.b16 %v1591, %v1584
    %v1697 = vpack.c.b16 %v1592, %v1585
    %v1698 = vpack.c.b16 %v1593, %v1586
    %v1699 = vpack.c.b16 %v1601, %v1594
    %v1700 = vpack.c.b16 %v1602, %v1595
    %v1701 = vpack.c.b16 %v1603, %v1596
    %v1702 = vpack.c.b16 %v1604, %v1597
    %v1703 = vpack.c.b16 %v1605, %v1598
    %v1704 = vpack.c.b16 %v1606, %v1599
    %v1705 = vpack.c.b16 %v1607, %v1600
    %v1706 = vpack.c.b16 %v1615, %v1608
    %v1707 = vpack.c.b16 %v1616, %v1609
    %v1708 = vpack.c.b16 %v1617, %v1610
    %v1709 = vpack.c.b16 %v1618, %v1611
    %v1710 = vpack.c.b16 %v1619, %v1612
    %v1711 = vpack.c.b16 %v1620, %v1613
    %v1712 = vpack.c.b16 %v1621, %v1614
    %v1713 = vpack.c.b16 %v1629, %v1622
    %v1714 = vpack.c.b16 %v1630, %v1623
    %v1715 = vpack.c.b16 %v1631, %v1624
    %v1716 = vpack.c.b16 %v1632, %v1625
    %v1717 = vpack.c.b16 %v1633, %v1626
    %v1718 = vpack.c.b16 %v1634, %v1627
    %v1719 = vpack.c.b16 %v1635, %v1628
    %v1720 = vpack.c.b16 %v1643, %v1636
    %v1721 = vpack.c.b16 %v1644, %v1637
    %v1722 = vpack.c.b16 %v1645, %v1638
    %v1723 = vpack.c.b16 %v1646, %v1639
    %v1724 = vpack.c.b16 %v1647, %v1640
    %v1725 = vpack.c.b16 %v1648, %v1641
    %v1726 = vpack.c.b16 %v1649, %v1642
    %v1727 = vpack.c.b16 %v1657, %v1650
    %v1728 = vpack.c.b16 %v1658, %v1651
    %v1729 = vpack.c.b16 %v1659, %v1652
    %v1730 = vpack.c.b16 %v1660, %v1653
    %v1731 = vpack.c.b16 %v1661, %v1654
    %v1732 = vpack.c.b16 %v1662, %v1655
    %v1733 = vpack.c.b16 %v1663, %v1656
    %v1734 = vpack.c.b16 %v1671, %v1664
    %v1735 = vpack.c.b16 %v1672, %v1665
    %v1736 = vpack.c.b16 %v1673, %v1666
    %v1737 = vpack.c.b16 %v1674, %v1667
    %v1738 = vpack.c.b16 %v1675, %v1668
    %v1739 = vpack.c.b16 %v1676, %v1669
    %v1740 = vpack.c.b16 %v1677, %v1670
    %vm1804 = vcmask 130048
    %v1806 = vsel %vm1804, %v1475, 0
    %v1809 = vsel %vm1804, %v1477, 0
    %1811 = vmatpush.bf16.msra.mxu0 %v1727
    %1812 = vmatpush.bf16.msra.mxu0 %v1720
    %1813 = vmatpush.bf16.msra.mxu0 %v1713
    %1814 = vmatpush.bf16.msra.mxu0 %v1706
    %1815 = vmatpush.bf16.msra.mxu0 %v1699
    %1816 = vmatpush.bf16.msra.mxu0 %v1692
    %1817 = vmatpush.bf16.msra.mxu0 %v1685
    %1818 = vmatpush.bf16.msra.mxu0 %v1678
    %1819 = vmatmul.bf16.gmra.mxu0 %v1474
    %v1820 = vpop.f32.mrf.mxu0
    %v1821 = vadd.f32 %v1445, %v1820
    %v1822 = vpop.f32.mrf.mxu0
    %v1823 = vadd.f32 %v1450, %v1822
    %1824 = vmatmul.bf16.gmra.mxu0 %v1476
    %v1825 = vpop.f32.mrf.mxu0
    %v1826 = vadd.f32 %v1455, %v1825
    %v1827 = vpop.f32.mrf.mxu0
    %v1828 = vadd.f32 %v1460, %v1827
    %1829 = vdwg.mxu0
    %1830 = vmatpush.bf16.msra.mxu0 0
    %1831 = vmatpush.bf16.msra.mxu0 0
    %1832 = vmatpush.bf16.msra.mxu0 0
    %1833 = vmatpush.bf16.msra.mxu0 0
    %1834 = vmatpush.bf16.msra.mxu0 0
    %1835 = vmatpush.bf16.msra.mxu0 0
    %1836 = vmatpush.bf16.msra.mxu0 0
    %1837 = vmatpush.bf16.msra.mxu0 %v1734
    %1838 = vmatmul.bf16.gmra.mxu0 %v1806
    %v1839 = vpop.f32.mrf.mxu0
    %v1840 = vadd.f32 %v1821, %v1839
    %v1841 = vpop.f32.mrf.mxu0
    %v1842 = vadd.f32 %v1823, %v1841
    %1843 = vmatmul.bf16.gmra.mxu0 %v1809
    %v1844 = vpop.f32.mrf.mxu0
    %v1845 = vadd.f32 %v1826, %v1844
    %v1846 = vpop.f32.mrf.mxu0
    %v1847 = vadd.f32 %v1828, %v1846
    %1848 = vdwg.mxu0
    %1849 = vmatpush.bf16.msra.mxu0 %v1728
    %1850 = vmatpush.bf16.msra.mxu0 %v1721
    %1851 = vmatpush.bf16.msra.mxu0 %v1714
    %1852 = vmatpush.bf16.msra.mxu0 %v1707
    %1853 = vmatpush.bf16.msra.mxu0 %v1700
    %1854 = vmatpush.bf16.msra.mxu0 %v1693
    %1855 = vmatpush.bf16.msra.mxu0 %v1686
    %1856 = vmatpush.bf16.msra.mxu0 %v1679
    %1857 = vmatmul.bf16.gmra.mxu0 %v1474
    %v1858 = vpop.f32.mrf.mxu0
    %v1859 = vadd.f32 %v1445, %v1858
    %v1860 = vpop.f32.mrf.mxu0
    %v1861 = vadd.f32 %v1450, %v1860
    %1862 = vmatmul.bf16.gmra.mxu0 %v1476
    %v1863 = vpop.f32.mrf.mxu0
    %v1864 = vadd.f32 %v1455, %v1863
    %v1865 = vpop.f32.mrf.mxu0
    %v1866 = vadd.f32 %v1460, %v1865
    %1867 = vdwg.mxu0
    %1868 = vmatpush.bf16.msra.mxu0 0
    %1869 = vmatpush.bf16.msra.mxu0 0
    %1870 = vmatpush.bf16.msra.mxu0 0
    %1871 = vmatpush.bf16.msra.mxu0 0
    %1872 = vmatpush.bf16.msra.mxu0 0
    %1873 = vmatpush.bf16.msra.mxu0 0
    %1874 = vmatpush.bf16.msra.mxu0 0
    %1875 = vmatpush.bf16.msra.mxu0 %v1735
    %1876 = vmatmul.bf16.gmra.mxu0 %v1806
    %v1877 = vpop.f32.mrf.mxu0
    %v1878 = vadd.f32 %v1859, %v1877
    %v1879 = vpop.f32.mrf.mxu0
    %v1880 = vadd.f32 %v1861, %v1879
    %1881 = vmatmul.bf16.gmra.mxu0 %v1809
    %v1882 = vpop.f32.mrf.mxu0
    %v1883 = vadd.f32 %v1864, %v1882
    %v1884 = vpop.f32.mrf.mxu0
    %v1885 = vadd.f32 %v1866, %v1884
    %1886 = vdwg.mxu0
    %1887 = vmatpush.bf16.msra.mxu0 %v1729
    %1888 = vmatpush.bf16.msra.mxu0 %v1722
    %1889 = vmatpush.bf16.msra.mxu0 %v1715
    %1890 = vmatpush.bf16.msra.mxu0 %v1708
    %1891 = vmatpush.bf16.msra.mxu0 %v1701
    %1892 = vmatpush.bf16.msra.mxu0 %v1694
    %1893 = vmatpush.bf16.msra.mxu0 %v1687
    %1894 = vmatpush.bf16.msra.mxu0 %v1680
    %1895 = vmatmul.bf16.gmra.mxu0 %v1474
    %v1896 = vpop.f32.mrf.mxu0
    %v1897 = vadd.f32 %v1445, %v1896
    %v1898 = vpop.f32.mrf.mxu0
    %v1899 = vadd.f32 %v1450, %v1898
    %1900 = vmatmul.bf16.gmra.mxu0 %v1476
    %v1901 = vpop.f32.mrf.mxu0
    %v1902 = vadd.f32 %v1455, %v1901
    %v1903 = vpop.f32.mrf.mxu0
    %v1904 = vadd.f32 %v1460, %v1903
    %1905 = vdwg.mxu0
    %1906 = vmatpush.bf16.msra.mxu0 0
    %1907 = vmatpush.bf16.msra.mxu0 0
    %1908 = vmatpush.bf16.msra.mxu0 0
    %1909 = vmatpush.bf16.msra.mxu0 0
    %1910 = vmatpush.bf16.msra.mxu0 0
    %1911 = vmatpush.bf16.msra.mxu0 0
    %1912 = vmatpush.bf16.msra.mxu0 0
    %1913 = vmatpush.bf16.msra.mxu0 %v1736
    %1914 = vmatmul.bf16.gmra.mxu0 %v1806
    %v1915 = vpop.f32.mrf.mxu0
    %v1916 = vadd.f32 %v1897, %v1915
    %v1917 = vpop.f32.mrf.mxu0
    %v1918 = vadd.f32 %v1899, %v1917
    %1919 = vmatmul.bf16.gmra.mxu0 %v1809
    %v1920 = vpop.f32.mrf.mxu0
    %v1921 = vadd.f32 %v1902, %v1920
    %v1922 = vpop.f32.mrf.mxu0
    %v1923 = vadd.f32 %v1904, %v1922
    %1924 = vdwg.mxu0
    %1925 = vmatpush.bf16.msra.mxu0 %v1730
    %1926 = vmatpush.bf16.msra.mxu0 %v1723
    %1927 = vmatpush.bf16.msra.mxu0 %v1716
    %1928 = vmatpush.bf16.msra.mxu0 %v1709
    %1929 = vmatpush.bf16.msra.mxu0 %v1702
    %1930 = vmatpush.bf16.msra.mxu0 %v1695
    %1931 = vmatpush.bf16.msra.mxu0 %v1688
    %1932 = vmatpush.bf16.msra.mxu0 %v1681
    %1933 = vmatmul.bf16.gmra.mxu0 %v1474
    %v1934 = vpop.f32.mrf.mxu0
    %v1935 = vadd.f32 %v1445, %v1934
    %v1936 = vpop.f32.mrf.mxu0
    %v1937 = vadd.f32 %v1450, %v1936
    %1938 = vmatmul.bf16.gmra.mxu0 %v1476
    %v1939 = vpop.f32.mrf.mxu0
    %v1940 = vadd.f32 %v1455, %v1939
    %v1941 = vpop.f32.mrf.mxu0
    %v1942 = vadd.f32 %v1460, %v1941
    %1943 = vdwg.mxu0
    %1944 = vmatpush.bf16.msra.mxu0 0
    %1945 = vmatpush.bf16.msra.mxu0 0
    %1946 = vmatpush.bf16.msra.mxu0 0
    %1947 = vmatpush.bf16.msra.mxu0 0
    %1948 = vmatpush.bf16.msra.mxu0 0
    %1949 = vmatpush.bf16.msra.mxu0 0
    %1950 = vmatpush.bf16.msra.mxu0 0
    %1951 = vmatpush.bf16.msra.mxu0 %v1737
    %1952 = vmatmul.bf16.gmra.mxu0 %v1806
    %v1953 = vpop.f32.mrf.mxu0
    %v1954 = vadd.f32 %v1935, %v1953
    %v1955 = vpop.f32.mrf.mxu0
    %v1956 = vadd.f32 %v1937, %v1955
    %1957 = vmatmul.bf16.gmra.mxu0 %v1809
    %v1958 = vpop.f32.mrf.mxu0
    %v1959 = vadd.f32 %v1940, %v1958
    %v1960 = vpop.f32.mrf.mxu0
    %v1961 = vadd.f32 %v1942, %v1960
    %1962 = vdwg.mxu0
    %1963 = vmatpush.bf16.msra.mxu0 %v1731
    %1964 = vmatpush.bf16.msra.mxu0 %v1724
    %1965 = vmatpush.bf16.msra.mxu0 %v1717
    %1966 = vmatpush.bf16.msra.mxu0 %v1710
    %1967 = vmatpush.bf16.msra.mxu0 %v1703
    %1968 = vmatpush.bf16.msra.mxu0 %v1696
    %1969 = vmatpush.bf16.msra.mxu0 %v1689
    %1970 = vmatpush.bf16.msra.mxu0 %v1682
    %1971 = vmatmul.bf16.gmra.mxu0 %v1474
    %v1972 = vpop.f32.mrf.mxu0
    %v1973 = vadd.f32 %v1445, %v1972
    %v1974 = vpop.f32.mrf.mxu0
    %v1975 = vadd.f32 %v1450, %v1974
    %1976 = vmatmul.bf16.gmra.mxu0 %v1476
    %v1977 = vpop.f32.mrf.mxu0
    %v1978 = vadd.f32 %v1455, %v1977
    %v1979 = vpop.f32.mrf.mxu0
    %v1980 = vadd.f32 %v1460, %v1979
    %1981 = vdwg.mxu0
    %1982 = vmatpush.bf16.msra.mxu0 0
    %1983 = vmatpush.bf16.msra.mxu0 0
    %1984 = vmatpush.bf16.msra.mxu0 0
    %1985 = vmatpush.bf16.msra.mxu0 0
    %1986 = vmatpush.bf16.msra.mxu0 0
    %1987 = vmatpush.bf16.msra.mxu0 0
    %1988 = vmatpush.bf16.msra.mxu0 0
    %1989 = vmatpush.bf16.msra.mxu0 %v1738
    %1990 = vmatmul.bf16.gmra.mxu0 %v1806
    %v1991 = vpop.f32.mrf.mxu0
    %v1992 = vadd.f32 %v1973, %v1991
    %v1993 = vpop.f32.mrf.mxu0
    %v1994 = vadd.f32 %v1975, %v1993
    %1995 = vmatmul.bf16.gmra.mxu0 %v1809
    %v1996 = vpop.f32.mrf.mxu0
    %v1997 = vadd.f32 %v1978, %v1996
    %v1998 = vpop.f32.mrf.mxu0
    %v1999 = vadd.f32 %v1980, %v1998
    %2000 = vdwg.mxu0
    %2001 = vmatpush.bf16.msra.mxu0 %v1732
    %2002 = vmatpush.bf16.msra.mxu0 %v1725
    %2003 = vmatpush.bf16.msra.mxu0 %v1718
    %2004 = vmatpush.bf16.msra.mxu0 %v1711
    %2005 = vmatpush.bf16.msra.mxu0 %v1704
    %2006 = vmatpush.bf16.msra.mxu0 %v1697
    %2007 = vmatpush.bf16.msra.mxu0 %v1690
    %2008 = vmatpush.bf16.msra.mxu0 %v1683
    %2009 = vmatmul.bf16.gmra.mxu0 %v1474
    %v2010 = vpop.f32.mrf.mxu0
    %v2011 = vadd.f32 %v1445, %v2010
    %v2012 = vpop.f32.mrf.mxu0
    %v2013 = vadd.f32 %v1450, %v2012
    %2014 = vmatmul.bf16.gmra.mxu0 %v1476
    %v2015 = vpop.f32.mrf.mxu0
    %v2016 = vadd.f32 %v1455, %v2015
    %v2017 = vpop.f32.mrf.mxu0
    %v2018 = vadd.f32 %v1460, %v2017
    %2019 = vdwg.mxu0
    %2020 = vmatpush.bf16.msra.mxu0 0
    %2021 = vmatpush.bf16.msra.mxu0 0
    %2022 = vmatpush.bf16.msra.mxu0 0
    %2023 = vmatpush.bf16.msra.mxu0 0
    %2024 = vmatpush.bf16.msra.mxu0 0
    %2025 = vmatpush.bf16.msra.mxu0 0
    %2026 = vmatpush.bf16.msra.mxu0 0
    %2027 = vmatpush.bf16.msra.mxu0 %v1739
    %2028 = vmatmul.bf16.gmra.mxu0 %v1806
    %v2029 = vpop.f32.mrf.mxu0
    %v2030 = vadd.f32 %v2011, %v2029
    %v2031 = vpop.f32.mrf.mxu0
    %v2032 = vadd.f32 %v2013, %v2031
    %2033 = vmatmul.bf16.gmra.mxu0 %v1809
    %v2034 = vpop.f32.mrf.mxu0
    %v2035 = vadd.f32 %v2016, %v2034
    %v2036 = vpop.f32.mrf.mxu0
    %v2037 = vadd.f32 %v2018, %v2036
    %2038 = vdwg.mxu0
    %2039 = vmatpush.bf16.msra.mxu0 %v1733
    %2040 = vmatpush.bf16.msra.mxu0 %v1726
    %2041 = vmatpush.bf16.msra.mxu0 %v1719
    %2042 = vmatpush.bf16.msra.mxu0 %v1712
    %2043 = vmatpush.bf16.msra.mxu0 %v1705
    %2044 = vmatpush.bf16.msra.mxu0 %v1698
    %2045 = vmatpush.bf16.msra.mxu0 %v1691
    %2046 = vmatpush.bf16.msra.mxu0 %v1684
    %2047 = vmatmul.bf16.gmra.mxu0 %v1474
    %v2048 = vpop.f32.mrf.mxu0
    %v2049 = vadd.f32 %v1445, %v2048
    %v2050 = vpop.f32.mrf.mxu0
    %v2051 = vadd.f32 %v1450, %v2050
    %2052 = vmatmul.bf16.gmra.mxu0 %v1476
    %v2053 = vpop.f32.mrf.mxu0
    %v2054 = vadd.f32 %v1455, %v2053
    %v2055 = vpop.f32.mrf.mxu0
    %v2056 = vadd.f32 %v1460, %v2055
    %2057 = vdwg.mxu0
    %2058 = vmatpush.bf16.msra.mxu0 0
    %2059 = vmatpush.bf16.msra.mxu0 0
    %2060 = vmatpush.bf16.msra.mxu0 0
    %2061 = vmatpush.bf16.msra.mxu0 0
    %2062 = vmatpush.bf16.msra.mxu0 0
    %2063 = vmatpush.bf16.msra.mxu0 0
    %2064 = vmatpush.bf16.msra.mxu0 0
    %2065 = vmatpush.bf16.msra.mxu0 %v1740
    %2066 = vmatmul.bf16.gmra.mxu0 %v1806
    %v2067 = vpop.f32.mrf.mxu0
    %v2068 = vadd.f32 %v2049, %v2067
    %v2069 = vpop.f32.mrf.mxu0
    %v2070 = vadd.f32 %v2051, %v2069
    %2071 = vmatmul.bf16.gmra.mxu0 %v1809
    %v2072 = vpop.f32.mrf.mxu0
    %v2073 = vadd.f32 %v2054, %v2072
    %v2074 = vpop.f32.mrf.mxu0
    %v2075 = vadd.f32 %v2056, %v2074
    %2076 = vdwg.mxu0
    %v2077 = vmax.f32 %v1840, 0.0
    %v2078 = vmax.f32 %v1878, 0.0
    %v2079 = vmax.f32 %v1916, 0.0
    %v2080 = vmax.f32 %v1954, 0.0
    %v2081 = vmax.f32 %v1992, 0.0
    %v2082 = vmax.f32 %v2030, 0.0
    %v2083 = vmax.f32 %v2068, 0.0
    %v2084 = vmax.f32 %v1842, 0.0
    %v2085 = vmax.f32 %v1880, 0.0
    %v2086 = vmax.f32 %v1918, 0.0
    %v2087 = vmax.f32 %v1956, 0.0
    %v2088 = vmax.f32 %v1994, 0.0
    %v2089 = vmax.f32 %v2032, 0.0
    %v2090 = vmax.f32 %v2070, 0.0
    %v2091 = vmax.f32 %v1845, 0.0
    %v2092 = vmax.f32 %v1883, 0.0
    %v2093 = vmax.f32 %v1921, 0.0
    %v2094 = vmax.f32 %v1959, 0.0
    %v2095 = vmax.f32 %v1997, 0.0
    %v2096 = vmax.f32 %v2035, 0.0
    %v2097 = vmax.f32 %v2073, 0.0
    %v2098 = vmax.f32 %v1847, 0.0
    %v2099 = vmax.f32 %v1885, 0.0
    %v2100 = vmax.f32 %v1923, 0.0
    %v2101 = vmax.f32 %v1961, 0.0
    %v2102 = vmax.f32 %v1999, 0.0
    %v2103 = vmax.f32 %v2037, 0.0
    %v2104 = vmax.f32 %v2075, 0.0
    %2105 = vrot.lane.b32.xlu0 %v2077, 126
    %v2106 = vpop.permute.xlu0 %2105
    %2107 = vrot.lane.b32.xlu0 %v2084, 126
    %v2108 = vpop.permute.xlu0 %2107
    %2109 = vrot.lane.b32.xlu0 %v2091, 126
    %v2110 = vpop.permute.xlu0 %2109
    %2111 = vrot.lane.b32.xlu0 %v2098, 126
    %v2112 = vpop.permute.xlu0 %2111
    %2113 = vrot.lane.b32.xlu0 %v2078, 126
    %v2114 = vpop.permute.xlu0 %2113
    %2115 = vrot.lane.b32.xlu0 %v2085, 126
    %v2116 = vpop.permute.xlu0 %2115
    %2117 = vrot.lane.b32.xlu0 %v2092, 126
    %v2118 = vpop.permute.xlu0 %2117
    %2119 = vrot.lane.b32.xlu0 %v2099, 126
    %v2120 = vpop.permute.xlu0 %2119
    %2121 = vrot.lane.b32.xlu0 %v2079, 126
    %v2122 = vpop.permute.xlu0 %2121
    %2123 = vrot.lane.b32.xlu0 %v2086, 126
    %v2124 = vpop.permute.xlu0 %2123
    %2125 = vrot.lane.b32.xlu0 %v2093, 126
    %v2126 = vpop.permute.xlu0 %2125
    %2127 = vrot.lane.b32.xlu0 %v2100, 126
    %v2128 = vpop.permute.xlu0 %2127
    %2129 = vrot.lane.b32.xlu0 %v2080, 126
    %v2130 = vpop.permute.xlu0 %2129
    %2131 = vrot.lane.b32.xlu0 %v2087, 126
    %v2132 = vpop.permute.xlu0 %2131
    %2133 = vrot.lane.b32.xlu0 %v2094, 126
    %v2134 = vpop.permute.xlu0 %2133
    %2135 = vrot.lane.b32.xlu0 %v2101, 126
    %v2136 = vpop.permute.xlu0 %2135
    %2137 = vrot.lane.b32.xlu0 %v2081, 126
    %v2138 = vpop.permute.xlu0 %2137
    %2139 = vrot.lane.b32.xlu0 %v2088, 126
    %v2140 = vpop.permute.xlu0 %2139
    %2141 = vrot.lane.b32.xlu0 %v2095, 126
    %v2142 = vpop.permute.xlu0 %2141
    %2143 = vrot.lane.b32.xlu0 %v2102, 126
    %v2144 = vpop.permute.xlu0 %2143
    %2145 = vrot.lane.b32.xlu0 %v2082, 126
    %v2146 = vpop.permute.xlu0 %2145
    %2147 = vrot.lane.b32.xlu0 %v2089, 126
    %v2148 = vpop.permute.xlu0 %2147
    %2149 = vrot.lane.b32.xlu0 %v2096, 126
    %v2150 = vpop.permute.xlu0 %2149
    %2151 = vrot.lane.b32.xlu0 %v2103, 126
    %v2152 = vpop.permute.xlu0 %2151
    %2153 = vrot.lane.b32.xlu0 %v2083, 126
    %v2154 = vpop.permute.xlu0 %2153
    %2155 = vrot.lane.b32.xlu0 %v2090, 126
    %v2156 = vpop.permute.xlu0 %2155
    %2157 = vrot.lane.b32.xlu0 %v2097, 126
    %v2158 = vpop.permute.xlu0 %2157
    %2159 = vrot.lane.b32.xlu0 %v2104, 126
    %v2160 = vpop.permute.xlu0 %2159
    %v2161 = vsel %vm1154, %v2146, %v2154
    %v2162 = vsel %vm1154, %v2148, %v2156
    %v2163 = vsel %vm1154, %v2150, %v2158
    %v2164 = vsel %vm1154, %v2152, %v2160
    %v2165 = vsel %vm1154, %v2138, %v2146
    %v2166 = vsel %vm1154, %v2140, %v2148
    %v2167 = vsel %vm1154, %v2142, %v2150
    %v2168 = vsel %vm1154, %v2144, %v2152
    %v2169 = vsel %vm1154, %v2130, %v2138
    %v2170 = vsel %vm1154, %v2132, %v2140
    %v2171 = vsel %vm1154, %v2134, %v2142
    %v2172 = vsel %vm1154, %v2136, %v2144
    %v2173 = vsel %vm1154, %v2122, %v2130
    %v2174 = vsel %vm1154, %v2124, %v2132
    %v2175 = vsel %vm1154, %v2126, %v2134
    %v2176 = vsel %vm1154, %v2128, %v2136
    %v2177 = vsel %vm1154, %v2114, %v2122
    %v2178 = vsel %vm1154, %v2116, %v2124
    %v2179 = vsel %vm1154, %v2118, %v2126
    %v2180 = vsel %vm1154, %v2120, %v2128
    %v2181 = vsel %vm1154, %v2106, %v2114
    %v2182 = vsel %vm1154, %v2108, %v2116
    %v2183 = vsel %vm1154, %v2110, %v2118
    %v2184 = vsel %vm1154, %v2112, %v2120
    %v2185 = vsel %vm1154, %v2154, %v2106
    %v2186 = vsel %vm1154, %v2156, %v2108
    %v2187 = vsel %vm1154, %v2158, %v2110
    %v2188 = vsel %vm1154, %v2160, %v2112
    %v2189 = vmax.f32 %v2077, %v2181
    %v2190 = vmax.f32 %v2078, %v2177
    %v2191 = vmax.f32 %v2079, %v2173
    %v2192 = vmax.f32 %v2080, %v2169
    %v2193 = vmax.f32 %v2081, %v2165
    %v2194 = vmax.f32 %v2082, %v2161
    %v2195 = vmax.f32 %v2083, %v2185
    %v2196 = vmax.f32 %v2084, %v2182
    %v2197 = vmax.f32 %v2085, %v2178
    %v2198 = vmax.f32 %v2086, %v2174
    %v2199 = vmax.f32 %v2087, %v2170
    %v2200 = vmax.f32 %v2088, %v2166
    %v2201 = vmax.f32 %v2089, %v2162
    %v2202 = vmax.f32 %v2090, %v2186
    %v2203 = vmax.f32 %v2091, %v2183
    %v2204 = vmax.f32 %v2092, %v2179
    %v2205 = vmax.f32 %v2093, %v2175
    %v2206 = vmax.f32 %v2094, %v2171
    %v2207 = vmax.f32 %v2095, %v2167
    %v2208 = vmax.f32 %v2096, %v2163
    %v2209 = vmax.f32 %v2097, %v2187
    %v2210 = vmax.f32 %v2098, %v2184
    %v2211 = vmax.f32 %v2099, %v2180
    %v2212 = vmax.f32 %v2100, %v2176
    %v2213 = vmax.f32 %v2101, %v2172
    %v2214 = vmax.f32 %v2102, %v2168
    %v2215 = vmax.f32 %v2103, %v2164
    %v2216 = vmax.f32 %v2104, %v2188
    %2217 = vrot.lane.b32.xlu0 %v2189, 68
    %v2218 = vpop.permute.xlu0 %2217
    %2219 = vrot.lane.b32.xlu0 %v2196, 68
    %v2220 = vpop.permute.xlu0 %2219
    %2221 = vrot.lane.b32.xlu0 %v2203, 68
    %v2222 = vpop.permute.xlu0 %2221
    %2223 = vrot.lane.b32.xlu0 %v2210, 68
    %v2224 = vpop.permute.xlu0 %2223
    %2225 = vrot.lane.b32.xlu0 %v2190, 68
    %v2226 = vpop.permute.xlu0 %2225
    %2227 = vrot.lane.b32.xlu0 %v2197, 68
    %v2228 = vpop.permute.xlu0 %2227
    %2229 = vrot.lane.b32.xlu0 %v2204, 68
    %v2230 = vpop.permute.xlu0 %2229
    %2231 = vrot.lane.b32.xlu0 %v2211, 68
    %v2232 = vpop.permute.xlu0 %2231
    %2233 = vrot.lane.b32.xlu0 %v2191, 68
    %v2234 = vpop.permute.xlu0 %2233
    %2235 = vrot.lane.b32.xlu0 %v2198, 68
    %v2236 = vpop.permute.xlu0 %2235
    %2237 = vrot.lane.b32.xlu0 %v2205, 68
    %v2238 = vpop.permute.xlu0 %2237
    %2239 = vrot.lane.b32.xlu0 %v2212, 68
    %v2240 = vpop.permute.xlu0 %2239
    %2241 = vrot.lane.b32.xlu0 %v2192, 68
    %v2242 = vpop.permute.xlu0 %2241
    %2243 = vrot.lane.b32.xlu0 %v2199, 68
    %v2244 = vpop.permute.xlu0 %2243
    %2245 = vrot.lane.b32.xlu0 %v2206, 68
    %v2246 = vpop.permute.xlu0 %2245
    %2247 = vrot.lane.b32.xlu0 %v2213, 68
    %v2248 = vpop.permute.xlu0 %2247
    %2249 = vrot.lane.b32.xlu0 %v2193, 68
    %v2250 = vpop.permute.xlu0 %2249
    %2251 = vrot.lane.b32.xlu0 %v2200, 68
    %v2252 = vpop.permute.xlu0 %2251
    %2253 = vrot.lane.b32.xlu0 %v2207, 68
    %v2254 = vpop.permute.xlu0 %2253
    %2255 = vrot.lane.b32.xlu0 %v2214, 68
    %v2256 = vpop.permute.xlu0 %2255
    %2257 = vrot.lane.b32.xlu0 %v2194, 68
    %v2258 = vpop.permute.xlu0 %2257
    %2259 = vrot.lane.b32.xlu0 %v2201, 68
    %v2260 = vpop.permute.xlu0 %2259
    %2261 = vrot.lane.b32.xlu0 %v2208, 68
    %v2262 = vpop.permute.xlu0 %2261
    %2263 = vrot.lane.b32.xlu0 %v2215, 68
    %v2264 = vpop.permute.xlu0 %2263
    %2265 = vrot.lane.b32.xlu0 %v2195, 68
    %v2266 = vpop.permute.xlu0 %2265
    %2267 = vrot.lane.b32.xlu0 %v2202, 68
    %v2268 = vpop.permute.xlu0 %2267
    %2269 = vrot.lane.b32.xlu0 %v2209, 68
    %v2270 = vpop.permute.xlu0 %2269
    %2271 = vrot.lane.b32.xlu0 %v2216, 68
    %v2272 = vpop.permute.xlu0 %2271
    %v2273 = vsel %vm1272, %v2258, %v2266
    %v2274 = vsel %vm1272, %v2260, %v2268
    %v2275 = vsel %vm1272, %v2262, %v2270
    %v2276 = vsel %vm1272, %v2264, %v2272
    %v2277 = vsel %vm1272, %v2250, %v2258
    %v2278 = vsel %vm1272, %v2252, %v2260
    %v2279 = vsel %vm1272, %v2254, %v2262
    %v2280 = vsel %vm1272, %v2256, %v2264
    %v2281 = vsel %vm1272, %v2242, %v2250
    %v2282 = vsel %vm1272, %v2244, %v2252
    %v2283 = vsel %vm1272, %v2246, %v2254
    %v2284 = vsel %vm1272, %v2248, %v2256
    %v2285 = vsel %vm1272, %v2234, %v2242
    %v2286 = vsel %vm1272, %v2236, %v2244
    %v2287 = vsel %vm1272, %v2238, %v2246
    %v2288 = vsel %vm1272, %v2240, %v2248
    %v2289 = vsel %vm1272, %v2226, %v2234
    %v2290 = vsel %vm1272, %v2228, %v2236
    %v2291 = vsel %vm1272, %v2230, %v2238
    %v2292 = vsel %vm1272, %v2232, %v2240
    %v2293 = vsel %vm1272, %v2218, %v2226
    %v2294 = vsel %vm1272, %v2220, %v2228
    %v2295 = vsel %vm1272, %v2222, %v2230
    %v2296 = vsel %vm1272, %v2224, %v2232
    %v2297 = vsel %vm1272, %v2266, %v2218
    %v2298 = vsel %vm1272, %v2268, %v2220
    %v2299 = vsel %vm1272, %v2270, %v2222
    %v2300 = vsel %vm1272, %v2272, %v2224
    %v2301 = vmax.f32 %v2189, %v2293
    %v2302 = vmax.f32 %v2190, %v2289
    %v2303 = vmax.f32 %v2191, %v2285
    %v2304 = vmax.f32 %v2192, %v2281
    %v2305 = vmax.f32 %v2193, %v2277
    %v2306 = vmax.f32 %v2194, %v2273
    %v2307 = vmax.f32 %v2195, %v2297
    %v2308 = vmax.f32 %v2196, %v2294
    %v2309 = vmax.f32 %v2197, %v2290
    %v2310 = vmax.f32 %v2198, %v2286
    %v2311 = vmax.f32 %v2199, %v2282
    %v2312 = vmax.f32 %v2200, %v2278
    %v2313 = vmax.f32 %v2201, %v2274
    %v2314 = vmax.f32 %v2202, %v2298
    %v2315 = vmax.f32 %v2203, %v2295
    %v2316 = vmax.f32 %v2204, %v2291
    %v2317 = vmax.f32 %v2205, %v2287
    %v2318 = vmax.f32 %v2206, %v2283
    %v2319 = vmax.f32 %v2207, %v2279
    %v2320 = vmax.f32 %v2208, %v2275
    %v2321 = vmax.f32 %v2209, %v2299
    %v2322 = vmax.f32 %v2210, %v2296
    %v2323 = vmax.f32 %v2211, %v2292
    %v2324 = vmax.f32 %v2212, %v2288
    %v2325 = vmax.f32 %v2213, %v2284
    %v2326 = vmax.f32 %v2214, %v2280
    %v2327 = vmax.f32 %v2215, %v2276
    %v2328 = vmax.f32 %v2216, %v2300
    %v2329 = vpack.c.bf16 %v2308, %v2301
    %v2330 = vpack.c.bf16 %v2309, %v2302
    %v2331 = vpack.c.bf16 %v2310, %v2303
    %v2332 = vpack.c.bf16 %v2311, %v2304
    %v2333 = vpack.c.bf16 %v2312, %v2305
    %v2334 = vpack.c.bf16 %v2313, %v2306
    %v2335 = vpack.c.bf16 %v2314, %v2307
    %v2336 = vpack.c.bf16 %v2322, %v2315
    %v2337 = vpack.c.bf16 %v2323, %v2316
    %v2338 = vpack.c.bf16 %v2324, %v2317
    %v2339 = vpack.c.bf16 %v2325, %v2318
    %v2340 = vpack.c.bf16 %v2326, %v2319
    %v2341 = vpack.c.bf16 %v2327, %v2320
    %v2342 = vpack.c.bf16 %v2328, %v2321
    %v2343 = vld [vmem:[%s3] sm:$0xf]
    %v2344 = vld [vmem:[%s3 + $0x4] sm:$0xf]
    %v2345 = vld [vmem:[%s3 + $0x8] sm:$0xf]
    %v2346 = vld [vmem:[%s3 + $0xc] sm:$0xf]
    %v2347 = vld [vmem:[%s3 + $0x10] sm:$0xf]
    %v2348 = vld [vmem:[%s3 + $0x14] sm:$0xf]
    %v2349 = vld [vmem:[%s3 + $0x18] sm:$0xf]
    %v2350 = vld [vmem:[%s3 + $0x1c] sm:$0xf]
    %v2351 = vld [vmem:[%s3 + $0x20] sm:$0xf]
    %v2352 = vld [vmem:[%s3 + $0x24] sm:$0xf]
    %v2353 = vld [vmem:[%s3 + $0x28] sm:$0xf]
    %v2354 = vld [vmem:[%s3 + $0x2c] sm:$0xf]
    %v2355 = vld [vmem:[%s3 + $0x30] sm:$0xf]
    %v2356 = vld [vmem:[%s3 + $0x34] sm:$0xf]
    %v2357 = vld [vmem:[%s3 + $0x38] sm:$0xf]
    %v2358 = vld [vmem:[%s3 + $0x3c] sm:$0xf]
    %v2359 = vld [vmem:[%s3 + $0x40] sm:$0xf]
    %v2360 = vld [vmem:[%s3 + $0x44] sm:$0xf]
    %v2361 = vld [vmem:[%s3 + $0x48] sm:$0xf]
    %v2362 = vld [vmem:[%s3 + $0x4c] sm:$0xf]
    %v2363 = vld [vmem:[%s3 + $0x50] sm:$0xf]
    %v2364 = vld [vmem:[%s3 + $0x54] sm:$0xf]
    %v2365 = vld [vmem:[%s3 + $0x58] sm:$0xf]
    %v2366 = vld [vmem:[%s3 + $0x5c] sm:$0xf]
    %v2367 = vld [vmem:[%s3 + $0x60] sm:$0xf]
    %v2368 = vld [vmem:[%s3 + $0x64] sm:$0xf]
    %v2369 = vld [vmem:[%s3 + $0x68] sm:$0xf]
    %v2370 = vld [vmem:[%s3 + $0x6c] sm:$0xf]
    %v2371 = vld [vmem:[%s3 + $0x70] sm:$0xf]
    %v2372 = vld [vmem:[%s3 + $0x74] sm:$0xf]
    %v2373 = vld [vmem:[%s3 + $0x78] sm:$0xf]
    %v2374 = vld [vmem:[%s3 + $0x7c] sm:$0xf]
    %v2375 = vld [vmem:[%s3 + $0x80] sm:$0xf]
    %v2376 = vld [vmem:[%s3 + $0x84] sm:$0xf]
    %v2377 = vld [vmem:[%s3 + $0x88] sm:$0xf]
    %v2378 = vld [vmem:[%s3 + $0x8c] sm:$0xf]
    %v2379 = vld [vmem:[%s3 + $0x90] sm:$0xf]
    %v2380 = vld [vmem:[%s3 + $0x94] sm:$0xf]
    %v2381 = vld [vmem:[%s3 + $0x98] sm:$0xf]
    %v2382 = vld [vmem:[%s3 + $0x9c] sm:$0xf]
    %v2383 = vld [vmem:[%s3 + $0xa0] sm:$0xf]
    %v2384 = vld [vmem:[%s3 + $0xa4] sm:$0xf]
    %v2385 = vld [vmem:[%s3 + $0xa8] sm:$0xf]
    %v2386 = vld [vmem:[%s3 + $0xac] sm:$0xf]
    %v2387 = vld [vmem:[%s3 + $0xb0] sm:$0xf]
    %v2388 = vld [vmem:[%s3 + $0xb4] sm:$0xf]
    %v2389 = vld [vmem:[%s3 + $0xb8] sm:$0xf]
    %v2390 = vld [vmem:[%s3 + $0xbc] sm:$0xf]
    %v2391 = vld [vmem:[%s3 + $0xc0] sm:$0xf]
    %v2392 = vld [vmem:[%s3 + $0xc4] sm:$0xf]
    %v2393 = vld [vmem:[%s3 + $0xc8] sm:$0xf]
    %v2394 = vld [vmem:[%s3 + $0xcc] sm:$0xf]
    %v2395 = vld [vmem:[%s3 + $0xd0] sm:$0xf]
    %v2396 = vld [vmem:[%s3 + $0xd4] sm:$0xf]
    %v2397 = vld [vmem:[%s3 + $0xd8] sm:$0xf]
    %v2398 = vld [vmem:[%s3 + $0xdc] sm:$0xf]
    %v2399 = vld [vmem:[%s3 + $0xe0] sm:$0xf]
    %v2400 = vld [vmem:[%s3 + $0xe4] sm:$0xf]
    %v2401 = vld [vmem:[%s3 + $0xe8] sm:$0xf]
    %v2402 = vld [vmem:[%s3 + $0xec] sm:$0xf]
    %v2403 = vld [vmem:[%s3 + $0xf0] sm:$0xf]
    %v2404 = vld [vmem:[%s3 + $0xf4] sm:$0xf]
    %v2405 = vld [vmem:[%s3 + $0xf8] sm:$0xf]
    %v2406 = vld [vmem:[%s3 + $0xfc] sm:$0xf]
    %v2407 = vld [vmem:[%s3 + $0x100] sm:$0xf]
    %v2408 = vld [vmem:[%s3 + $0x104] sm:$0xf]
    %v2409 = vld [vmem:[%s3 + $0x108] sm:$0xf]
    %v2410 = vld [vmem:[%s3 + $0x10c] sm:$0xf]
    %v2411 = vld [vmem:[%s3 + $0x110] sm:$0xf]
    %v2412 = vld [vmem:[%s3 + $0x114] sm:$0xf]
    %v2413 = vld [vmem:[%s3 + $0x118] sm:$0xf]
    %v2414 = vld [vmem:[%s3 + $0x11c] sm:$0xf]
    %v2415 = vld [vmem:[%s3 + $0x120] sm:$0xf]
    %v2416 = vld [vmem:[%s3 + $0x124] sm:$0xf]
    %v2417 = vld [vmem:[%s3 + $0x128] sm:$0xf]
    %v2418 = vld [vmem:[%s3 + $0x12c] sm:$0xf]
    %v2419 = vld [vmem:[%s3 + $0x130] sm:$0xf]
    %v2420 = vld [vmem:[%s3 + $0x134] sm:$0xf]
    %v2421 = vld [vmem:[%s3 + $0x138] sm:$0xf]
    %v2422 = vld [vmem:[%s3 + $0x13c] sm:$0xf]
    %v2423 = vld [vmem:[%s3 + $0x140] sm:$0xf]
    %v2424 = vld [vmem:[%s3 + $0x144] sm:$0xf]
    %v2425 = vld [vmem:[%s3 + $0x148] sm:$0xf]
    %v2426 = vld [vmem:[%s3 + $0x14c] sm:$0xf]
    %v2427 = vld [vmem:[%s3 + $0x150] sm:$0xf]
    %v2428 = vld [vmem:[%s3 + $0x154] sm:$0xf]
    %v2429 = vld [vmem:[%s3 + $0x158] sm:$0xf]
    %v2430 = vld [vmem:[%s3 + $0x15c] sm:$0xf]
    %v2431 = vld [vmem:[%s3 + $0x160] sm:$0xf]
    %v2432 = vld [vmem:[%s3 + $0x164] sm:$0xf]
    %v2433 = vld [vmem:[%s3 + $0x168] sm:$0xf]
    %v2434 = vld [vmem:[%s3 + $0x16c] sm:$0xf]
    %v2435 = vld [vmem:[%s3 + $0x170] sm:$0xf]
    %v2436 = vld [vmem:[%s3 + $0x174] sm:$0xf]
    %v2437 = vld [vmem:[%s3 + $0x178] sm:$0xf]
    %v2438 = vld [vmem:[%s3 + $0x17c] sm:$0xf]
    %v2439 = vld [vmem:[%s3 + $0x180] sm:$0xf]
    %v2440 = vld [vmem:[%s3 + $0x184] sm:$0xf]
    %v2441 = vld [vmem:[%s3 + $0x188] sm:$0xf]
    %v2442 = vld [vmem:[%s3 + $0x18c] sm:$0xf]
    %v2443 = vld [vmem:[%s3 + $0x190] sm:$0xf]
    %v2444 = vld [vmem:[%s3 + $0x194] sm:$0xf]
    %v2445 = vld [vmem:[%s3 + $0x198] sm:$0xf]
    %v2446 = vld [vmem:[%s3 + $0x19c] sm:$0xf]
    %v2447 = vld [vmem:[%s3 + $0x1a0] sm:$0xf]
    %v2448 = vld [vmem:[%s3 + $0x1a4] sm:$0xf]
    %v2449 = vld [vmem:[%s3 + $0x1a8] sm:$0xf]
    %v2450 = vld [vmem:[%s3 + $0x1ac] sm:$0xf]
    %v2451 = vld [vmem:[%s3 + $0x1b0] sm:$0xf]
    %v2452 = vld [vmem:[%s3 + $0x1b4] sm:$0xf]
    %v2453 = vld [vmem:[%s3 + $0x1b8] sm:$0xf]
    %v2454 = vld [vmem:[%s3 + $0x1bc] sm:$0xf]
    %v2567 = vunpack.c.l.b16 %v2343
    %v2568 = vunpack.c.l.b16 %v2344
    %v2569 = vunpack.c.l.b16 %v2345
    %v2570 = vunpack.c.l.b16 %v2346
    %v2571 = vunpack.c.l.b16 %v2347
    %v2572 = vunpack.c.l.b16 %v2348
    %v2573 = vunpack.c.l.b16 %v2349
    %v2574 = vunpack.c.l.b16 %v2350
    %v2575 = vunpack.c.l.b16 %v2351
    %v2576 = vunpack.c.l.b16 %v2352
    %v2577 = vunpack.c.l.b16 %v2353
    %v2578 = vunpack.c.l.b16 %v2354
    %v2579 = vunpack.c.l.b16 %v2355
    %v2580 = vunpack.c.l.b16 %v2356
    %v2581 = vunpack.c.l.b16 %v2357
    %v2582 = vunpack.c.l.b16 %v2358
    %v2583 = vunpack.c.l.b16 %v2359
    %v2584 = vunpack.c.l.b16 %v2360
    %v2585 = vunpack.c.l.b16 %v2361
    %v2586 = vunpack.c.l.b16 %v2362
    %v2587 = vunpack.c.l.b16 %v2363
    %v2588 = vunpack.c.l.b16 %v2364
    %v2589 = vunpack.c.l.b16 %v2365
    %v2590 = vunpack.c.l.b16 %v2366
    %v2591 = vunpack.c.l.b16 %v2367
    %v2592 = vunpack.c.l.b16 %v2368
    %v2593 = vunpack.c.l.b16 %v2369
    %v2594 = vunpack.c.l.b16 %v2370
    %v2595 = vunpack.c.l.b16 %v2371
    %v2596 = vunpack.c.l.b16 %v2372
    %v2597 = vunpack.c.l.b16 %v2373
    %v2598 = vunpack.c.l.b16 %v2374
    %v2599 = vunpack.c.l.b16 %v2375
    %v2600 = vunpack.c.l.b16 %v2376
    %v2601 = vunpack.c.l.b16 %v2377
    %v2602 = vunpack.c.l.b16 %v2378
    %v2603 = vunpack.c.l.b16 %v2379
    %v2604 = vunpack.c.l.b16 %v2380
    %v2605 = vunpack.c.l.b16 %v2381
    %v2606 = vunpack.c.l.b16 %v2382
    %v2607 = vunpack.c.l.b16 %v2383
    %v2608 = vunpack.c.l.b16 %v2384
    %v2609 = vunpack.c.l.b16 %v2385
    %v2610 = vunpack.c.l.b16 %v2386
    %v2611 = vunpack.c.l.b16 %v2387
    %v2612 = vunpack.c.l.b16 %v2388
    %v2613 = vunpack.c.l.b16 %v2389
    %v2614 = vunpack.c.l.b16 %v2390
    %v2615 = vunpack.c.l.b16 %v2391
    %v2616 = vunpack.c.l.b16 %v2392
    %v2617 = vunpack.c.l.b16 %v2393
    %v2618 = vunpack.c.l.b16 %v2394
    %v2619 = vunpack.c.l.b16 %v2395
    %v2620 = vunpack.c.l.b16 %v2396
    %v2621 = vunpack.c.l.b16 %v2397
    %v2622 = vunpack.c.l.b16 %v2398
    %v2623 = vunpack.c.l.b16 %v2399
    %v2624 = vunpack.c.l.b16 %v2400
    %v2625 = vunpack.c.l.b16 %v2401
    %v2626 = vunpack.c.l.b16 %v2402
    %v2627 = vunpack.c.l.b16 %v2403
    %v2628 = vunpack.c.l.b16 %v2404
    %v2629 = vunpack.c.l.b16 %v2405
    %v2630 = vunpack.c.l.b16 %v2406
    %v2631 = vunpack.c.l.b16 %v2407
    %v2632 = vunpack.c.l.b16 %v2408
    %v2633 = vunpack.c.l.b16 %v2409
    %v2634 = vunpack.c.l.b16 %v2410
    %v2635 = vunpack.c.l.b16 %v2411
    %v2636 = vunpack.c.l.b16 %v2412
    %v2637 = vunpack.c.l.b16 %v2413
    %v2638 = vunpack.c.l.b16 %v2414
    %v2639 = vunpack.c.l.b16 %v2415
    %v2640 = vunpack.c.l.b16 %v2416
    %v2641 = vunpack.c.l.b16 %v2417
    %v2642 = vunpack.c.l.b16 %v2418
    %v2643 = vunpack.c.l.b16 %v2419
    %v2644 = vunpack.c.l.b16 %v2420
    %v2645 = vunpack.c.l.b16 %v2421
    %v2646 = vunpack.c.l.b16 %v2422
    %v2647 = vunpack.c.l.b16 %v2423
    %v2648 = vunpack.c.l.b16 %v2424
    %v2649 = vunpack.c.l.b16 %v2425
    %v2650 = vunpack.c.l.b16 %v2426
    %v2651 = vunpack.c.l.b16 %v2427
    %v2652 = vunpack.c.l.b16 %v2428
    %v2653 = vunpack.c.l.b16 %v2429
    %v2654 = vunpack.c.l.b16 %v2430
    %v2655 = vunpack.c.l.b16 %v2431
    %v2656 = vunpack.c.l.b16 %v2432
    %v2657 = vunpack.c.l.b16 %v2433
    %v2658 = vunpack.c.l.b16 %v2434
    %v2659 = vunpack.c.l.b16 %v2435
    %v2660 = vunpack.c.l.b16 %v2436
    %v2661 = vunpack.c.l.b16 %v2437
    %v2662 = vunpack.c.l.b16 %v2438
    %v2663 = vunpack.c.l.b16 %v2439
    %v2664 = vunpack.c.l.b16 %v2440
    %v2665 = vunpack.c.l.b16 %v2441
    %v2666 = vunpack.c.l.b16 %v2442
    %v2667 = vunpack.c.l.b16 %v2443
    %v2668 = vunpack.c.l.b16 %v2444
    %v2669 = vunpack.c.l.b16 %v2445
    %v2670 = vunpack.c.l.b16 %v2446
    %v2671 = vunpack.c.l.b16 %v2447
    %v2672 = vunpack.c.l.b16 %v2448
    %v2673 = vunpack.c.l.b16 %v2449
    %v2674 = vunpack.c.l.b16 %v2450
    %v2675 = vunpack.c.l.b16 %v2451
    %v2676 = vunpack.c.l.b16 %v2452
    %v2677 = vunpack.c.l.b16 %v2453
    %v2678 = vunpack.c.l.b16 %v2454
    %v2679 = vpack.c.b16 %v2568, %v2567
    %v2680 = vpack.c.b16 %v2570, %v2569
    %v2681 = vpack.c.b16 %v2572, %v2571
    %v2682 = vpack.c.b16 %v2574, %v2573
    %v2683 = vpack.c.b16 %v2576, %v2575
    %v2684 = vpack.c.b16 %v2578, %v2577
    %v2685 = vpack.c.b16 %v2580, %v2579
    %v2686 = vpack.c.b16 %v2582, %v2581
    %v2687 = vpack.c.b16 %v2584, %v2583
    %v2688 = vpack.c.b16 %v2586, %v2585
    %v2689 = vpack.c.b16 %v2588, %v2587
    %v2690 = vpack.c.b16 %v2590, %v2589
    %v2691 = vpack.c.b16 %v2592, %v2591
    %v2692 = vpack.c.b16 %v2594, %v2593
    %v2693 = vpack.c.b16 %v2596, %v2595
    %v2694 = vpack.c.b16 %v2598, %v2597
    %v2695 = vpack.c.b16 %v2600, %v2599
    %v2696 = vpack.c.b16 %v2602, %v2601
    %v2697 = vpack.c.b16 %v2604, %v2603
    %v2698 = vpack.c.b16 %v2606, %v2605
    %v2699 = vpack.c.b16 %v2608, %v2607
    %v2700 = vpack.c.b16 %v2610, %v2609
    %v2701 = vpack.c.b16 %v2612, %v2611
    %v2702 = vpack.c.b16 %v2614, %v2613
    %v2703 = vpack.c.b16 %v2616, %v2615
    %v2704 = vpack.c.b16 %v2618, %v2617
    %v2705 = vpack.c.b16 %v2620, %v2619
    %v2706 = vpack.c.b16 %v2622, %v2621
    %v2707 = vpack.c.b16 %v2624, %v2623
    %v2708 = vpack.c.b16 %v2626, %v2625
    %v2709 = vpack.c.b16 %v2628, %v2627
    %v2710 = vpack.c.b16 %v2630, %v2629
    %v2711 = vpack.c.b16 %v2632, %v2631
    %v2712 = vpack.c.b16 %v2634, %v2633
    %v2713 = vpack.c.b16 %v2636, %v2635
    %v2714 = vpack.c.b16 %v2638, %v2637
    %v2715 = vpack.c.b16 %v2640, %v2639
    %v2716 = vpack.c.b16 %v2642, %v2641
    %v2717 = vpack.c.b16 %v2644, %v2643
    %v2718 = vpack.c.b16 %v2646, %v2645
    %v2719 = vpack.c.b16 %v2648, %v2647
    %v2720 = vpack.c.b16 %v2650, %v2649
    %v2721 = vpack.c.b16 %v2652, %v2651
    %v2722 = vpack.c.b16 %v2654, %v2653
    %v2723 = vpack.c.b16 %v2656, %v2655
    %v2724 = vpack.c.b16 %v2658, %v2657
    %v2725 = vpack.c.b16 %v2660, %v2659
    %v2726 = vpack.c.b16 %v2662, %v2661
    %v2727 = vpack.c.b16 %v2664, %v2663
    %v2728 = vpack.c.b16 %v2666, %v2665
    %v2729 = vpack.c.b16 %v2668, %v2667
    %v2730 = vpack.c.b16 %v2670, %v2669
    %v2731 = vpack.c.b16 %v2672, %v2671
    %v2732 = vpack.c.b16 %v2674, %v2673
    %v2733 = vpack.c.b16 %v2676, %v2675
    %v2734 = vpack.c.b16 %v2678, %v2677
    %2791 = vmatpush.bf16.msra.mxu0 %v2686
    %2792 = vmatpush.bf16.msra.mxu0 %v2685
    %2793 = vmatpush.bf16.msra.mxu0 %v2684
    %2794 = vmatpush.bf16.msra.mxu0 %v2683
    %2795 = vmatpush.bf16.msra.mxu0 %v2682
    %2796 = vmatpush.bf16.msra.mxu0 %v2681
    %2797 = vmatpush.bf16.msra.mxu0 %v2680
    %2798 = vmatpush.bf16.msra.mxu0 %v2679
    %2799 = vmatmul.bf16.gmra.mxu0 %v2329
    %v2800 = vpop.f32.mrf.mxu0
    %v2801 = vadd.f32 0.0, %v2800
    %v2802 = vpop.f32.mrf.mxu0
    %v2803 = vadd.f32 0.0, %v2802
    %2804 = vmatmul.bf16.gmra.mxu0 %v2336
    %v2805 = vpop.f32.mrf.mxu0
    %v2806 = vadd.f32 0.0, %v2805
    %v2807 = vpop.f32.mrf.mxu0
    %v2808 = vadd.f32 0.0, %v2807
    %2809 = vdwg.mxu0
    %2810 = vmatpush.bf16.msra.mxu0 %v2694
    %2811 = vmatpush.bf16.msra.mxu0 %v2693
    %2812 = vmatpush.bf16.msra.mxu0 %v2692
    %2813 = vmatpush.bf16.msra.mxu0 %v2691
    %2814 = vmatpush.bf16.msra.mxu0 %v2690
    %2815 = vmatpush.bf16.msra.mxu0 %v2689
    %2816 = vmatpush.bf16.msra.mxu0 %v2688
    %2817 = vmatpush.bf16.msra.mxu0 %v2687
    %2818 = vmatmul.bf16.gmra.mxu0 %v2330
    %v2819 = vpop.f32.mrf.mxu0
    %v2820 = vadd.f32 %v2801, %v2819
    %v2821 = vpop.f32.mrf.mxu0
    %v2822 = vadd.f32 %v2803, %v2821
    %2823 = vmatmul.bf16.gmra.mxu0 %v2337
    %v2824 = vpop.f32.mrf.mxu0
    %v2825 = vadd.f32 %v2806, %v2824
    %v2826 = vpop.f32.mrf.mxu0
    %v2827 = vadd.f32 %v2808, %v2826
    %2828 = vdwg.mxu0
    %2829 = vmatpush.bf16.msra.mxu0 %v2702
    %2830 = vmatpush.bf16.msra.mxu0 %v2701
    %2831 = vmatpush.bf16.msra.mxu0 %v2700
    %2832 = vmatpush.bf16.msra.mxu0 %v2699
    %2833 = vmatpush.bf16.msra.mxu0 %v2698
    %2834 = vmatpush.bf16.msra.mxu0 %v2697
    %2835 = vmatpush.bf16.msra.mxu0 %v2696
    %2836 = vmatpush.bf16.msra.mxu0 %v2695
    %2837 = vmatmul.bf16.gmra.mxu0 %v2331
    %v2838 = vpop.f32.mrf.mxu0
    %v2839 = vadd.f32 %v2820, %v2838
    %v2840 = vpop.f32.mrf.mxu0
    %v2841 = vadd.f32 %v2822, %v2840
    %2842 = vmatmul.bf16.gmra.mxu0 %v2338
    %v2843 = vpop.f32.mrf.mxu0
    %v2844 = vadd.f32 %v2825, %v2843
    %v2845 = vpop.f32.mrf.mxu0
    %v2846 = vadd.f32 %v2827, %v2845
    %2847 = vdwg.mxu0
    %2848 = vmatpush.bf16.msra.mxu0 %v2710
    %2849 = vmatpush.bf16.msra.mxu0 %v2709
    %2850 = vmatpush.bf16.msra.mxu0 %v2708
    %2851 = vmatpush.bf16.msra.mxu0 %v2707
    %2852 = vmatpush.bf16.msra.mxu0 %v2706
    %2853 = vmatpush.bf16.msra.mxu0 %v2705
    %2854 = vmatpush.bf16.msra.mxu0 %v2704
    %2855 = vmatpush.bf16.msra.mxu0 %v2703
    %2856 = vmatmul.bf16.gmra.mxu0 %v2332
    %v2857 = vpop.f32.mrf.mxu0
    %v2858 = vadd.f32 %v2839, %v2857
    %v2859 = vpop.f32.mrf.mxu0
    %v2860 = vadd.f32 %v2841, %v2859
    %2861 = vmatmul.bf16.gmra.mxu0 %v2339
    %v2862 = vpop.f32.mrf.mxu0
    %v2863 = vadd.f32 %v2844, %v2862
    %v2864 = vpop.f32.mrf.mxu0
    %v2865 = vadd.f32 %v2846, %v2864
    %2866 = vdwg.mxu0
    %2867 = vmatpush.bf16.msra.mxu0 %v2718
    %2868 = vmatpush.bf16.msra.mxu0 %v2717
    %2869 = vmatpush.bf16.msra.mxu0 %v2716
    %2870 = vmatpush.bf16.msra.mxu0 %v2715
    %2871 = vmatpush.bf16.msra.mxu0 %v2714
    %2872 = vmatpush.bf16.msra.mxu0 %v2713
    %2873 = vmatpush.bf16.msra.mxu0 %v2712
    %2874 = vmatpush.bf16.msra.mxu0 %v2711
    %2875 = vmatmul.bf16.gmra.mxu0 %v2333
    %v2876 = vpop.f32.mrf.mxu0
    %v2877 = vadd.f32 %v2858, %v2876
    %v2878 = vpop.f32.mrf.mxu0
    %v2879 = vadd.f32 %v2860, %v2878
    %2880 = vmatmul.bf16.gmra.mxu0 %v2340
    %v2881 = vpop.f32.mrf.mxu0
    %v2882 = vadd.f32 %v2863, %v2881
    %v2883 = vpop.f32.mrf.mxu0
    %v2884 = vadd.f32 %v2865, %v2883
    %2885 = vdwg.mxu0
    %2886 = vmatpush.bf16.msra.mxu0 %v2726
    %2887 = vmatpush.bf16.msra.mxu0 %v2725
    %2888 = vmatpush.bf16.msra.mxu0 %v2724
    %2889 = vmatpush.bf16.msra.mxu0 %v2723
    %2890 = vmatpush.bf16.msra.mxu0 %v2722
    %2891 = vmatpush.bf16.msra.mxu0 %v2721
    %2892 = vmatpush.bf16.msra.mxu0 %v2720
    %2893 = vmatpush.bf16.msra.mxu0 %v2719
    %2894 = vmatmul.bf16.gmra.mxu0 %v2334
    %v2895 = vpop.f32.mrf.mxu0
    %v2896 = vadd.f32 %v2877, %v2895
    %v2897 = vpop.f32.mrf.mxu0
    %v2898 = vadd.f32 %v2879, %v2897
    %2899 = vmatmul.bf16.gmra.mxu0 %v2341
    %v2900 = vpop.f32.mrf.mxu0
    %v2901 = vadd.f32 %v2882, %v2900
    %v2902 = vpop.f32.mrf.mxu0
    %v2903 = vadd.f32 %v2884, %v2902
    %2904 = vdwg.mxu0
    %2905 = vmatpush.bf16.msra.mxu0 %v2734
    %2906 = vmatpush.bf16.msra.mxu0 %v2733
    %2907 = vmatpush.bf16.msra.mxu0 %v2732
    %2908 = vmatpush.bf16.msra.mxu0 %v2731
    %2909 = vmatpush.bf16.msra.mxu0 %v2730
    %2910 = vmatpush.bf16.msra.mxu0 %v2729
    %2911 = vmatpush.bf16.msra.mxu0 %v2728
    %2912 = vmatpush.bf16.msra.mxu0 %v2727
    %2913 = vmatmul.bf16.gmra.mxu0 %v2335
    %v2914 = vpop.f32.mrf.mxu0
    %v2915 = vadd.f32 %v2896, %v2914
    %v2916 = vpop.f32.mrf.mxu0
    %v2917 = vadd.f32 %v2898, %v2916
    %2918 = vmatmul.bf16.gmra.mxu0 %v2342
    %v2919 = vpop.f32.mrf.mxu0
    %v2920 = vadd.f32 %v2901, %v2919
    %v2921 = vpop.f32.mrf.mxu0
    %v2922 = vadd.f32 %v2903, %v2921
    %2923 = vdwg.mxu0
    %v2924 = vld [vmem:[%s4] sm:$0xff]
    %v2925 = vld [vmem:[%s4 + $0x8] sm:$0xff]
    %v2926 = vld [vmem:[%s4 + $0x10] sm:$0xff]
    %v2927 = vld [vmem:[%s4 + $0x18] sm:$0xff]
    %v2928 = vld [vmem:[%s4 + $0x20] sm:$0xff]
    %v2929 = vld [vmem:[%s4 + $0x28] sm:$0xff]
    %v2930 = vld [vmem:[%s4 + $0x30] sm:$0xff]
    %v2931 = vld [vmem:[%s4 + $0x38] sm:$0xff]
    %v2932 = vld [vmem:[%s4 + $0x40] sm:$0xff]
    %v2933 = vld [vmem:[%s4 + $0x48] sm:$0xff]
    %v2934 = vld [vmem:[%s4 + $0x50] sm:$0xff]
    %v2935 = vld [vmem:[%s4 + $0x58] sm:$0xff]
    %v2936 = vld [vmem:[%s4 + $0x60] sm:$0xff]
    %v2937 = vld [vmem:[%s4 + $0x68] sm:$0xff]
    %v2938 = vld [vmem:[%s4 + $0x70] sm:$0xff]
    %v2939 = vld [vmem:[%s4 + $0x78] sm:$0xff]
    %v2940 = vld [vmem:[%s4 + $0x80] sm:$0xff]
    %v2941 = vld [vmem:[%s4 + $0x88] sm:$0xff]
    %v2942 = vld [vmem:[%s4 + $0x90] sm:$0xff]
    %v2943 = vld [vmem:[%s4 + $0x98] sm:$0xff]
    %v2944 = vld [vmem:[%s4 + $0xa0] sm:$0xff]
    %v2945 = vld [vmem:[%s4 + $0xa8] sm:$0xff]
    %v2946 = vld [vmem:[%s4 + $0xb0] sm:$0xff]
    %v2947 = vld [vmem:[%s4 + $0xb8] sm:$0xff]
    %v2948 = vld [vmem:[%s4 + $0xc0] sm:$0xff]
    %v2949 = vld [vmem:[%s4 + $0xc8] sm:$0xff]
    %v2950 = vld [vmem:[%s4 + $0xd0] sm:$0xff]
    %v2951 = vld [vmem:[%s4 + $0xd8] sm:$0xff]
    %v2952 = vld [vmem:[%s4 + $0xe0] sm:$0xff]
    %v2953 = vld [vmem:[%s4 + $0xe8] sm:$0xff]
    %v2954 = vld [vmem:[%s4 + $0xf0] sm:$0xff]
    %v2955 = vld [vmem:[%s4 + $0xf8] sm:$0xff]
    %v2956 = vld [vmem:[%s4 + $0x100] sm:$0xff]
    %v2957 = vld [vmem:[%s4 + $0x108] sm:$0xff]
    %v2958 = vld [vmem:[%s4 + $0x110] sm:$0xff]
    %v2959 = vld [vmem:[%s4 + $0x118] sm:$0xff]
    %v2960 = vld [vmem:[%s4 + $0x120] sm:$0xff]
    %v2961 = vld [vmem:[%s4 + $0x128] sm:$0xff]
    %v2962 = vld [vmem:[%s4 + $0x130] sm:$0xff]
    %v2963 = vld [vmem:[%s4 + $0x138] sm:$0xff]
    %v2964 = vld [vmem:[%s4 + $0x140] sm:$0xff]
    %v2965 = vld [vmem:[%s4 + $0x148] sm:$0xff]
    %v2966 = vld [vmem:[%s4 + $0x150] sm:$0xff]
    %v2967 = vld [vmem:[%s4 + $0x158] sm:$0xff]
    %v2968 = vld [vmem:[%s4 + $0x160] sm:$0xff]
    %v2969 = vld [vmem:[%s4 + $0x168] sm:$0xff]
    %v2970 = vld [vmem:[%s4 + $0x170] sm:$0xff]
    %v2971 = vld [vmem:[%s4 + $0x178] sm:$0xff]
    %v2972 = vld [vmem:[%s4 + $0x180] sm:$0xff]
    %v2973 = vld [vmem:[%s4 + $0x188] sm:$0xff]
    %v2974 = vld [vmem:[%s4 + $0x190] sm:$0xff]
    %v2975 = vld [vmem:[%s4 + $0x198] sm:$0xff]
    %v2976 = vld [vmem:[%s4 + $0x1a0] sm:$0xff]
    %v2977 = vld [vmem:[%s4 + $0x1a8] sm:$0xff]
    %v2978 = vld [vmem:[%s4 + $0x1b0] sm:$0xff]
    %v2979 = vld [vmem:[%s4 + $0x1b8] sm:$0xff]
    %v2980 = vld [vmem:[%s4 + $0x1c0] sm:$0xff]
    %v2981 = vld [vmem:[%s4 + $0x1c8] sm:$0xff]
    %v2982 = vld [vmem:[%s4 + $0x1d0] sm:$0xff]
    %v2983 = vld [vmem:[%s4 + $0x1d8] sm:$0xff]
    %v2984 = vld [vmem:[%s4 + $0x1e0] sm:$0xff]
    %v2985 = vld [vmem:[%s4 + $0x1e8] sm:$0xff]
    %v2986 = vld [vmem:[%s4 + $0x1f0] sm:$0xff]
    %v2987 = vld [vmem:[%s4 + $0x1f8] sm:$0xff]
    %v2988 = vld [vmem:[%s4 + $0x200] sm:$0xff]
    %v2989 = vld [vmem:[%s4 + $0x208] sm:$0xff]
    %v2990 = vld [vmem:[%s4 + $0x210] sm:$0xff]
    %v2991 = vld [vmem:[%s4 + $0x218] sm:$0xff]
    %v2992 = vld [vmem:[%s4 + $0x220] sm:$0xff]
    %v2993 = vld [vmem:[%s4 + $0x228] sm:$0xff]
    %v2994 = vld [vmem:[%s4 + $0x230] sm:$0xff]
    %v2995 = vld [vmem:[%s4 + $0x238] sm:$0xff]
    %v2996 = vld [vmem:[%s4 + $0x240] sm:$0xff]
    %v2997 = vld [vmem:[%s4 + $0x248] sm:$0xff]
    %v2998 = vld [vmem:[%s4 + $0x250] sm:$0xff]
    %v2999 = vld [vmem:[%s4 + $0x258] sm:$0xff]
    %v3000 = vld [vmem:[%s4 + $0x260] sm:$0xff]
    %v3001 = vld [vmem:[%s4 + $0x268] sm:$0xff]
    %v3002 = vld [vmem:[%s4 + $0x270] sm:$0xff]
    %v3003 = vld [vmem:[%s4 + $0x278] sm:$0xff]
    %v3004 = vld [vmem:[%s4 + $0x280] sm:$0xff]
    %v3005 = vld [vmem:[%s4 + $0x288] sm:$0xff]
    %v3006 = vld [vmem:[%s4 + $0x290] sm:$0xff]
    %v3007 = vld [vmem:[%s4 + $0x298] sm:$0xff]
    %v3008 = vld [vmem:[%s4 + $0x2a0] sm:$0xff]
    %v3009 = vld [vmem:[%s4 + $0x2a8] sm:$0xff]
    %v3010 = vld [vmem:[%s4 + $0x2b0] sm:$0xff]
    %v3011 = vld [vmem:[%s4 + $0x2b8] sm:$0xff]
    %v3012 = vld [vmem:[%s4 + $0x2c0] sm:$0xff]
    %v3013 = vld [vmem:[%s4 + $0x2c8] sm:$0xff]
    %v3014 = vld [vmem:[%s4 + $0x2d0] sm:$0xff]
    %v3015 = vld [vmem:[%s4 + $0x2d8] sm:$0xff]
    %v3016 = vld [vmem:[%s4 + $0x2e0] sm:$0xff]
    %v3017 = vld [vmem:[%s4 + $0x2e8] sm:$0xff]
    %v3018 = vld [vmem:[%s4 + $0x2f0] sm:$0xff]
    %v3019 = vld [vmem:[%s4 + $0x2f8] sm:$0xff]
    %v3020 = vld [vmem:[%s4 + $0x300] sm:$0xff]
    %v3021 = vld [vmem:[%s4 + $0x308] sm:$0xff]
    %v3022 = vld [vmem:[%s4 + $0x310] sm:$0xff]
    %v3023 = vld [vmem:[%s4 + $0x318] sm:$0xff]
    %v3024 = vmul.f32 %v2924, %v2915
    %v3025 = vmul.f32 %v2925, %v2917
    %v3026 = vmul.f32 %v2926, %v2920
    %v3027 = vmul.f32 %v2927, %v2922
    %v3028 = vmul.f32 %v2928, %v2915
    %v3029 = vmul.f32 %v2929, %v2917
    %v3030 = vmul.f32 %v2930, %v2920
    %v3031 = vmul.f32 %v2931, %v2922
    %v3032 = vmul.f32 %v2932, %v2915
    %v3033 = vmul.f32 %v2933, %v2917
    %v3034 = vmul.f32 %v2934, %v2920
    %v3035 = vmul.f32 %v2935, %v2922
    %v3036 = vmul.f32 %v2936, %v2915
    %v3037 = vmul.f32 %v2937, %v2917
    %v3038 = vmul.f32 %v2938, %v2920
    %v3039 = vmul.f32 %v2939, %v2922
    %v3040 = vmul.f32 %v2940, %v2915
    %v3041 = vmul.f32 %v2941, %v2917
    %v3042 = vmul.f32 %v2942, %v2920
    %v3043 = vmul.f32 %v2943, %v2922
    %v3044 = vmul.f32 %v2944, %v2915
    %v3045 = vmul.f32 %v2945, %v2917
    %v3046 = vmul.f32 %v2946, %v2920
    %v3047 = vmul.f32 %v2947, %v2922
    %v3048 = vmul.f32 %v2948, %v2915
    %v3049 = vmul.f32 %v2949, %v2917
    %v3050 = vmul.f32 %v2950, %v2920
    %v3051 = vmul.f32 %v2951, %v2922
    %v3052 = vmul.f32 %v2952, %v2915
    %v3053 = vmul.f32 %v2953, %v2917
    %v3054 = vmul.f32 %v2954, %v2920
    %v3055 = vmul.f32 %v2955, %v2922
    %v3056 = vmul.f32 %v2956, %v2915
    %v3057 = vmul.f32 %v2957, %v2917
    %v3058 = vmul.f32 %v2958, %v2920
    %v3059 = vmul.f32 %v2959, %v2922
    %v3060 = vmul.f32 %v2960, %v2915
    %v3061 = vmul.f32 %v2961, %v2917
    %v3062 = vmul.f32 %v2962, %v2920
    %v3063 = vmul.f32 %v2963, %v2922
    %v3064 = vmul.f32 %v2964, %v2915
    %v3065 = vmul.f32 %v2965, %v2917
    %v3066 = vmul.f32 %v2966, %v2920
    %v3067 = vmul.f32 %v2967, %v2922
    %v3068 = vmul.f32 %v2968, %v2915
    %v3069 = vmul.f32 %v2969, %v2917
    %v3070 = vmul.f32 %v2970, %v2920
    %v3071 = vmul.f32 %v2971, %v2922
    %v3072 = vmul.f32 %v2972, %v2915
    %v3073 = vmul.f32 %v2973, %v2917
    %v3074 = vmul.f32 %v2974, %v2920
    %v3075 = vmul.f32 %v2975, %v2922
    %v3076 = vmul.f32 %v2976, %v2915
    %v3077 = vmul.f32 %v2977, %v2917
    %v3078 = vmul.f32 %v2978, %v2920
    %v3079 = vmul.f32 %v2979, %v2922
    %v3080 = vmul.f32 %v2980, %v2915
    %v3081 = vmul.f32 %v2981, %v2917
    %v3082 = vmul.f32 %v2982, %v2920
    %v3083 = vmul.f32 %v2983, %v2922
    %v3084 = vmul.f32 %v2984, %v2915
    %v3085 = vmul.f32 %v2985, %v2917
    %v3086 = vmul.f32 %v2986, %v2920
    %v3087 = vmul.f32 %v2987, %v2922
    %v3088 = vmul.f32 %v2988, %v2915
    %v3089 = vmul.f32 %v2989, %v2917
    %v3090 = vmul.f32 %v2990, %v2920
    %v3091 = vmul.f32 %v2991, %v2922
    %v3092 = vmul.f32 %v2992, %v2915
    %v3093 = vmul.f32 %v2993, %v2917
    %v3094 = vmul.f32 %v2994, %v2920
    %v3095 = vmul.f32 %v2995, %v2922
    %v3096 = vmul.f32 %v2996, %v2915
    %v3097 = vmul.f32 %v2997, %v2917
    %v3098 = vmul.f32 %v2998, %v2920
    %v3099 = vmul.f32 %v2999, %v2922
    %v3100 = vmul.f32 %v3000, %v2915
    %v3101 = vmul.f32 %v3001, %v2917
    %v3102 = vmul.f32 %v3002, %v2920
    %v3103 = vmul.f32 %v3003, %v2922
    %v3104 = vmul.f32 %v3004, %v2915
    %v3105 = vmul.f32 %v3005, %v2917
    %v3106 = vmul.f32 %v3006, %v2920
    %v3107 = vmul.f32 %v3007, %v2922
    %v3108 = vmul.f32 %v3008, %v2915
    %v3109 = vmul.f32 %v3009, %v2917
    %v3110 = vmul.f32 %v3010, %v2920
    %v3111 = vmul.f32 %v3011, %v2922
    %v3112 = vmul.f32 %v3012, %v2915
    %v3113 = vmul.f32 %v3013, %v2917
    %v3114 = vmul.f32 %v3014, %v2920
    %v3115 = vmul.f32 %v3015, %v2922
    %v3116 = vmul.f32 %v3016, %v2915
    %v3117 = vmul.f32 %v3017, %v2917
    %v3118 = vmul.f32 %v3018, %v2920
    %v3119 = vmul.f32 %v3019, %v2922
    %v3120 = vmul.f32 %v3020, %v2915
    %v3121 = vmul.f32 %v3021, %v2917
    %v3122 = vmul.f32 %v3022, %v2920
    %v3123 = vmul.f32 %v3023, %v2922
    %vm3124 = vcmask 400384
    %v3125 = vsel %vm3124, %v3024, 0.0
    %3126 = vadd.xlane.f32.xlu0 %v3125
    %v3127 = vpop.xlane.xlu0 %3126
    %v3128 = vsel %vm3124, %v3025, 0.0
    %3129 = vadd.xlane.f32.xlu0 %v3128
    %v3130 = vpop.xlane.xlu0 %3129
    %v3131 = vsel %vm3124, %v3026, 0.0
    %3132 = vadd.xlane.f32.xlu0 %v3131
    %v3133 = vpop.xlane.xlu0 %3132
    %v3134 = vsel %vm3124, %v3027, 0.0
    %3135 = vadd.xlane.f32.xlu0 %v3134
    %v3136 = vpop.xlane.xlu0 %3135
    %v3137 = vsel %vm3124, %v3028, 0.0
    %3138 = vadd.xlane.f32.xlu0 %v3137
    %v3139 = vpop.xlane.xlu0 %3138
    %v3140 = vsel %vm3124, %v3029, 0.0
    %3141 = vadd.xlane.f32.xlu0 %v3140
    %v3142 = vpop.xlane.xlu0 %3141
    %v3143 = vsel %vm3124, %v3030, 0.0
    %3144 = vadd.xlane.f32.xlu0 %v3143
    %v3145 = vpop.xlane.xlu0 %3144
    %v3146 = vsel %vm3124, %v3031, 0.0
    %3147 = vadd.xlane.f32.xlu0 %v3146
    %v3148 = vpop.xlane.xlu0 %3147
    %v3149 = vsel %vm3124, %v3032, 0.0
    %3150 = vadd.xlane.f32.xlu0 %v3149
    %v3151 = vpop.xlane.xlu0 %3150
    %v3152 = vsel %vm3124, %v3033, 0.0
    %3153 = vadd.xlane.f32.xlu0 %v3152
    %v3154 = vpop.xlane.xlu0 %3153
    %v3155 = vsel %vm3124, %v3034, 0.0
    %3156 = vadd.xlane.f32.xlu0 %v3155
    %v3157 = vpop.xlane.xlu0 %3156
    %v3158 = vsel %vm3124, %v3035, 0.0
    %3159 = vadd.xlane.f32.xlu0 %v3158
    %v3160 = vpop.xlane.xlu0 %3159
    %v3161 = vsel %vm3124, %v3036, 0.0
    %3162 = vadd.xlane.f32.xlu0 %v3161
    %v3163 = vpop.xlane.xlu0 %3162
    %v3164 = vsel %vm3124, %v3037, 0.0
    %3165 = vadd.xlane.f32.xlu0 %v3164
    %v3166 = vpop.xlane.xlu0 %3165
    %v3167 = vsel %vm3124, %v3038, 0.0
    %3168 = vadd.xlane.f32.xlu0 %v3167
    %v3169 = vpop.xlane.xlu0 %3168
    %v3170 = vsel %vm3124, %v3039, 0.0
    %3171 = vadd.xlane.f32.xlu0 %v3170
    %v3172 = vpop.xlane.xlu0 %3171
    %v3173 = vsel %vm3124, %v3040, 0.0
    %3174 = vadd.xlane.f32.xlu0 %v3173
    %v3175 = vpop.xlane.xlu0 %3174
    %v3176 = vsel %vm3124, %v3041, 0.0
    %3177 = vadd.xlane.f32.xlu0 %v3176
    %v3178 = vpop.xlane.xlu0 %3177
    %v3179 = vsel %vm3124, %v3042, 0.0
    %3180 = vadd.xlane.f32.xlu0 %v3179
    %v3181 = vpop.xlane.xlu0 %3180
    %v3182 = vsel %vm3124, %v3043, 0.0
    %3183 = vadd.xlane.f32.xlu0 %v3182
    %v3184 = vpop.xlane.xlu0 %3183
    %v3185 = vsel %vm3124, %v3044, 0.0
    %3186 = vadd.xlane.f32.xlu0 %v3185
    %v3187 = vpop.xlane.xlu0 %3186
    %v3188 = vsel %vm3124, %v3045, 0.0
    %3189 = vadd.xlane.f32.xlu0 %v3188
    %v3190 = vpop.xlane.xlu0 %3189
    %v3191 = vsel %vm3124, %v3046, 0.0
    %3192 = vadd.xlane.f32.xlu0 %v3191
    %v3193 = vpop.xlane.xlu0 %3192
    %v3194 = vsel %vm3124, %v3047, 0.0
    %3195 = vadd.xlane.f32.xlu0 %v3194
    %v3196 = vpop.xlane.xlu0 %3195
    %v3197 = vsel %vm3124, %v3048, 0.0
    %3198 = vadd.xlane.f32.xlu0 %v3197
    %v3199 = vpop.xlane.xlu0 %3198
    %v3200 = vsel %vm3124, %v3049, 0.0
    %3201 = vadd.xlane.f32.xlu0 %v3200
    %v3202 = vpop.xlane.xlu0 %3201
    %v3203 = vsel %vm3124, %v3050, 0.0
    %3204 = vadd.xlane.f32.xlu0 %v3203
    %v3205 = vpop.xlane.xlu0 %3204
    %v3206 = vsel %vm3124, %v3051, 0.0
    %3207 = vadd.xlane.f32.xlu0 %v3206
    %v3208 = vpop.xlane.xlu0 %3207
    %v3209 = vsel %vm3124, %v3052, 0.0
    %3210 = vadd.xlane.f32.xlu0 %v3209
    %v3211 = vpop.xlane.xlu0 %3210
    %v3212 = vsel %vm3124, %v3053, 0.0
    %3213 = vadd.xlane.f32.xlu0 %v3212
    %v3214 = vpop.xlane.xlu0 %3213
    %v3215 = vsel %vm3124, %v3054, 0.0
    %3216 = vadd.xlane.f32.xlu0 %v3215
    %v3217 = vpop.xlane.xlu0 %3216
    %v3218 = vsel %vm3124, %v3055, 0.0
    %3219 = vadd.xlane.f32.xlu0 %v3218
    %v3220 = vpop.xlane.xlu0 %3219
    %v3221 = vsel %vm3124, %v3056, 0.0
    %3222 = vadd.xlane.f32.xlu0 %v3221
    %v3223 = vpop.xlane.xlu0 %3222
    %v3224 = vsel %vm3124, %v3057, 0.0
    %3225 = vadd.xlane.f32.xlu0 %v3224
    %v3226 = vpop.xlane.xlu0 %3225
    %v3227 = vsel %vm3124, %v3058, 0.0
    %3228 = vadd.xlane.f32.xlu0 %v3227
    %v3229 = vpop.xlane.xlu0 %3228
    %v3230 = vsel %vm3124, %v3059, 0.0
    %3231 = vadd.xlane.f32.xlu0 %v3230
    %v3232 = vpop.xlane.xlu0 %3231
    %v3233 = vsel %vm3124, %v3060, 0.0
    %3234 = vadd.xlane.f32.xlu0 %v3233
    %v3235 = vpop.xlane.xlu0 %3234
    %v3236 = vsel %vm3124, %v3061, 0.0
    %3237 = vadd.xlane.f32.xlu0 %v3236
    %v3238 = vpop.xlane.xlu0 %3237
    %v3239 = vsel %vm3124, %v3062, 0.0
    %3240 = vadd.xlane.f32.xlu0 %v3239
    %v3241 = vpop.xlane.xlu0 %3240
    %v3242 = vsel %vm3124, %v3063, 0.0
    %3243 = vadd.xlane.f32.xlu0 %v3242
    %v3244 = vpop.xlane.xlu0 %3243
    %v3245 = vsel %vm3124, %v3064, 0.0
    %3246 = vadd.xlane.f32.xlu0 %v3245
    %v3247 = vpop.xlane.xlu0 %3246
    %v3248 = vsel %vm3124, %v3065, 0.0
    %3249 = vadd.xlane.f32.xlu0 %v3248
    %v3250 = vpop.xlane.xlu0 %3249
    %v3251 = vsel %vm3124, %v3066, 0.0
    %3252 = vadd.xlane.f32.xlu0 %v3251
    %v3253 = vpop.xlane.xlu0 %3252
    %v3254 = vsel %vm3124, %v3067, 0.0
    %3255 = vadd.xlane.f32.xlu0 %v3254
    %v3256 = vpop.xlane.xlu0 %3255
    %v3257 = vsel %vm3124, %v3068, 0.0
    %3258 = vadd.xlane.f32.xlu0 %v3257
    %v3259 = vpop.xlane.xlu0 %3258
    %v3260 = vsel %vm3124, %v3069, 0.0
    %3261 = vadd.xlane.f32.xlu0 %v3260
    %v3262 = vpop.xlane.xlu0 %3261
    %v3263 = vsel %vm3124, %v3070, 0.0
    %3264 = vadd.xlane.f32.xlu0 %v3263
    %v3265 = vpop.xlane.xlu0 %3264
    %v3266 = vsel %vm3124, %v3071, 0.0
    %3267 = vadd.xlane.f32.xlu0 %v3266
    %v3268 = vpop.xlane.xlu0 %3267
    %v3269 = vsel %vm3124, %v3072, 0.0
    %3270 = vadd.xlane.f32.xlu0 %v3269
    %v3271 = vpop.xlane.xlu0 %3270
    %v3272 = vsel %vm3124, %v3073, 0.0
    %3273 = vadd.xlane.f32.xlu0 %v3272
    %v3274 = vpop.xlane.xlu0 %3273
    %v3275 = vsel %vm3124, %v3074, 0.0
    %3276 = vadd.xlane.f32.xlu0 %v3275
    %v3277 = vpop.xlane.xlu0 %3276
    %v3278 = vsel %vm3124, %v3075, 0.0
    %3279 = vadd.xlane.f32.xlu0 %v3278
    %v3280 = vpop.xlane.xlu0 %3279
    %v3281 = vsel %vm3124, %v3076, 0.0
    %3282 = vadd.xlane.f32.xlu0 %v3281
    %v3283 = vpop.xlane.xlu0 %3282
    %v3284 = vsel %vm3124, %v3077, 0.0
    %3285 = vadd.xlane.f32.xlu0 %v3284
    %v3286 = vpop.xlane.xlu0 %3285
    %v3287 = vsel %vm3124, %v3078, 0.0
    %3288 = vadd.xlane.f32.xlu0 %v3287
    %v3289 = vpop.xlane.xlu0 %3288
    %v3290 = vsel %vm3124, %v3079, 0.0
    %3291 = vadd.xlane.f32.xlu0 %v3290
    %v3292 = vpop.xlane.xlu0 %3291
    %v3293 = vsel %vm3124, %v3080, 0.0
    %3294 = vadd.xlane.f32.xlu0 %v3293
    %v3295 = vpop.xlane.xlu0 %3294
    %v3296 = vsel %vm3124, %v3081, 0.0
    %3297 = vadd.xlane.f32.xlu0 %v3296
    %v3298 = vpop.xlane.xlu0 %3297
    %v3299 = vsel %vm3124, %v3082, 0.0
    %3300 = vadd.xlane.f32.xlu0 %v3299
    %v3301 = vpop.xlane.xlu0 %3300
    %v3302 = vsel %vm3124, %v3083, 0.0
    %3303 = vadd.xlane.f32.xlu0 %v3302
    %v3304 = vpop.xlane.xlu0 %3303
    %v3305 = vsel %vm3124, %v3084, 0.0
    %3306 = vadd.xlane.f32.xlu0 %v3305
    %v3307 = vpop.xlane.xlu0 %3306
    %v3308 = vsel %vm3124, %v3085, 0.0
    %3309 = vadd.xlane.f32.xlu0 %v3308
    %v3310 = vpop.xlane.xlu0 %3309
    %v3311 = vsel %vm3124, %v3086, 0.0
    %3312 = vadd.xlane.f32.xlu0 %v3311
    %v3313 = vpop.xlane.xlu0 %3312
    %v3314 = vsel %vm3124, %v3087, 0.0
    %3315 = vadd.xlane.f32.xlu0 %v3314
    %v3316 = vpop.xlane.xlu0 %3315
    %v3317 = vsel %vm3124, %v3088, 0.0
    %3318 = vadd.xlane.f32.xlu0 %v3317
    %v3319 = vpop.xlane.xlu0 %3318
    %v3320 = vsel %vm3124, %v3089, 0.0
    %3321 = vadd.xlane.f32.xlu0 %v3320
    %v3322 = vpop.xlane.xlu0 %3321
    %v3323 = vsel %vm3124, %v3090, 0.0
    %3324 = vadd.xlane.f32.xlu0 %v3323
    %v3325 = vpop.xlane.xlu0 %3324
    %v3326 = vsel %vm3124, %v3091, 0.0
    %3327 = vadd.xlane.f32.xlu0 %v3326
    %v3328 = vpop.xlane.xlu0 %3327
    %v3329 = vsel %vm3124, %v3092, 0.0
    %3330 = vadd.xlane.f32.xlu0 %v3329
    %v3331 = vpop.xlane.xlu0 %3330
    %v3332 = vsel %vm3124, %v3093, 0.0
    %3333 = vadd.xlane.f32.xlu0 %v3332
    %v3334 = vpop.xlane.xlu0 %3333
    %v3335 = vsel %vm3124, %v3094, 0.0
    %3336 = vadd.xlane.f32.xlu0 %v3335
    %v3337 = vpop.xlane.xlu0 %3336
    %v3338 = vsel %vm3124, %v3095, 0.0
    %3339 = vadd.xlane.f32.xlu0 %v3338
    %v3340 = vpop.xlane.xlu0 %3339
    %v3341 = vsel %vm3124, %v3096, 0.0
    %3342 = vadd.xlane.f32.xlu0 %v3341
    %v3343 = vpop.xlane.xlu0 %3342
    %v3344 = vsel %vm3124, %v3097, 0.0
    %3345 = vadd.xlane.f32.xlu0 %v3344
    %v3346 = vpop.xlane.xlu0 %3345
    %v3347 = vsel %vm3124, %v3098, 0.0
    %3348 = vadd.xlane.f32.xlu0 %v3347
    %v3349 = vpop.xlane.xlu0 %3348
    %v3350 = vsel %vm3124, %v3099, 0.0
    %3351 = vadd.xlane.f32.xlu0 %v3350
    %v3352 = vpop.xlane.xlu0 %3351
    %v3353 = vsel %vm3124, %v3100, 0.0
    %3354 = vadd.xlane.f32.xlu0 %v3353
    %v3355 = vpop.xlane.xlu0 %3354
    %v3356 = vsel %vm3124, %v3101, 0.0
    %3357 = vadd.xlane.f32.xlu0 %v3356
    %v3358 = vpop.xlane.xlu0 %3357
    %v3359 = vsel %vm3124, %v3102, 0.0
    %3360 = vadd.xlane.f32.xlu0 %v3359
    %v3361 = vpop.xlane.xlu0 %3360
    %v3362 = vsel %vm3124, %v3103, 0.0
    %3363 = vadd.xlane.f32.xlu0 %v3362
    %v3364 = vpop.xlane.xlu0 %3363
    %v3365 = vsel %vm3124, %v3104, 0.0
    %3366 = vadd.xlane.f32.xlu0 %v3365
    %v3367 = vpop.xlane.xlu0 %3366
    %v3368 = vsel %vm3124, %v3105, 0.0
    %3369 = vadd.xlane.f32.xlu0 %v3368
    %v3370 = vpop.xlane.xlu0 %3369
    %v3371 = vsel %vm3124, %v3106, 0.0
    %3372 = vadd.xlane.f32.xlu0 %v3371
    %v3373 = vpop.xlane.xlu0 %3372
    %v3374 = vsel %vm3124, %v3107, 0.0
    %3375 = vadd.xlane.f32.xlu0 %v3374
    %v3376 = vpop.xlane.xlu0 %3375
    %v3377 = vsel %vm3124, %v3108, 0.0
    %3378 = vadd.xlane.f32.xlu0 %v3377
    %v3379 = vpop.xlane.xlu0 %3378
    %v3380 = vsel %vm3124, %v3109, 0.0
    %3381 = vadd.xlane.f32.xlu0 %v3380
    %v3382 = vpop.xlane.xlu0 %3381
    %v3383 = vsel %vm3124, %v3110, 0.0
    %3384 = vadd.xlane.f32.xlu0 %v3383
    %v3385 = vpop.xlane.xlu0 %3384
    %v3386 = vsel %vm3124, %v3111, 0.0
    %3387 = vadd.xlane.f32.xlu0 %v3386
    %v3388 = vpop.xlane.xlu0 %3387
    %v3389 = vsel %vm3124, %v3112, 0.0
    %3390 = vadd.xlane.f32.xlu0 %v3389
    %v3391 = vpop.xlane.xlu0 %3390
    %v3392 = vsel %vm3124, %v3113, 0.0
    %3393 = vadd.xlane.f32.xlu0 %v3392
    %v3394 = vpop.xlane.xlu0 %3393
    %v3395 = vsel %vm3124, %v3114, 0.0
    %3396 = vadd.xlane.f32.xlu0 %v3395
    %v3397 = vpop.xlane.xlu0 %3396
    %v3398 = vsel %vm3124, %v3115, 0.0
    %3399 = vadd.xlane.f32.xlu0 %v3398
    %v3400 = vpop.xlane.xlu0 %3399
    %v3401 = vsel %vm3124, %v3116, 0.0
    %3402 = vadd.xlane.f32.xlu0 %v3401
    %v3403 = vpop.xlane.xlu0 %3402
    %v3404 = vsel %vm3124, %v3117, 0.0
    %3405 = vadd.xlane.f32.xlu0 %v3404
    %v3406 = vpop.xlane.xlu0 %3405
    %v3407 = vsel %vm3124, %v3118, 0.0
    %3408 = vadd.xlane.f32.xlu0 %v3407
    %v3409 = vpop.xlane.xlu0 %3408
    %v3410 = vsel %vm3124, %v3119, 0.0
    %3411 = vadd.xlane.f32.xlu0 %v3410
    %v3412 = vpop.xlane.xlu0 %3411
    %v3413 = vsel %vm3124, %v3120, 0.0
    %3414 = vadd.xlane.f32.xlu0 %v3413
    %v3415 = vpop.xlane.xlu0 %3414
    %v3416 = vsel %vm3124, %v3121, 0.0
    %3417 = vadd.xlane.f32.xlu0 %v3416
    %v3418 = vpop.xlane.xlu0 %3417
    %v3419 = vsel %vm3124, %v3122, 0.0
    %3420 = vadd.xlane.f32.xlu0 %v3419
    %v3421 = vpop.xlane.xlu0 %3420
    %v3422 = vsel %vm3124, %v3123, 0.0
    %3423 = vadd.xlane.f32.xlu0 %v3422
    %v3424 = vpop.xlane.xlu0 %3423
    %v3525 = vperm.slane %v3127, %v55
    %v3526 = vadd.s32 %v55, 4294967288
    %v3527 = vperm.slane %v3130, %v3526
    %vm3528 = vcmask 130112
    %v3529 = vsel %vm3528, %v3527, %v3525
    %v3530 = vadd.s32 %v55, 4294967280
    %v3531 = vperm.slane %v3133, %v3530
    %vm3532 = vcmask 195712
    %v3533 = vsel %vm3532, %v3531, %v3529
    %v3534 = vadd.s32 %v55, 4294967272
    %v3535 = vperm.slane %v3136, %v3534
    %vm3536 = vcmask 261312
    %v3537 = vsel %vm3536, %v3535, %v3533
    %v3538 = vperm.slane %v3139, %v55
    %v3539 = vperm.slane %v3142, %v3526
    %v3540 = vsel %vm3528, %v3539, %v3538
    %v3541 = vperm.slane %v3145, %v3530
    %v3542 = vsel %vm3532, %v3541, %v3540
    %v3543 = vperm.slane %v3148, %v3534
    %v3544 = vsel %vm3536, %v3543, %v3542
    %v3545 = vperm.slane %v3151, %v55
    %v3546 = vperm.slane %v3154, %v3526
    %v3547 = vsel %vm3528, %v3546, %v3545
    %v3548 = vperm.slane %v3157, %v3530
    %v3549 = vsel %vm3532, %v3548, %v3547
    %v3550 = vperm.slane %v3160, %v3534
    %v3551 = vsel %vm3536, %v3550, %v3549
    %v3552 = vperm.slane %v3163, %v55
    %v3553 = vperm.slane %v3166, %v3526
    %v3554 = vsel %vm3528, %v3553, %v3552
    %v3555 = vperm.slane %v3169, %v3530
    %v3556 = vsel %vm3532, %v3555, %v3554
    %v3557 = vperm.slane %v3172, %v3534
    %v3558 = vsel %vm3536, %v3557, %v3556
    %v3559 = vperm.slane %v3175, %v55
    %v3560 = vperm.slane %v3178, %v3526
    %v3561 = vsel %vm3528, %v3560, %v3559
    %v3562 = vperm.slane %v3181, %v3530
    %v3563 = vsel %vm3532, %v3562, %v3561
    %v3564 = vperm.slane %v3184, %v3534
    %v3565 = vsel %vm3536, %v3564, %v3563
    %v3566 = vperm.slane %v3187, %v55
    %v3567 = vperm.slane %v3190, %v3526
    %v3568 = vsel %vm3528, %v3567, %v3566
    %v3569 = vperm.slane %v3193, %v3530
    %v3570 = vsel %vm3532, %v3569, %v3568
    %v3571 = vperm.slane %v3196, %v3534
    %v3572 = vsel %vm3536, %v3571, %v3570
    %v3573 = vperm.slane %v3199, %v55
    %v3574 = vperm.slane %v3202, %v3526
    %v3575 = vsel %vm3528, %v3574, %v3573
    %v3576 = vperm.slane %v3205, %v3530
    %v3577 = vsel %vm3532, %v3576, %v3575
    %v3578 = vperm.slane %v3208, %v3534
    %v3579 = vsel %vm3536, %v3578, %v3577
    %v3580 = vperm.slane %v3211, %v55
    %v3581 = vperm.slane %v3214, %v3526
    %v3582 = vsel %vm3528, %v3581, %v3580
    %v3583 = vperm.slane %v3217, %v3530
    %v3584 = vsel %vm3532, %v3583, %v3582
    %v3585 = vperm.slane %v3220, %v3534
    %v3586 = vsel %vm3536, %v3585, %v3584
    %v3587 = vperm.slane %v3223, %v55
    %v3588 = vperm.slane %v3226, %v3526
    %v3589 = vsel %vm3528, %v3588, %v3587
    %v3590 = vperm.slane %v3229, %v3530
    %v3591 = vsel %vm3532, %v3590, %v3589
    %v3592 = vperm.slane %v3232, %v3534
    %v3593 = vsel %vm3536, %v3592, %v3591
    %v3594 = vperm.slane %v3235, %v55
    %v3595 = vperm.slane %v3238, %v3526
    %v3596 = vsel %vm3528, %v3595, %v3594
    %v3597 = vperm.slane %v3241, %v3530
    %v3598 = vsel %vm3532, %v3597, %v3596
    %v3599 = vperm.slane %v3244, %v3534
    %v3600 = vsel %vm3536, %v3599, %v3598
    %v3601 = vperm.slane %v3247, %v55
    %v3602 = vperm.slane %v3250, %v3526
    %v3603 = vsel %vm3528, %v3602, %v3601
    %v3604 = vperm.slane %v3253, %v3530
    %v3605 = vsel %vm3532, %v3604, %v3603
    %v3606 = vperm.slane %v3256, %v3534
    %v3607 = vsel %vm3536, %v3606, %v3605
    %v3608 = vperm.slane %v3259, %v55
    %v3609 = vperm.slane %v3262, %v3526
    %v3610 = vsel %vm3528, %v3609, %v3608
    %v3611 = vperm.slane %v3265, %v3530
    %v3612 = vsel %vm3532, %v3611, %v3610
    %v3613 = vperm.slane %v3268, %v3534
    %v3614 = vsel %vm3536, %v3613, %v3612
    %v3615 = vperm.slane %v3271, %v55
    %v3616 = vperm.slane %v3274, %v3526
    %v3617 = vsel %vm3528, %v3616, %v3615
    %v3618 = vperm.slane %v3277, %v3530
    %v3619 = vsel %vm3532, %v3618, %v3617
    %v3620 = vperm.slane %v3280, %v3534
    %v3621 = vsel %vm3536, %v3620, %v3619
    %v3622 = vperm.slane %v3283, %v55
    %v3623 = vperm.slane %v3286, %v3526
    %v3624 = vsel %vm3528, %v3623, %v3622
    %v3625 = vperm.slane %v3289, %v3530
    %v3626 = vsel %vm3532, %v3625, %v3624
    %v3627 = vperm.slane %v3292, %v3534
    %v3628 = vsel %vm3536, %v3627, %v3626
    %v3629 = vperm.slane %v3295, %v55
    %v3630 = vperm.slane %v3298, %v3526
    %v3631 = vsel %vm3528, %v3630, %v3629
    %v3632 = vperm.slane %v3301, %v3530
    %v3633 = vsel %vm3532, %v3632, %v3631
    %v3634 = vperm.slane %v3304, %v3534
    %v3635 = vsel %vm3536, %v3634, %v3633
    %v3636 = vperm.slane %v3307, %v55
    %v3637 = vperm.slane %v3310, %v3526
    %v3638 = vsel %vm3528, %v3637, %v3636
    %v3639 = vperm.slane %v3313, %v3530
    %v3640 = vsel %vm3532, %v3639, %v3638
    %v3641 = vperm.slane %v3316, %v3534
    %v3642 = vsel %vm3536, %v3641, %v3640
    %v3643 = vperm.slane %v3319, %v55
    %v3644 = vperm.slane %v3322, %v3526
    %v3645 = vsel %vm3528, %v3644, %v3643
    %v3646 = vperm.slane %v3325, %v3530
    %v3647 = vsel %vm3532, %v3646, %v3645
    %v3648 = vperm.slane %v3328, %v3534
    %v3649 = vsel %vm3536, %v3648, %v3647
    %v3650 = vperm.slane %v3331, %v55
    %v3651 = vperm.slane %v3334, %v3526
    %v3652 = vsel %vm3528, %v3651, %v3650
    %v3653 = vperm.slane %v3337, %v3530
    %v3654 = vsel %vm3532, %v3653, %v3652
    %v3655 = vperm.slane %v3340, %v3534
    %v3656 = vsel %vm3536, %v3655, %v3654
    %v3657 = vperm.slane %v3343, %v55
    %v3658 = vperm.slane %v3346, %v3526
    %v3659 = vsel %vm3528, %v3658, %v3657
    %v3660 = vperm.slane %v3349, %v3530
    %v3661 = vsel %vm3532, %v3660, %v3659
    %v3662 = vperm.slane %v3352, %v3534
    %v3663 = vsel %vm3536, %v3662, %v3661
    %v3664 = vperm.slane %v3355, %v55
    %v3665 = vperm.slane %v3358, %v3526
    %v3666 = vsel %vm3528, %v3665, %v3664
    %v3667 = vperm.slane %v3361, %v3530
    %v3668 = vsel %vm3532, %v3667, %v3666
    %v3669 = vperm.slane %v3364, %v3534
    %v3670 = vsel %vm3536, %v3669, %v3668
    %v3671 = vperm.slane %v3367, %v55
    %v3672 = vperm.slane %v3370, %v3526
    %v3673 = vsel %vm3528, %v3672, %v3671
    %v3674 = vperm.slane %v3373, %v3530
    %v3675 = vsel %vm3532, %v3674, %v3673
    %v3676 = vperm.slane %v3376, %v3534
    %v3677 = vsel %vm3536, %v3676, %v3675
    %v3678 = vperm.slane %v3379, %v55
    %v3679 = vperm.slane %v3382, %v3526
    %v3680 = vsel %vm3528, %v3679, %v3678
    %v3681 = vperm.slane %v3385, %v3530
    %v3682 = vsel %vm3532, %v3681, %v3680
    %v3683 = vperm.slane %v3388, %v3534
    %v3684 = vsel %vm3536, %v3683, %v3682
    %v3685 = vperm.slane %v3391, %v55
    %v3686 = vperm.slane %v3394, %v3526
    %v3687 = vsel %vm3528, %v3686, %v3685
    %v3688 = vperm.slane %v3397, %v3530
    %v3689 = vsel %vm3532, %v3688, %v3687
    %v3690 = vperm.slane %v3400, %v3534
    %v3691 = vsel %vm3536, %v3690, %v3689
    %v3692 = vperm.slane %v3403, %v55
    %v3693 = vperm.slane %v3406, %v3526
    %v3694 = vsel %vm3528, %v3693, %v3692
    %v3695 = vperm.slane %v3409, %v3530
    %v3696 = vsel %vm3532, %v3695, %v3694
    %v3697 = vperm.slane %v3412, %v3534
    %v3698 = vsel %vm3536, %v3697, %v3696
    %v3699 = vperm.slane %v3415, %v55
    %v3700 = vperm.slane %v3418, %v3526
    %v3701 = vsel %vm3528, %v3700, %v3699
    %v3702 = vperm.slane %v3421, %v3530
    %v3703 = vsel %vm3532, %v3702, %v3701
    %v3704 = vperm.slane %v3424, %v3534
    %v3705 = vsel %vm3536, %v3704, %v3703
    %vm3706 = vcmask 1041409
    %v3707 = vsel %vm3706, %v3544, %v3537
    %v3708 = vsel %vm233, %v3551, %v3707
    %vm3709 = vcmask 1043459
    %v3710 = vsel %vm3709, %v3558, %v3708
    %v3711 = vsel %vm237, %v3565, %v3710
    %vm3712 = vcmask 1045509
    %v3713 = vsel %vm3712, %v3572, %v3711
    %vm3714 = vcmask 1046534
    %v3715 = vsel %vm3714, %v3579, %v3713
    %vm3716 = vcmask 1047559
    %v3717 = vsel %vm3716, %v3586, %v3715
    %v3718 = vsel %vm3706, %v3600, %v3593
    %v3719 = vsel %vm233, %v3607, %v3718
    %v3720 = vsel %vm3709, %v3614, %v3719
    %v3721 = vsel %vm237, %v3621, %v3720
    %v3722 = vsel %vm3712, %v3628, %v3721
    %v3723 = vsel %vm3714, %v3635, %v3722
    %v3724 = vsel %vm3716, %v3642, %v3723
    %v3725 = vsel %vm3706, %v3656, %v3649
    %v3726 = vsel %vm233, %v3663, %v3725
    %v3727 = vsel %vm3709, %v3670, %v3726
    %v3728 = vsel %vm237, %v3677, %v3727
    %v3729 = vsel %vm3712, %v3684, %v3728
    %v3730 = vsel %vm3714, %v3691, %v3729
    %v3731 = vsel %vm3716, %v3698, %v3730
    %vm3736 = vcmask 261120
    %v3737 = vsel %vm3736, %v3717, 0.0
    %3738 = vadd.xlane.f32.xlu0 %v3737
    %v3739 = vpop.xlane.xlu0 %3738
    %v3740 = vsel %vm3736, %v3724, 0.0
    %3741 = vadd.xlane.f32.xlu0 %v3740
    %v3742 = vpop.xlane.xlu0 %3741
    %v3743 = vsel %vm3736, %v3731, 0.0
    %3744 = vadd.xlane.f32.xlu0 %v3743
    %v3745 = vpop.xlane.xlu0 %3744
    %vm3746 = vcmask 253952
    %v3747 = vsel %vm3746, %v3705, 0.0
    %3748 = vadd.xlane.f32.xlu0 %v3747
    %v3749 = vpop.xlane.xlu0 %3748
    %v3750 = vld [vmem:[#allocation6] sm:$0xff]
    %v3751 = vld [vmem:[#allocation6 + $0x8] sm:$0xff]
    %v3752 = vld [vmem:[#allocation6 + $0x10] sm:$0xff]
    %v3753 = vld [vmem:[#allocation6 + $0x18] sm:$0x1]
    %v3754 = vadd.f32 %v3739, %v3750
    %v3755 = vadd.f32 %v3742, %v3751
    %v3756 = vadd.f32 %v3745, %v3752
    %v3757 = vadd.f32 %v3749, %v3753
    %v3758 = vmax.f32 %v3754, 0.0
    %v3759 = vmax.f32 %v3755, 0.0
    %v3760 = vmax.f32 %v3756, 0.0
    %v3761 = vmax.f32 %v3757, 0.0
    %v3762 = vld [vmem:[#allocation6 + $0x8] sm:$0x3]
    %3765 = vrot.lane.b32.xlu0 %v3750, 127
    %v3766 = vpop.permute.xlu0 %3765
    %3767 = vrot.lane.b32.xlu0 %v3762, 127
    %v3768 = vpop.permute.xlu0 %3767
    %3769 = vrot.lane.b32.xlu0 %v3750, 102
    %v3770 = vpop.permute.xlu0 %3769
    %3771 = vrot.lane.b32.xlu0 %v3762, 102
    %v3772 = vpop.permute.xlu0 %3771
    %vm3775 = vcmask 203776
    %v3776 = vsel %vm3775, %v3766, 0
    %v3778 = vsel %vm3775, %v3768, 0
    %v3781 = vsel %vm231, %v3761, 0
    %3783 = vmatpush.msra.mxu0 0.0
    %3784 = vmatpush.msra.mxu0 0.0
    %3785 = vmatpush.msra.mxu0 0.0
    %3786 = vmatpush.msra.mxu0 0.0
    %3787 = vmatpush.msra.mxu0 0.0
    %3788 = vmatpush.msra.mxu0 0.0
    %3789 = vmatpush.msra.mxu0 0.0
    %3790 = vmatpush.msra.mxu0 0.0
    %3791 = vmatpush.msra.mxu0 0.0
    %3792 = vmatpush.msra.mxu0 0.0
    %3793 = vmatpush.msra.mxu0 0.0
    %3794 = vmatpush.msra.mxu0 0.0
    %3795 = vmatpush.msra.mxu0 %v3781
    %3796 = vmatpush.msra.mxu0 %v3760
    %3797 = vmatpush.msra.mxu0 %v3759
    %3798 = vmatpush.msra.mxu0 %v3758
    %3799 = vmatmul.f32.gmra.mxu0 %v3776
    %v3800 = vpop.f32.mrf.mxu0
    %v3801 = vadd.f32 %v3770, %v3800
    %3802 = vmatmul.f32.gmra.mxu0 %v3778
    %v3803 = vpop.f32.mrf.mxu0
    %v3804 = vadd.f32 %v3772, %v3803
    %3805 = vdwg.mxu0
    %vm3806 = vcmask 7168
    %3807 = vst.msk [vmem:[%s5] sm:$0xff] %vm3806, %v3801
    %vm3808 = vcmask 1024
    %3809 = vst.msk [vmem:[%s5 + $0x8] sm:$0x3] %vm3808, %v3804
    // Predicated region
    $region30: #{classify_digits_forward.1} parent=1 // pred_check
      _
    $region31: #{classify_digits_forward.1} parent=1 // pred_check_branch
      %3811 = sbr.rel (0) target = $region33
    $region32: #{classify_digits_forward.1} parent=1 // pred_region
      _
    $region33: #{classify_digits_forward.1} parent=1 // pred_fallthru
      _
    // Predicated region
    $region34: #{classify_digits_forward.1} parent=1 // pred_check
      _
    $region35: #{classify_digits_forward.1} parent=1 // pred_check_branch
      %3813 = sbr.rel (0) target = $region37
    $region36: #{classify_digits_forward.1} parent=1 // pred_region
      _
    $region37: #{classify_digits_forward.1} parent=1 // pred_fallthru
      _
    %3814 = vsyncpa [#allocation5], 1
    %3815 = vsyncpa [#allocation7], 1

</llo_original>
